<compile_context>
chip_gen: v7x
topology: tpu7x:2x2x1
jax: 0.10.0
libtpu: 0.0.40
codegen_flags: <defaults>
</compile_context>

<pallas_src>
import functools

import jax
import jax.numpy as jnp
import numpy as np
from jax.experimental import pallas as pl
from jax.experimental.pallas import tpu as pltpu

EPS = 1e-5
LANE = 128      # output channels padded to a multiple of this (TPU lane width)
SUBLANE = 8     # input channels padded to a multiple of this


def _ceil_to(x, m):
    return ((x + m - 1) // m) * m


def _cparams():
    # 48 MiB: raises the scoped default on v5e/v6e, leaves ~16 MiB headroom below
    # v7x's 64 MiB physical per-TC VMEM for compiler scratch / semaphores.
    return pltpu.CompilerParams(
        dimension_semantics=("parallel", "parallel"),
        vmem_limit_bytes=48 * 1024 * 1024)


# ---------------------------------------------------------------------------
# Kernels
# ---------------------------------------------------------------------------
def _conv1_bn_relu_kernel(*refs, n_phases, taps, out_hw):
    """conv3x3 (stride folded into spatial-phase views) + folded BN + ReLU.

    Implicit im2col in VMEM: the 9 tap windows are concatenated along the channel
    axis into one (mo, 9*cinp) LHS and contracted in a single MXU matmul.  The
    result is stored into a spatially pre-padded block (1-px zero halo) so the
    second conv needs no HBM pad round-trip.
    """
    x_refs = refs[:n_phases]
    w_ref, s_ref, b_ref, o_ref = refs[n_phases:]
    ho, wo = out_hw
    mo = ho * wo
    parts = []
    for (p, a, b) in taps:
        win = x_refs[p][0, a:a + ho, b:b + wo, :]          # (ho, wo, cinp) bf16, static slice
        parts.append(win.reshape(mo, win.shape[-1]))
    lhs = jnp.concatenate(parts, axis=-1)                  # (mo, 9*cinp)
    acc = jnp.dot(lhs, w_ref[...], preferred_element_type=jnp.float32)
    y = jnp.maximum(acc * s_ref[...] + b_ref[...], 0.0).astype(o_ref.dtype)
    o_ref[...] = jnp.zeros_like(o_ref)                     # zero the 1-px halo
    o_ref[0, 1:1 + ho, 1:1 + wo, :] = y.reshape(ho, wo, y.shape[-1])


def _conv2_proj_kernel(yp_ref, xsc_ref, w2_ref, wsc_ref,
                       s2_ref, b2_ref, ssc_ref, bsc_ref, o_ref,
                       *, sc_off, out_hw):
    """conv3x3(stride 1) + BN2, fused with the 1x1-conv projection shortcut + BN,
    residual add and final ReLU.  conv2 LHS = (mo, 9*coutp) single matmul."""
    ho, wo = out_hw
    mo = ho * wo
    parts = []
    for a in range(3):
        for b in range(3):
            win = yp_ref[0, a:a + ho, b:b + wo, :]
            parts.append(win.reshape(mo, win.shape[-1]))
    lhs = jnp.concatenate(parts, axis=-1)                  # (mo, 9*coutp)
    y = jnp.dot(lhs, w2_ref[...], preferred_element_type=jnp.float32)
    y = y * s2_ref[...] + b2_ref[...]
    xwin = xsc_ref[0, sc_off:sc_off + ho, sc_off:sc_off + wo, :]
    sc = jnp.dot(xwin.reshape(mo, xwin.shape[-1]), wsc_ref[...],
                 preferred_element_type=jnp.float32)
    sc = sc * ssc_ref[...] + bsc_ref[...]
    out = jnp.maximum(y + sc, 0.0).astype(o_ref.dtype)
    o_ref[...] = out.reshape(1, ho, wo, out.shape[-1])


def _conv2_identity_kernel(yp_ref, xres_ref, w2_ref, s2_ref, b2_ref, o_ref,
                           *, out_hw):
    """conv3x3(stride 1) + BN2, fused with an identity shortcut (direct residual add,
    no 1x1 matmul, no shortcut BN) and the final ReLU."""
    ho, wo = out_hw
    mo = ho * wo
    parts = []
    for a in range(3):
        for b in range(3):
            win = yp_ref[0, a:a + ho, b:b + wo, :]
            parts.append(win.reshape(mo, win.shape[-1]))
    lhs = jnp.concatenate(parts, axis=-1)                  # (mo, 9*coutp)
    y = jnp.dot(lhs, w2_ref[...], preferred_element_type=jnp.float32)
    y = y * s2_ref[...] + b2_ref[...]
    sc = xres_ref[...].reshape(mo, xres_ref.shape[-1]).astype(jnp.float32)
    out = jnp.maximum(y + sc, 0.0).astype(o_ref.dtype)
    o_ref[...] = out.reshape(1, ho, wo, out.shape[-1])


# ---------------------------------------------------------------------------
# pallas_call wrappers  (grid = (cout_blocks, batch): cout OUTER so the weight
# block stays VMEM-resident across the batch sweep)
# ---------------------------------------------------------------------------
def _conv1_pallas(phases, w1, s1, b1, *, n, ho, wo, hp, wp, cinp, coutp, taps):
    num_ph = len(phases)
    n_co = coutp // LANE
    hp2, wp2 = ho + 2, wo + 2
    k1 = 9 * cinp
    in_specs = ([pl.BlockSpec((1, hp, wp, cinp), lambda co, i: (i, 0, 0, 0))
                 for _ in range(num_ph)]
                + [pl.BlockSpec((k1, LANE), lambda co, i: (0, co)),
                   pl.BlockSpec((1, LANE), lambda co, i: (0, co)),
                   pl.BlockSpec((1, LANE), lambda co, i: (0, co))])
    kernel = functools.partial(_conv1_bn_relu_kernel, n_phases=num_ph,
                               taps=tuple(taps), out_hw=(ho, wo))
    return pl.pallas_call(
        kernel,
        out_shape=jax.ShapeDtypeStruct((n, hp2, wp2, coutp), jnp.bfloat16),
        grid_spec=pltpu.PrefetchScalarGridSpec(
            num_scalar_prefetch=0,
            grid=(n_co, n),
            in_specs=in_specs,
            out_specs=pl.BlockSpec((1, hp2, wp2, LANE), lambda co, i: (i, 0, 0, co))),
        compiler_params=_cparams(),
    )(*phases, w1, s1, b1)


def _conv2_proj_pallas(yp, xsc, w2, wsc, s2, b2, ssc, bsc, *,
                       n, ho, wo, cinp, coutp, sc_off):
    n_co = coutp // LANE
    hp2, wp2 = yp.shape[1], yp.shape[2]
    hpx, wpx = xsc.shape[1], xsc.shape[2]
    k2 = 9 * coutp
    in_specs = [
        pl.BlockSpec((1, hp2, wp2, coutp), lambda co, i: (i, 0, 0, 0)),
        pl.BlockSpec((1, hpx, wpx, cinp), lambda co, i: (i, 0, 0, 0)),
        pl.BlockSpec((k2, LANE), lambda co, i: (0, co)),
        pl.BlockSpec((cinp, LANE), lambda co, i: (0, co)),
        pl.BlockSpec((1, LANE), lambda co, i: (0, co)),
        pl.BlockSpec((1, LANE), lambda co, i: (0, co)),
        pl.BlockSpec((1, LANE), lambda co, i: (0, co)),
        pl.BlockSpec((1, LANE), lambda co, i: (0, co)),
    ]
    kernel = functools.partial(_conv2_proj_kernel, sc_off=sc_off, out_hw=(ho, wo))
    return pl.pallas_call(
        kernel,
        out_shape=jax.ShapeDtypeStruct((n, ho, wo, coutp), jnp.bfloat16),
        grid_spec=pltpu.PrefetchScalarGridSpec(
            num_scalar_prefetch=0,
            grid=(n_co, n),
            in_specs=in_specs,
            out_specs=pl.BlockSpec((1, ho, wo, LANE), lambda co, i: (i, 0, 0, co))),
        compiler_params=_cparams(),
    )(yp, xsc, w2, wsc, s2, b2, ssc, bsc)


def _conv2_identity_pallas(yp, xres, w2, s2, b2, *, n, ho, wo, coutp):
    n_co = coutp // LANE
    hp2, wp2 = yp.shape[1], yp.shape[2]
    k2 = 9 * coutp
    in_specs = [
        pl.BlockSpec((1, hp2, wp2, coutp), lambda co, i: (i, 0, 0, 0)),
        pl.BlockSpec((1, ho, wo, LANE), lambda co, i: (i, 0, 0, co)),
        pl.BlockSpec((k2, LANE), lambda co, i: (0, co)),
        pl.BlockSpec((1, LANE), lambda co, i: (0, co)),
        pl.BlockSpec((1, LANE), lambda co, i: (0, co)),
    ]
    kernel = functools.partial(_conv2_identity_kernel, out_hw=(ho, wo))
    return pl.pallas_call(
        kernel,
        out_shape=jax.ShapeDtypeStruct((n, ho, wo, coutp), jnp.bfloat16),
        grid_spec=pltpu.PrefetchScalarGridSpec(
            num_scalar_prefetch=0,
            grid=(n_co, n),
            in_specs=in_specs,
            out_specs=pl.BlockSpec((1, ho, wo, LANE), lambda co, i: (i, 0, 0, co))),
        compiler_params=_cparams(),
    )(yp, xres, w2, s2, b2)


# ---------------------------------------------------------------------------
# Parameter prep + forward (NHWC inside; PyTorch NCHW transposed at the boundary)
# ---------------------------------------------------------------------------
def _bn_fold(bn, coutp):
    gamma, beta, mean, var = bn
    scale = gamma / jnp.sqrt(var + EPS)
    bias = beta - mean * scale
    c = gamma.shape[0]
    scale = jnp.pad(scale, (0, coutp - c)).reshape(1, coutp).astype(jnp.float32)
    bias = jnp.pad(bias, (0, coutp - c)).reshape(1, coutp).astype(jnp.float32)
    return scale, bias


def _prep_w3x3(w_oihw, cinp, coutp):
    """(cout, cin, 3, 3) -> (9*cinp, coutp) bf16, tap-major along K (matches the
    in-kernel channel-concat order of the 9 shifted windows)."""
    cout, cin, kh, kw = w_oihw.shape
    w = jnp.transpose(w_oihw, (2, 3, 1, 0)).reshape(kh * kw, cin, cout)
    w = jnp.pad(w, ((0, 0), (0, cinp - cin), (0, coutp - cout)))
    return w.reshape(kh * kw * cinp, coutp).astype(jnp.bfloat16)


def _spatial_phases(x_nhwc, stride):
    """Zero-pad spatially by 1 and split into stride x stride phase views so every
    3x3-tap window (and the strided 1x1-shortcut window) is a contiguous static slice."""
    _, h, w, _ = x_nhwc.shape
    xp = jnp.pad(x_nhwc, ((0, 0), (1, 1), (1, 1), (0, 0)))
    hp = -(-(h + 2) // stride)
    wp = -(-(w + 2) // stride)
    phases = []
    for pi in range(stride):
        for pj in range(stride):
            ph = xp[:, pi::stride, pj::stride, :]
            ph = jnp.pad(ph, ((0, 0), (0, hp - ph.shape[1]), (0, wp - ph.shape[2]), (0, 0)))
            phases.append(ph)
    return phases, (hp, wp)


@functools.partial(jax.jit, static_argnames=("stride",))
def residual_block_forward(x_nhwc, params, *, stride):
    """ResidualBlock forward (eval-mode BN).  Returns bf16 NHWC; cast to f32 by the
    caller if strict dtype parity with the PyTorch module is required."""
    n, h, w, cin = x_nhwc.shape
    cout = params["w1"].shape[0]
    cinp = _ceil_to(cin, SUBLANE)
    coutp = _ceil_to(cout, LANE)
    ho = (h - 1) // stride + 1
    wo = (w - 1) // stride + 1
    has_proj = "w_sc" in params

    # Fold eval-mode BN into per-channel scale/bias (padded to coutp lanes).
    s1, b1 = _bn_fold(params["bn1"], coutp)
    s2, b2 = _bn_fold(params["bn2"], coutp)
    w1 = _prep_w3x3(params["w1"], cinp, coutp)           # (9*cinp,  coutp) bf16
    w2 = _prep_w3x3(params["w2"], coutp, coutp)          # (9*coutp, coutp) bf16

    # bf16 activations, channel-padded to a sublane multiple; phase-split padded image.
    xq = jnp.pad(x_nhwc, ((0, 0), (0, 0), (0, 0), (0, cinp - cin))).astype(jnp.bfloat16)
    x_phases, (hpx, wpx) = _spatial_phases(xq, stride)
    taps1 = [((kh % stride) * stride + (kw % stride), kh // stride, kw // stride)
             for kh in range(3) for kw in range(3)]

    # conv1 (3x3, stride) + BN1 + ReLU -> directly into a 1-px-zero-halo padded buffer.
    y_pad = _conv1_pallas(x_phases, w1, s1, b1, n=n, ho=ho, wo=wo, hp=hpx, wp=wpx,
                          cinp=cinp, coutp=coutp, taps=taps1)

    if has_proj:
        wsc = params["w_sc"][:, :, 0, 0].T               # (cin, cout)
        wsc = jnp.pad(wsc, ((0, cinp - cin), (0, coutp - cout))).astype(jnp.bfloat16)
        ssc, bsc = _bn_fold(params["bn_sc"], coutp)
        ph_sc = 1 % stride
        sc_off = (1 - ph_sc) // stride
        xsc = x_phases[ph_sc * stride + ph_sc]
        out = _conv2_proj_pallas(y_pad, xsc, w2, wsc, s2, b2, ssc, bsc,
                                 n=n, ho=ho, wo=wo, cinp=cinp, coutp=coutp,
                                 sc_off=sc_off)
    else:
        assert stride == 1 and cin == cout
        # Identity shortcut: residual added directly in the kernel (no eye matmul).
        xres = jnp.pad(x_nhwc, ((0, 0), (0, 0), (0, 0),
                                (0, coutp - cin))).astype(jnp.bfloat16)
        out = _conv2_identity_pallas(y_pad, xres, w2, s2, b2,
                                     n=n, ho=ho, wo=wo, coutp=coutp)

    return out[..., :cout]                               # (n, ho, wo, cout) bf16


# ---------------------------------------------------------------------------
# Pure-JAX f32 reference (same eval-mode BN semantics) for verification
# ---------------------------------------------------------------------------
def _ref_forward(x, params, stride):
    def conv(x, w, s, p):
        return jax.lax.conv_general_dilated(
            x, jnp.transpose(w, (2, 3, 1, 0)),
            window_strides=(s, s), padding=[(p, p), (p, p)],
            dimension_numbers=("NHWC", "HWIO", "NHWC"))

    def bn(x, pr):
        g, b, m, v = pr
        return g * (x - m) / jnp.sqrt(v + EPS) + b

    y = jax.nn.relu(bn(conv(x, params["w1"], stride, 1), params["bn1"]))
    y = bn(conv(y, params["w2"], 1, 1), params["bn2"])
    sc = bn(conv(x, params["w_sc"], stride, 0), params["bn_sc"]) if "w_sc" in params else x
    return jax.nn.relu(y + sc)


if __name__ == "__main__":
    def _bn_params(k, c):
        k1, k2, k3, k4 = jax.random.split(k, 4)
        return (jax.random.uniform(k1, (c,), jnp.float32, 0.5, 1.5),
                0.1 * jax.random.normal(k2, (c,), jnp.float32),
                0.1 * jax.random.normal(k3, (c,), jnp.float32),
                jax.random.uniform(k4, (c,), jnp.float32, 0.5, 1.5))

    def _run_case(key, n, cin, cout, h, w, stride):
        keys = jax.random.split(key, 8)
        x_nchw = jax.random.normal(keys[0], (n, cin, h, w), jnp.float32)  # PyTorch layout
        x = jnp.transpose(x_nchw, (0, 2, 3, 1))                           # NCHW -> NHWC
        params = {
            "w1": 0.1 * jax.random.normal(keys[1], (cout, cin, 3, 3), jnp.float32),
            "bn1": _bn_params(keys[2], cout),
            "w2": 0.1 * jax.random.normal(keys[3], (cout, cout, 3, 3), jnp.float32),
            "bn2": _bn_params(keys[4], cout),
        }
        if stride != 1 or cin != cout:
            params["w_sc"] = 0.1 * jax.random.normal(keys[5], (cout, cin, 1, 1), jnp.float32)
            params["bn_sc"] = _bn_params(keys[6], cout)
        out = jax.block_until_ready(residual_block_forward(x, params, stride=stride))
        ref = _ref_forward(x, params, stride)
        assert out.shape == (n, (h - 1) // stride + 1, (w - 1) // stride + 1, cout)
        # bf16 matmul operands + bf16 output vs f32 reference -> relaxed tolerance.
        np.testing.assert_allclose(np.asarray(out.astype(jnp.float32)), np.asarray(ref),
                                   rtol=5e-2, atol=5e-2)

    k1, k2 = jax.random.split(jax.random.PRNGKey(0))
    _run_case(k1, 2, 4, 8, 16, 16, 2)    # downsampling block (stride 2, conv shortcut)
    _run_case(k2, 2, 8, 8, 16, 16, 1)    # identity-shortcut block (stride 1)
    print("KERNEL_OK")
</pallas_src>

<mosaic_0001>
module attributes {stable_mosaic.version = 11 : i64} {
  func.func @_conv1_bn_relu_kernel(%arg0: i32, %arg1: i32, %arg2: memref<1x9x9x8xbf16, #tpu.memory_space<vmem>>, %arg3: memref<1x9x9x8xbf16, #tpu.memory_space<vmem>>, %arg4: memref<1x9x9x8xbf16, #tpu.memory_space<vmem>>, %arg5: memref<1x9x9x8xbf16, #tpu.memory_space<vmem>>, %arg6: memref<72x128xbf16, #tpu.memory_space<vmem>>, %arg7: memref<1x128xf32, #tpu.memory_space<vmem>>, %arg8: memref<1x128xf32, #tpu.memory_space<vmem>>, %arg9: memref<1x10x10x128xbf16, #tpu.memory_space<vmem>>) attributes {dimension_semantics = [#tpu.dimension_semantics<parallel>, #tpu.dimension_semantics<parallel>], iteration_bounds = array<i64: 1, 2>, scalar_prefetch = 0 : i64, scratch_operands = 0 : i64, tpu.core_type = #tpu.core_type<tc>, window_params = [{transform_indices = @transform_0, window_bounds = array<i64: 1, 9, 9, 8>}, {transform_indices = @transform_1, window_bounds = array<i64: 1, 9, 9, 8>}, {transform_indices = @transform_2, window_bounds = array<i64: 1, 9, 9, 8>}, {transform_indices = @transform_3, window_bounds = array<i64: 1, 9, 9, 8>}, {transform_indices = @transform_4, window_bounds = array<i64: 72, 128>}, {transform_indices = @transform_5, window_bounds = array<i64: 1, 128>}, {transform_indices = @transform_6, window_bounds = array<i64: 1, 128>}, {transform_indices = @transform_7, window_bounds = array<i64: 1, 10, 10, 128>}]} {
    %c0 = arith.constant 0 : index
    %c0_0 = arith.constant 0 : index
    %c0_1 = arith.constant 0 : index
    %c0_2 = arith.constant 0 : index
    %0 = vector.load %arg2[%c0, %c0_0, %c0_1, %c0_2] : memref<1x9x9x8xbf16, #tpu.memory_space<vmem>>, vector<1x8x8x8xbf16>
    %1 = vector.shape_cast %0 : vector<1x8x8x8xbf16> to vector<8x8x8xbf16>
    %2 = vector.shape_cast %1 : vector<8x8x8xbf16> to vector<64x8xbf16>
    %c0_3 = arith.constant 0 : index
    %c0_4 = arith.constant 0 : index
    %c0_5 = arith.constant 0 : index
    %c0_6 = arith.constant 0 : index
    %3 = vector.load %arg3[%c0_3, %c0_4, %c0_5, %c0_6] : memref<1x9x9x8xbf16, #tpu.memory_space<vmem>>, vector<1x8x8x8xbf16>
    %4 = vector.shape_cast %3 : vector<1x8x8x8xbf16> to vector<8x8x8xbf16>
    %5 = vector.shape_cast %4 : vector<8x8x8xbf16> to vector<64x8xbf16>
    %c0_7 = arith.constant 0 : index
    %c0_8 = arith.constant 0 : index
    %c1 = arith.constant 1 : index
    %c0_9 = arith.constant 0 : index
    %6 = vector.load %arg2[%c0_7, %c0_8, %c1, %c0_9] : memref<1x9x9x8xbf16, #tpu.memory_space<vmem>>, vector<1x8x8x8xbf16>
    %7 = vector.shape_cast %6 : vector<1x8x8x8xbf16> to vector<8x8x8xbf16>
    %8 = vector.shape_cast %7 : vector<8x8x8xbf16> to vector<64x8xbf16>
    %c0_10 = arith.constant 0 : index
    %c0_11 = arith.constant 0 : index
    %c0_12 = arith.constant 0 : index
    %c0_13 = arith.constant 0 : index
    %9 = vector.load %arg4[%c0_10, %c0_11, %c0_12, %c0_13] : memref<1x9x9x8xbf16, #tpu.memory_space<vmem>>, vector<1x8x8x8xbf16>
    %10 = vector.shape_cast %9 : vector<1x8x8x8xbf16> to vector<8x8x8xbf16>
    %11 = vector.shape_cast %10 : vector<8x8x8xbf16> to vector<64x8xbf16>
    %c0_14 = arith.constant 0 : index
    %c0_15 = arith.constant 0 : index
    %c0_16 = arith.constant 0 : index
    %c0_17 = arith.constant 0 : index
    %12 = vector.load %arg5[%c0_14, %c0_15, %c0_16, %c0_17] : memref<1x9x9x8xbf16, #tpu.memory_space<vmem>>, vector<1x8x8x8xbf16>
    %13 = vector.shape_cast %12 : vector<1x8x8x8xbf16> to vector<8x8x8xbf16>
    %14 = vector.shape_cast %13 : vector<8x8x8xbf16> to vector<64x8xbf16>
    %c0_18 = arith.constant 0 : index
    %c0_19 = arith.constant 0 : index
    %c1_20 = arith.constant 1 : index
    %c0_21 = arith.constant 0 : index
    %15 = vector.load %arg4[%c0_18, %c0_19, %c1_20, %c0_21] : memref<1x9x9x8xbf16, #tpu.memory_space<vmem>>, vector<1x8x8x8xbf16>
    %16 = vector.shape_cast %15 : vector<1x8x8x8xbf16> to vector<8x8x8xbf16>
    %17 = vector.shape_cast %16 : vector<8x8x8xbf16> to vector<64x8xbf16>
    %c0_22 = arith.constant 0 : index
    %c1_23 = arith.constant 1 : index
    %c0_24 = arith.constant 0 : index
    %c0_25 = arith.constant 0 : index
    %18 = vector.load %arg2[%c0_22, %c1_23, %c0_24, %c0_25] : memref<1x9x9x8xbf16, #tpu.memory_space<vmem>>, vector<1x8x8x8xbf16>
    %19 = vector.shape_cast %18 : vector<1x8x8x8xbf16> to vector<8x8x8xbf16>
    %20 = vector.shape_cast %19 : vector<8x8x8xbf16> to vector<64x8xbf16>
    %c0_26 = arith.constant 0 : index
    %c1_27 = arith.constant 1 : index
    %c0_28 = arith.constant 0 : index
    %c0_29 = arith.constant 0 : index
    %21 = vector.load %arg3[%c0_26, %c1_27, %c0_28, %c0_29] : memref<1x9x9x8xbf16, #tpu.memory_space<vmem>>, vector<1x8x8x8xbf16>
    %22 = vector.shape_cast %21 : vector<1x8x8x8xbf16> to vector<8x8x8xbf16>
    %23 = vector.shape_cast %22 : vector<8x8x8xbf16> to vector<64x8xbf16>
    %c0_30 = arith.constant 0 : index
    %c1_31 = arith.constant 1 : index
    %c1_32 = arith.constant 1 : index
    %c0_33 = arith.constant 0 : index
    %24 = vector.load %arg2[%c0_30, %c1_31, %c1_32, %c0_33] : memref<1x9x9x8xbf16, #tpu.memory_space<vmem>>, vector<1x8x8x8xbf16>
    %25 = vector.shape_cast %24 : vector<1x8x8x8xbf16> to vector<8x8x8xbf16>
    %26 = vector.shape_cast %25 : vector<8x8x8xbf16> to vector<64x8xbf16>
    %27 = tpu.concatenate %2, %5, %8, %11, %14, %17, %20, %23, %26 in 1 : vector<64x8xbf16>, vector<64x8xbf16>, vector<64x8xbf16>, vector<64x8xbf16>, vector<64x8xbf16>, vector<64x8xbf16>, vector<64x8xbf16>, vector<64x8xbf16>, vector<64x8xbf16> -> vector<64x72xbf16>
    %c0_34 = arith.constant 0 : index
    %c0_35 = arith.constant 0 : index
    %28 = vector.load %arg6[%c0_34, %c0_35] : memref<72x128xbf16, #tpu.memory_space<vmem>>, vector<72x128xbf16>
    %cst = arith.constant dense<0.000000e+00> : vector<64x128xf32>
    %29 = tpu.matmul %27, %28, %cst {dimension_numbers = #tpu.dot_dimension_numbers<[1], [0], [0], [1], [0, 0, 1, 1], [], []>} : vector<64x72xbf16>, vector<72x128xbf16>, vector<64x128xf32> -> vector<64x128xf32>
    %c0_36 = arith.constant 0 : index
    %c0_37 = arith.constant 0 : index
    %30 = vector.load %arg7[%c0_36, %c0_37] : memref<1x128xf32, #tpu.memory_space<vmem>>, vector<1x128xf32>
    %31 = vector.broadcast %30 : vector<1x128xf32> to vector<64x128xf32>
    %32 = arith.mulf %29, %31 : vector<64x128xf32>
    %c0_38 = arith.constant 0 : index
    %c0_39 = arith.constant 0 : index
    %33 = vector.load %arg8[%c0_38, %c0_39] : memref<1x128xf32, #tpu.memory_space<vmem>>, vector<1x128xf32>
    %34 = vector.broadcast %33 : vector<1x128xf32> to vector<64x128xf32>
    %35 = arith.addf %32, %34 : vector<64x128xf32>
    %cst_40 = arith.constant 0.000000e+00 : f32
    %36 = vector.broadcast %cst_40 : f32 to vector<64x128xf32>
    %37 = arith.maximumf %35, %36 : vector<64x128xf32>
    %38 = arith.truncf %37 : vector<64x128xf32> to vector<64x128xbf16>
    %cst_41 = arith.constant 0.000000e+00 : bf16
    %39 = vector.broadcast %cst_41 : bf16 to vector<1x10x10x128xbf16>
    %c0_42 = arith.constant 0 : index
    %c0_43 = arith.constant 0 : index
    %c0_44 = arith.constant 0 : index
    %c0_45 = arith.constant 0 : index
    %40 = vector.load %arg9[%c0_42, %c0_43, %c0_44, %c0_45] : memref<1x10x10x128xbf16, #tpu.memory_space<vmem>>, vector<1x10x10x128xbf16>
    tpu.vector_store %arg9[%c0_42, %c0_43, %c0_44, %c0_45], %39 {strides = array<i32>} : memref<1x10x10x128xbf16, #tpu.memory_space<vmem>>, vector<1x10x10x128xbf16>,
    %41 = vector.shape_cast %38 : vector<64x128xbf16> to vector<8x8x128xbf16>
    %c0_46 = arith.constant 0 : index
    %c1_47 = arith.constant 1 : index
    %c1_48 = arith.constant 1 : index
    %c0_49 = arith.constant 0 : index
    %42 = vector.load %arg9[%c0_46, %c1_47, %c1_48, %c0_49] : memref<1x10x10x128xbf16, #tpu.memory_space<vmem>>, vector<1x8x8x128xbf16>
    %43 = vector.shape_cast %42 : vector<1x8x8x128xbf16> to vector<8x8x128xbf16>
    %44 = vector.shape_cast %41 : vector<8x8x128xbf16> to vector<1x8x8x128xbf16>
    tpu.vector_store %arg9[%c0_46, %c1_47, %c1_48, %c0_49], %44 {strides = array<i32>} : memref<1x10x10x128xbf16, #tpu.memory_space<vmem>>, vector<1x8x8x128xbf16>,
    return
  }
  func.func @transform_0(%arg0: i32, %arg1: i32) -> (i32, i32, i32, i32) {
    %c0_i32 = arith.constant 0 : i32
    %c0_i32_0 = arith.constant 0 : i32
    %c0_i32_1 = arith.constant 0 : i32
    %c0_i32_2 = arith.constant 0 : i32
    return %arg1, %c0_i32, %c0_i32_0, %c0_i32_1 : i32, i32, i32, i32
  }
  func.func @transform_1(%arg0: i32, %arg1: i32) -> (i32, i32, i32, i32) {
    %c0_i32 = arith.constant 0 : i32
    %c0_i32_0 = arith.constant 0 : i32
    %c0_i32_1 = arith.constant 0 : i32
    %c0_i32_2 = arith.constant 0 : i32
    return %arg1, %c0_i32, %c0_i32_0, %c0_i32_1 : i32, i32, i32, i32
  }
  func.func @transform_2(%arg0: i32, %arg1: i32) -> (i32, i32, i32, i32) {
    %c0_i32 = arith.constant 0 : i32
    %c0_i32_0 = arith.constant 0 : i32
    %c0_i32_1 = arith.constant 0 : i32
    %c0_i32_2 = arith.constant 0 : i32
    return %arg1, %c0_i32, %c0_i32_0, %c0_i32_1 : i32, i32, i32, i32
  }
  func.func @transform_3(%arg0: i32, %arg1: i32) -> (i32, i32, i32, i32) {
    %c0_i32 = arith.constant 0 : i32
    %c0_i32_0 = arith.constant 0 : i32
    %c0_i32_1 = arith.constant 0 : i32
    %c0_i32_2 = arith.constant 0 : i32
    return %arg1, %c0_i32, %c0_i32_0, %c0_i32_1 : i32, i32, i32, i32
  }
  func.func @transform_4(%arg0: i32, %arg1: i32) -> (i32, i32) {
    %c0_i32 = arith.constant 0 : i32
    %c0_i32_0 = arith.constant 0 : i32
    return %c0_i32, %arg0 : i32, i32
  }
  func.func @transform_5(%arg0: i32, %arg1: i32) -> (i32, i32) {
    %c0_i32 = arith.constant 0 : i32
    %c0_i32_0 = arith.constant 0 : i32
    return %c0_i32, %arg0 : i32, i32
  }
  func.func @transform_6(%arg0: i32, %arg1: i32) -> (i32, i32) {
    %c0_i32 = arith.constant 0 : i32
    %c0_i32_0 = arith.constant 0 : i32
    return %c0_i32, %arg0 : i32, i32
  }
  func.func @transform_7(%arg0: i32, %arg1: i32) -> (i32, i32, i32, i32) {
    %c0_i32 = arith.constant 0 : i32
    %c0_i32_0 = arith.constant 0 : i32
    %c0_i32_1 = arith.constant 0 : i32
    return %arg1, %c0_i32, %c0_i32_0, %arg0 : i32, i32, i32, i32
  }
}

module attributes {stable_mosaic.version = 11 : i64} {
  func.func @_conv2_proj_kernel(%arg0: i32, %arg1: i32, %arg2: memref<1x10x10x128xbf16, #tpu.memory_space<vmem>>, %arg3: memref<1x9x9x8xbf16, #tpu.memory_space<vmem>>, %arg4: memref<1152x128xbf16, #tpu.memory_space<vmem>>, %arg5: memref<8x128xbf16, #tpu.memory_space<vmem>>, %arg6: memref<1x128xf32, #tpu.memory_space<vmem>>, %arg7: memref<1x128xf32, #tpu.memory_space<vmem>>, %arg8: memref<1x128xf32, #tpu.memory_space<vmem>>, %arg9: memref<1x128xf32, #tpu.memory_space<vmem>>, %arg10: memref<1x8x8x128xbf16, #tpu.memory_space<vmem>>) attributes {dimension_semantics = [#tpu.dimension_semantics<parallel>, #tpu.dimension_semantics<parallel>], iteration_bounds = array<i64: 1, 2>, scalar_prefetch = 0 : i64, scratch_operands = 0 : i64, tpu.core_type = #tpu.core_type<tc>, window_params = [{transform_indices = @transform_0, window_bounds = array<i64: 1, 10, 10, 128>}, {transform_indices = @transform_1, window_bounds = array<i64: 1, 9, 9, 8>}, {transform_indices = @transform_2, window_bounds = array<i64: 1152, 128>}, {transform_indices = @transform_3, window_bounds = array<i64: 8, 128>}, {transform_indices = @transform_4, window_bounds = array<i64: 1, 128>}, {transform_indices = @transform_5, window_bounds = array<i64: 1, 128>}, {transform_indices = @transform_6, window_bounds = array<i64: 1, 128>}, {transform_indices = @transform_7, window_bounds = array<i64: 1, 128>}, {transform_indices = @transform_8, window_bounds = array<i64: 1, 8, 8, 128>}]} {
    %c0 = arith.constant 0 : index
    %c0_0 = arith.constant 0 : index
    %c0_1 = arith.constant 0 : index
    %c0_2 = arith.constant 0 : index
    %0 = vector.load %arg2[%c0, %c0_0, %c0_1, %c0_2] : memref<1x10x10x128xbf16, #tpu.memory_space<vmem>>, vector<1x8x8x128xbf16>
    %1 = vector.shape_cast %0 : vector<1x8x8x128xbf16> to vector<8x8x128xbf16>
    %2 = vector.shape_cast %1 : vector<8x8x128xbf16> to vector<64x128xbf16>
    %c0_3 = arith.constant 0 : index
    %c0_4 = arith.constant 0 : index
    %c1 = arith.constant 1 : index
    %c0_5 = arith.constant 0 : index
    %3 = vector.load %arg2[%c0_3, %c0_4, %c1, %c0_5] : memref<1x10x10x128xbf16, #tpu.memory_space<vmem>>, vector<1x8x8x128xbf16>
    %4 = vector.shape_cast %3 : vector<1x8x8x128xbf16> to vector<8x8x128xbf16>
    %5 = vector.shape_cast %4 : vector<8x8x128xbf16> to vector<64x128xbf16>
    %c0_6 = arith.constant 0 : index
    %c0_7 = arith.constant 0 : index
    %c2 = arith.constant 2 : index
    %c0_8 = arith.constant 0 : index
    %6 = vector.load %arg2[%c0_6, %c0_7, %c2, %c0_8] : memref<1x10x10x128xbf16, #tpu.memory_space<vmem>>, vector<1x8x8x128xbf16>
    %7 = vector.shape_cast %6 : vector<1x8x8x128xbf16> to vector<8x8x128xbf16>
    %8 = vector.shape_cast %7 : vector<8x8x128xbf16> to vector<64x128xbf16>
    %c0_9 = arith.constant 0 : index
    %c1_10 = arith.constant 1 : index
    %c0_11 = arith.constant 0 : index
    %c0_12 = arith.constant 0 : index
    %9 = vector.load %arg2[%c0_9, %c1_10, %c0_11, %c0_12] : memref<1x10x10x128xbf16, #tpu.memory_space<vmem>>, vector<1x8x8x128xbf16>
    %10 = vector.shape_cast %9 : vector<1x8x8x128xbf16> to vector<8x8x128xbf16>
    %11 = vector.shape_cast %10 : vector<8x8x128xbf16> to vector<64x128xbf16>
    %c0_13 = arith.constant 0 : index
    %c1_14 = arith.constant 1 : index
    %c1_15 = arith.constant 1 : index
    %c0_16 = arith.constant 0 : index
    %12 = vector.load %arg2[%c0_13, %c1_14, %c1_15, %c0_16] : memref<1x10x10x128xbf16, #tpu.memory_space<vmem>>, vector<1x8x8x128xbf16>
    %13 = vector.shape_cast %12 : vector<1x8x8x128xbf16> to vector<8x8x128xbf16>
    %14 = vector.shape_cast %13 : vector<8x8x128xbf16> to vector<64x128xbf16>
    %c0_17 = arith.constant 0 : index
    %c1_18 = arith.constant 1 : index
    %c2_19 = arith.constant 2 : index
    %c0_20 = arith.constant 0 : index
    %15 = vector.load %arg2[%c0_17, %c1_18, %c2_19, %c0_20] : memref<1x10x10x128xbf16, #tpu.memory_space<vmem>>, vector<1x8x8x128xbf16>
    %16 = vector.shape_cast %15 : vector<1x8x8x128xbf16> to vector<8x8x128xbf16>
    %17 = vector.shape_cast %16 : vector<8x8x128xbf16> to vector<64x128xbf16>
    %c0_21 = arith.constant 0 : index
    %c2_22 = arith.constant 2 : index
    %c0_23 = arith.constant 0 : index
    %c0_24 = arith.constant 0 : index
    %18 = vector.load %arg2[%c0_21, %c2_22, %c0_23, %c0_24] : memref<1x10x10x128xbf16, #tpu.memory_space<vmem>>, vector<1x8x8x128xbf16>
    %19 = vector.shape_cast %18 : vector<1x8x8x128xbf16> to vector<8x8x128xbf16>
    %20 = vector.shape_cast %19 : vector<8x8x128xbf16> to vector<64x128xbf16>
    %c0_25 = arith.constant 0 : index
    %c2_26 = arith.constant 2 : index
    %c1_27 = arith.constant 1 : index
    %c0_28 = arith.constant 0 : index
    %21 = vector.load %arg2[%c0_25, %c2_26, %c1_27, %c0_28] : memref<1x10x10x128xbf16, #tpu.memory_space<vmem>>, vector<1x8x8x128xbf16>
    %22 = vector.shape_cast %21 : vector<1x8x8x128xbf16> to vector<8x8x128xbf16>
    %23 = vector.shape_cast %22 : vector<8x8x128xbf16> to vector<64x128xbf16>
    %c0_29 = arith.constant 0 : index
    %c2_30 = arith.constant 2 : index
    %c2_31 = arith.constant 2 : index
    %c0_32 = arith.constant 0 : index
    %24 = vector.load %arg2[%c0_29, %c2_30, %c2_31, %c0_32] : memref<1x10x10x128xbf16, #tpu.memory_space<vmem>>, vector<1x8x8x128xbf16>
    %25 = vector.shape_cast %24 : vector<1x8x8x128xbf16> to vector<8x8x128xbf16>
    %26 = vector.shape_cast %25 : vector<8x8x128xbf16> to vector<64x128xbf16>
    %27 = tpu.concatenate %2, %5, %8, %11, %14, %17, %20, %23, %26 in 1 : vector<64x128xbf16>, vector<64x128xbf16>, vector<64x128xbf16>, vector<64x128xbf16>, vector<64x128xbf16>, vector<64x128xbf16>, vector<64x128xbf16>, vector<64x128xbf16>, vector<64x128xbf16> -> vector<64x1152xbf16>
    %c0_33 = arith.constant 0 : index
    %c0_34 = arith.constant 0 : index
    %28 = vector.load %arg4[%c0_33, %c0_34] : memref<1152x128xbf16, #tpu.memory_space<vmem>>, vector<1152x128xbf16>
    %cst = arith.constant dense<0.000000e+00> : vector<64x128xf32>
    %29 = tpu.matmul %27, %28, %cst {dimension_numbers = #tpu.dot_dimension_numbers<[1], [0], [0], [1], [0, 0, 1, 1], [], []>} : vector<64x1152xbf16>, vector<1152x128xbf16>, vector<64x128xf32> -> vector<64x128xf32>
    %c0_35 = arith.constant 0 : index
    %c0_36 = arith.constant 0 : index
    %30 = vector.load %arg6[%c0_35, %c0_36] : memref<1x128xf32, #tpu.memory_space<vmem>>, vector<1x128xf32>
    %31 = vector.broadcast %30 : vector<1x128xf32> to vector<64x128xf32>
    %32 = arith.mulf %29, %31 : vector<64x128xf32>
    %c0_37 = arith.constant 0 : index
    %c0_38 = arith.constant 0 : index
    %33 = vector.load %arg7[%c0_37, %c0_38] : memref<1x128xf32, #tpu.memory_space<vmem>>, vector<1x128xf32>
    %34 = vector.broadcast %33 : vector<1x128xf32> to vector<64x128xf32>
    %35 = arith.addf %32, %34 : vector<64x128xf32>
    %c0_39 = arith.constant 0 : index
    %c0_40 = arith.constant 0 : index
    %c0_41 = arith.constant 0 : index
    %c0_42 = arith.constant 0 : index
    %36 = vector.load %arg3[%c0_39, %c0_40, %c0_41, %c0_42] : memref<1x9x9x8xbf16, #tpu.memory_space<vmem>>, vector<1x8x8x8xbf16>
    %37 = vector.shape_cast %36 : vector<1x8x8x8xbf16> to vector<8x8x8xbf16>
    %38 = vector.shape_cast %37 : vector<8x8x8xbf16> to vector<64x8xbf16>
    %c0_43 = arith.constant 0 : index
    %c0_44 = arith.constant 0 : index
    %39 = vector.load %arg5[%c0_43, %c0_44] : memref<8x128xbf16, #tpu.memory_space<vmem>>, vector<8x128xbf16>
    %cst_45 = arith.constant dense<0.000000e+00> : vector<64x128xf32>
    %40 = tpu.matmul %38, %39, %cst_45 {dimension_numbers = #tpu.dot_dimension_numbers<[1], [0], [0], [1], [0, 0, 1, 1], [], []>} : vector<64x8xbf16>, vector<8x128xbf16>, vector<64x128xf32> -> vector<64x128xf32>
    %c0_46 = arith.constant 0 : index
    %c0_47 = arith.constant 0 : index
    %41 = vector.load %arg8[%c0_46, %c0_47] : memref<1x128xf32, #tpu.memory_space<vmem>>, vector<1x128xf32>
    %42 = vector.broadcast %41 : vector<1x128xf32> to vector<64x128xf32>
    %43 = arith.mulf %40, %42 : vector<64x128xf32>
    %c0_48 = arith.constant 0 : index
    %c0_49 = arith.constant 0 : index
    %44 = vector.load %arg9[%c0_48, %c0_49] : memref<1x128xf32, #tpu.memory_space<vmem>>, vector<1x128xf32>
    %45 = vector.broadcast %44 : vector<1x128xf32> to vector<64x128xf32>
    %46 = arith.addf %43, %45 : vector<64x128xf32>
    %47 = arith.addf %35, %46 : vector<64x128xf32>
    %cst_50 = arith.constant 0.000000e+00 : f32
    %48 = vector.broadcast %cst_50 : f32 to vector<64x128xf32>
    %49 = arith.maximumf %47, %48 : vector<64x128xf32>
    %50 = arith.truncf %49 : vector<64x128xf32> to vector<64x128xbf16>
    %51 = vector.shape_cast %50 : vector<64x128xbf16> to vector<1x8x8x128xbf16>
    %c0_51 = arith.constant 0 : index
    %c0_52 = arith.constant 0 : index
    %c0_53 = arith.constant 0 : index
    %c0_54 = arith.constant 0 : index
    %52 = vector.load %arg10[%c0_51, %c0_52, %c0_53, %c0_54] : memref<1x8x8x128xbf16, #tpu.memory_space<vmem>>, vector<1x8x8x128xbf16>
    tpu.vector_store %arg10[%c0_51, %c0_52, %c0_53, %c0_54], %51 {strides = array<i32>} : memref<1x8x8x128xbf16, #tpu.memory_space<vmem>>, vector<1x8x8x128xbf16>,
    return
  }
  func.func @transform_0(%arg0: i32, %arg1: i32) -> (i32, i32, i32, i32) {
    %c0_i32 = arith.constant 0 : i32
    %c0_i32_0 = arith.constant 0 : i32
    %c0_i32_1 = arith.constant 0 : i32
    %c0_i32_2 = arith.constant 0 : i32
    return %arg1, %c0_i32, %c0_i32_0, %c0_i32_1 : i32, i32, i32, i32
  }
  func.func @transform_1(%arg0: i32, %arg1: i32) -> (i32, i32, i32, i32) {
    %c0_i32 = arith.constant 0 : i32
    %c0_i32_0 = arith.constant 0 : i32
    %c0_i32_1 = arith.constant 0 : i32
    %c0_i32_2 = arith.constant 0 : i32
    return %arg1, %c0_i32, %c0_i32_0, %c0_i32_1 : i32, i32, i32, i32
  }
  func.func @transform_2(%arg0: i32, %arg1: i32) -> (i32, i32) {
    %c0_i32 = arith.constant 0 : i32
    %c0_i32_0 = arith.constant 0 : i32
    return %c0_i32, %arg0 : i32, i32
  }
  func.func @transform_3(%arg0: i32, %arg1: i32) -> (i32, i32) {
    %c0_i32 = arith.constant 0 : i32
    %c0_i32_0 = arith.constant 0 : i32
    return %c0_i32, %arg0 : i32, i32
  }
  func.func @transform_4(%arg0: i32, %arg1: i32) -> (i32, i32) {
    %c0_i32 = arith.constant 0 : i32
    %c0_i32_0 = arith.constant 0 : i32
    return %c0_i32, %arg0 : i32, i32
  }
  func.func @transform_5(%arg0: i32, %arg1: i32) -> (i32, i32) {
    %c0_i32 = arith.constant 0 : i32
    %c0_i32_0 = arith.constant 0 : i32
    return %c0_i32, %arg0 : i32, i32
  }
  func.func @transform_6(%arg0: i32, %arg1: i32) -> (i32, i32) {
    %c0_i32 = arith.constant 0 : i32
    %c0_i32_0 = arith.constant 0 : i32
    return %c0_i32, %arg0 : i32, i32
  }
  func.func @transform_7(%arg0: i32, %arg1: i32) -> (i32, i32) {
    %c0_i32 = arith.constant 0 : i32
    %c0_i32_0 = arith.constant 0 : i32
    return %c0_i32, %arg0 : i32, i32
  }
  func.func @transform_8(%arg0: i32, %arg1: i32) -> (i32, i32, i32, i32) {
    %c0_i32 = arith.constant 0 : i32
    %c0_i32_0 = arith.constant 0 : i32
    %c0_i32_1 = arith.constant 0 : i32
    return %arg1, %c0_i32, %c0_i32_0, %arg0 : i32, i32, i32, i32
  }
}

</mosaic_0001>

<llo_original>
// kernel: residual_block_forward.2
$region0: #{residual_block_forward.2}
  #allocation0 [shape = 'u32[]', space=smem, size = 0x4, offset = 0x4, fixed_abs, tag = 'smem constant byte address 0x4 - core index']
  #allocation1 [shape = 'u32[144,128]{1,0:T(1,128)}', space=vmem, size = 0x12000, scoped, tag = 'internal scratch']
  %s0 = inlined_call_operand.vmem [shape: bf16[2,9,9,8], index: 0, kind: input, shape index: {}]
  %s1 = inlined_call_operand.vmem [shape: bf16[2,9,9,8], index: 1, kind: input, shape index: {}]
  %s2 = inlined_call_operand.vmem [shape: bf16[2,9,9,8], index: 2, kind: input, shape index: {}]
  %s3 = inlined_call_operand.vmem [shape: bf16[2,9,9,8], index: 3, kind: input, shape index: {}]
  %s4 = inlined_call_operand.vmem [shape: bf16[72,128], index: 4, kind: input, shape index: {}]
  %s5 = inlined_call_operand.vmem [shape: f32[1,128], index: 5, kind: input, shape index: {}]
  %s6 = inlined_call_operand.vmem [shape: f32[1,128], index: 6, kind: input, shape index: {}]
  %s7 = inlined_call_operand.vmem [shape: bf16[2,10,10,128], index: 7, kind: output, shape index: {}]
  %s8 = sld [smem:[#allocation0]]
  $region61: #{residual_block_forward.2} parent=0
    _
  %s10 = ssub.s32 1, %s8
  %s11 = scalar_select 0, %s10, %s8
  loop: start=0, step=1, limit=4
  $region2: #{residual_block_forward.2} parent=0 // loop_pre_header
    _
  $region3: #{residual_block_forward.2} parent=0 // loop_header
    %s13 = sphi 0, %s17
    %p14 = scmp.ge.s32.totalorder %s13, 4
    %s20 = sphi 0, %s32
    %s21 = sphi 0, %s28
    %s22 = sphi 0, %s20
    %s23 = sphi 0, %s21
    %s24 = sphi 0, %s22
    %s25 = sphi 0, %s23
    %s35 = sphi 0, %s37
    %s38 = sphi 0, %s35
    %s39 = sphi 0, %s38
    %s55 = sphi 0, %s39
    %s61 = sphi 0, %s63
    %s64 = sphi 0, %s61
    %s65 = sphi 0, %s64
    %s81 = sphi 0, %s65
    %s87 = sphi 0, %s89
    %s90 = sphi 0, %s87
    %s91 = sphi 0, %s90
    %s107 = sphi 0, %s91
    %s113 = sphi 0, %s115
    %s116 = sphi 0, %s113
    %s117 = sphi 0, %s116
    %s133 = sphi 0, %s117
    %s139 = sphi 0, %s141
    %s142 = sphi 0, %s139
    %s143 = sphi 0, %s142
    %s159 = sphi 0, %s143
    %s165 = sphi 0, %s167
    %s168 = sphi 0, %s165
    %s169 = sphi 0, %s168
    %s185 = sphi 0, %s169
    %s191 = sphi 0, %s193
    %s194 = sphi 0, %s191
    %s195 = sphi 0, %s194
    %s211 = sphi 0, %s195
    %s219 = sphi 0, %s221
    %s222 = sphi 0, %s219
    %s223 = sphi 0, %s222
    %s239 = sphi 0, %s223
  $region4: #{residual_block_forward.2} parent=0 // loop_header_branch
    %16 = sbr.rel (%p14) target = $region8
  $region5: #{residual_block_forward.2} parent=0 // loop_body
    %s18 = ssub.s32 %s13, 1
    %s19 = ssub.s32 %s13, 2
    %s26 = sadd.s32 1, %s21
    %p27 = scmp.ge.s32.totalorder %s26, 2
    %s28 = scalar_select %p27, 0, %s26
    %s29 = sadd.s32 1, %s20
    %s30 = scalar_select %p27, %s29, %s20
    %p31 = scmp.ge.s32.totalorder %s30, 1
    %s32 = scalar_select %p31, 0, %s30
    %s33 = ssub.s32 %s21, %s28
    %p34 = scmp.eq.s32.totalorder %s33, 0
    %s36 = sadd.s32 %s35, 1
    %s37 = scalar_select %p34, %s35, %s36
    %p40 = pneg %p34
    %p41 = scmp.eq.s32.totalorder %s13, 1
    %p42 = por %p40, %p41
    %p43 = scmp.ne.s32.totalorder %s35, %s38
    %p44 = scmp.eq.s32.totalorder %s13, 0
    %p45 = por %p43, %p44
    %p46 = scmp.ne.s32.totalorder %s35, %s38
    %p47 = scmp.eq.s32.totalorder %s18, 1
    %p48 = por %p46, %p47
    %p49 = scmp.ne.s32.totalorder %s38, %s39
    %p50 = scmp.eq.s32.totalorder %s18, 0
    %p51 = por %p49, %p50
    %p52 = scmp.ne.s32.totalorder %s38, %s39
    %p53 = scmp.eq.s32.totalorder %s19, 1
    %p54 = por %p52, %p53
    %p56 = scmp.ne.s32.totalorder %s39, %s55
    %p57 = scmp.eq.s32.totalorder %s19, 0
    %p58 = por %p56, %p57
    %s59 = ssub.s32 %s21, %s28
    %p60 = scmp.eq.s32.totalorder %s59, 0
    %s62 = sadd.s32 %s61, 1
    %s63 = scalar_select %p60, %s61, %s62
    %p66 = pneg %p60
    %p67 = scmp.eq.s32.totalorder %s13, 1
    %p68 = por %p66, %p67
    %p69 = scmp.ne.s32.totalorder %s61, %s64
    %p70 = scmp.eq.s32.totalorder %s13, 0
    %p71 = por %p69, %p70
    %p72 = scmp.ne.s32.totalorder %s61, %s64
    %p73 = scmp.eq.s32.totalorder %s18, 1
    %p74 = por %p72, %p73
    %p75 = scmp.ne.s32.totalorder %s64, %s65
    %p76 = scmp.eq.s32.totalorder %s18, 0
    %p77 = por %p75, %p76
    %p78 = scmp.ne.s32.totalorder %s64, %s65
    %p79 = scmp.eq.s32.totalorder %s19, 1
    %p80 = por %p78, %p79
    %p82 = scmp.ne.s32.totalorder %s65, %s81
    %p83 = scmp.eq.s32.totalorder %s19, 0
    %p84 = por %p82, %p83
    %s85 = ssub.s32 %s21, %s28
    %p86 = scmp.eq.s32.totalorder %s85, 0
    %s88 = sadd.s32 %s87, 1
    %s89 = scalar_select %p86, %s87, %s88
    %p92 = pneg %p86
    %p93 = scmp.eq.s32.totalorder %s13, 1
    %p94 = por %p92, %p93
    %p95 = scmp.ne.s32.totalorder %s87, %s90
    %p96 = scmp.eq.s32.totalorder %s13, 0
    %p97 = por %p95, %p96
    %p98 = scmp.ne.s32.totalorder %s87, %s90
    %p99 = scmp.eq.s32.totalorder %s18, 1
    %p100 = por %p98, %p99
    %p101 = scmp.ne.s32.totalorder %s90, %s91
    %p102 = scmp.eq.s32.totalorder %s18, 0
    %p103 = por %p101, %p102
    %p104 = scmp.ne.s32.totalorder %s90, %s91
    %p105 = scmp.eq.s32.totalorder %s19, 1
    %p106 = por %p104, %p105
    %p108 = scmp.ne.s32.totalorder %s91, %s107
    %p109 = scmp.eq.s32.totalorder %s19, 0
    %p110 = por %p108, %p109
    %s111 = ssub.s32 %s21, %s28
    %p112 = scmp.eq.s32.totalorder %s111, 0
    %s114 = sadd.s32 %s113, 1
    %s115 = scalar_select %p112, %s113, %s114
    %p118 = pneg %p112
    %p119 = scmp.eq.s32.totalorder %s13, 1
    %p120 = por %p118, %p119
    %p121 = scmp.ne.s32.totalorder %s113, %s116
    %p122 = scmp.eq.s32.totalorder %s13, 0
    %p123 = por %p121, %p122
    %p124 = scmp.ne.s32.totalorder %s113, %s116
    %p125 = scmp.eq.s32.totalorder %s18, 1
    %p126 = por %p124, %p125
    %p127 = scmp.ne.s32.totalorder %s116, %s117
    %p128 = scmp.eq.s32.totalorder %s18, 0
    %p129 = por %p127, %p128
    %p130 = scmp.ne.s32.totalorder %s116, %s117
    %p131 = scmp.eq.s32.totalorder %s19, 1
    %p132 = por %p130, %p131
    %p134 = scmp.ne.s32.totalorder %s117, %s133
    %p135 = scmp.eq.s32.totalorder %s19, 0
    %p136 = por %p134, %p135
    %s137 = ssub.s32 %s20, %s32
    %p138 = scmp.eq.s32.totalorder %s137, 0
    %s140 = sadd.s32 %s139, 1
    %s141 = scalar_select %p138, %s139, %s140
    %p144 = pneg %p138
    %p145 = scmp.eq.s32.totalorder %s13, 1
    %p146 = por %p144, %p145
    %p147 = scmp.ne.s32.totalorder %s139, %s142
    %p148 = scmp.eq.s32.totalorder %s13, 0
    %p149 = por %p147, %p148
    %p150 = scmp.ne.s32.totalorder %s139, %s142
    %p151 = scmp.eq.s32.totalorder %s18, 1
    %p152 = por %p150, %p151
    %p153 = scmp.ne.s32.totalorder %s142, %s143
    %p154 = scmp.eq.s32.totalorder %s18, 0
    %p155 = por %p153, %p154
    %p156 = scmp.ne.s32.totalorder %s142, %s143
    %p157 = scmp.eq.s32.totalorder %s19, 1
    %p158 = por %p156, %p157
    %p160 = scmp.ne.s32.totalorder %s143, %s159
    %p161 = scmp.eq.s32.totalorder %s19, 0
    %p162 = por %p160, %p161
    %s163 = ssub.s32 %s20, %s32
    %p164 = scmp.eq.s32.totalorder %s163, 0
    %s166 = sadd.s32 %s165, 1
    %s167 = scalar_select %p164, %s165, %s166
    %p170 = pneg %p164
    %p171 = scmp.eq.s32.totalorder %s13, 1
    %p172 = por %p170, %p171
    %p173 = scmp.ne.s32.totalorder %s165, %s168
    %p174 = scmp.eq.s32.totalorder %s13, 0
    %p175 = por %p173, %p174
    %p176 = scmp.ne.s32.totalorder %s165, %s168
    %p177 = scmp.eq.s32.totalorder %s18, 1
    %p178 = por %p176, %p177
    %p179 = scmp.ne.s32.totalorder %s168, %s169
    %p180 = scmp.eq.s32.totalorder %s18, 0
    %p181 = por %p179, %p180
    %p182 = scmp.ne.s32.totalorder %s168, %s169
    %p183 = scmp.eq.s32.totalorder %s19, 1
    %p184 = por %p182, %p183
    %p186 = scmp.ne.s32.totalorder %s169, %s185
    %p187 = scmp.eq.s32.totalorder %s19, 0
    %p188 = por %p186, %p187
    %s189 = ssub.s32 %s20, %s32
    %p190 = scmp.eq.s32.totalorder %s189, 0
    %s192 = sadd.s32 %s191, 1
    %s193 = scalar_select %p190, %s191, %s192
    %p196 = pneg %p190
    %p197 = scmp.eq.s32.totalorder %s13, 1
    %p198 = por %p196, %p197
    %p199 = scmp.ne.s32.totalorder %s191, %s194
    %p200 = scmp.eq.s32.totalorder %s13, 0
    %p201 = por %p199, %p200
    %p202 = scmp.ne.s32.totalorder %s191, %s194
    %p203 = scmp.eq.s32.totalorder %s18, 1
    %p204 = por %p202, %p203
    %p205 = scmp.ne.s32.totalorder %s194, %s195
    %p206 = scmp.eq.s32.totalorder %s18, 0
    %p207 = por %p205, %p206
    %p208 = scmp.ne.s32.totalorder %s194, %s195
    %p209 = scmp.eq.s32.totalorder %s19, 1
    %p210 = por %p208, %p209
    %p212 = scmp.ne.s32.totalorder %s195, %s211
    %p213 = scmp.eq.s32.totalorder %s19, 0
    %p214 = por %p212, %p213
    %s215 = ssub.s32 %s21, %s28
    %s216 = ssub.s32 %s20, %s32
    %s217 = sor.u32 %s215, %s216
    %p218 = scmp.eq.s32.totalorder %s217, 0
    %s220 = sadd.s32 %s219, 1
    %s221 = scalar_select %p218, %s219, %s220
    %p224 = pneg %p218
    %p225 = scmp.eq.s32.totalorder %s13, 1
    %p226 = por %p224, %p225
    %p227 = scmp.ne.s32.totalorder %s219, %s222
    %p228 = scmp.eq.s32.totalorder %s13, 0
    %p229 = por %p227, %p228
    %p230 = scmp.ne.s32.totalorder %s219, %s222
    %p231 = scmp.eq.s32.totalorder %s18, 1
    %p232 = por %p230, %p231
    %p233 = scmp.ne.s32.totalorder %s222, %s223
    %p234 = scmp.eq.s32.totalorder %s18, 0
    %p235 = por %p233, %p234
    %p236 = scmp.ne.s32.totalorder %s222, %s223
    %p237 = scmp.eq.s32.totalorder %s19, 1
    %p238 = por %p236, %p237
    %p240 = scmp.ne.s32.totalorder %s223, %s239
    %p241 = scmp.eq.s32.totalorder %s19, 0
    %p242 = por %p240, %p241
    %p243 = scmp.le.s32.totalorder 1, %s13
    %p244 = scmp.lt.s32.totalorder %s13, 3
    %p245 = pnand %p243, %p244
    %p246 = pneg %p245
    // Predicated region
    $region9: #{residual_block_forward.2} parent=5 // pred_check
      _
    $region10: #{residual_block_forward.2} parent=5 // pred_check_branch
      %248 = sbr.rel (%p245) target = $region12
    $region11: #{residual_block_forward.2} parent=5 // pred_region
      %s249 = ssub.s32 %s13, 1
      // Predicated region
      $region13: #{residual_block_forward.2} parent=11 // pred_check
        %p250 = pneg %p155
      $region14: #{residual_block_forward.2} parent=11 // pred_check_branch
        %252 = sbr.rel (%p250) target = $region16
      $region15: #{residual_block_forward.2} parent=11 // pred_region
        %p253 = scmp.lt.s32.totalorder %s22, 0
        %s254 = scalar_select %p253, %s22, 0
        %s255 = smul.addr %s254, 4
        %s256 = scalar_lea.vmem %s4, %s255
      $region16: #{residual_block_forward.2} parent=11 // pred_fallthru
        _
      // Predicated region
      $region17: #{residual_block_forward.2} parent=11 // pred_check
        %p257 = pneg %p181
      $region18: #{residual_block_forward.2} parent=11 // pred_check_branch
        %259 = sbr.rel (%p257) target = $region20
      $region19: #{residual_block_forward.2} parent=11 // pred_region
        %p260 = scmp.lt.s32.totalorder %s22, 0
        %s261 = scalar_select %p260, %s22, 0
        %s262 = scalar_lea.vmem %s5, %s261
      $region20: #{residual_block_forward.2} parent=11 // pred_fallthru
        _
      // Predicated region
      $region21: #{residual_block_forward.2} parent=11 // pred_check
        %p263 = pneg %p207
      $region22: #{residual_block_forward.2} parent=11 // pred_check_branch
        %265 = sbr.rel (%p263) target = $region24
      $region23: #{residual_block_forward.2} parent=11 // pred_region
        %p266 = scmp.lt.s32.totalorder %s22, 0
        %s267 = scalar_select %p266, %s22, 0
        %s268 = scalar_lea.vmem %s6, %s267
      $region24: #{residual_block_forward.2} parent=11 // pred_fallthru
        _
    $region12: #{residual_block_forward.2} parent=5 // pred_fallthru
      _
    %p269 = scmp.lt.s32.totalorder %s13, 2
    // Predicated region
    $region25: #{residual_block_forward.2} parent=5 // pred_check
      %p270 = pneg %p269
    $region26: #{residual_block_forward.2} parent=5 // pred_check_branch
      %272 = sbr.rel (%p270) target = $region28
    $region27: #{residual_block_forward.2} parent=5 // pred_region
      // Predicated region
      $region29: #{residual_block_forward.2} parent=27 // pred_check
        %p273 = pneg %p45
      $region30: #{residual_block_forward.2} parent=27 // pred_check_branch
        %275 = sbr.rel (%p273) target = $region32
      $region31: #{residual_block_forward.2} parent=27 // pred_region
        %p276 = scmp.lt.s32.totalorder %s21, 1
        %s277 = scalar_select %p276, %s21, 1
        %s278 = smul.addr %s277, 18
        %s279 = smul.addr %s278, 4
        %s280 = scalar_lea.vmem %s0, %s279
      $region32: #{residual_block_forward.2} parent=27 // pred_fallthru
        _
      // Predicated region
      $region33: #{residual_block_forward.2} parent=27 // pred_check
        %p281 = pneg %p71
      $region34: #{residual_block_forward.2} parent=27 // pred_check_branch
        %283 = sbr.rel (%p281) target = $region36
      $region35: #{residual_block_forward.2} parent=27 // pred_region
        %p284 = scmp.lt.s32.totalorder %s21, 1
        %s285 = scalar_select %p284, %s21, 1
        %s286 = smul.addr %s285, 18
        %s287 = smul.addr %s286, 4
        %s288 = scalar_lea.vmem %s1, %s287
      $region36: #{residual_block_forward.2} parent=27 // pred_fallthru
        _
      // Predicated region
      $region37: #{residual_block_forward.2} parent=27 // pred_check
        %p289 = pneg %p97
      $region38: #{residual_block_forward.2} parent=27 // pred_check_branch
        %291 = sbr.rel (%p289) target = $region40
      $region39: #{residual_block_forward.2} parent=27 // pred_region
        %p292 = scmp.lt.s32.totalorder %s21, 1
        %s293 = scalar_select %p292, %s21, 1
        %s294 = smul.addr %s293, 18
        %s295 = smul.addr %s294, 4
        %s296 = scalar_lea.vmem %s2, %s295
      $region40: #{residual_block_forward.2} parent=27 // pred_fallthru
        _
      // Predicated region
      $region41: #{residual_block_forward.2} parent=27 // pred_check
        %p297 = pneg %p123
      $region42: #{residual_block_forward.2} parent=27 // pred_check_branch
        %299 = sbr.rel (%p297) target = $region44
      $region43: #{residual_block_forward.2} parent=27 // pred_region
        %p300 = scmp.lt.s32.totalorder %s21, 1
        %s301 = scalar_select %p300, %s21, 1
        %s302 = smul.addr %s301, 18
        %s303 = smul.addr %s302, 4
        %s304 = scalar_lea.vmem %s3, %s303
      $region44: #{residual_block_forward.2} parent=27 // pred_fallthru
        _
    $region28: #{residual_block_forward.2} parent=5 // pred_fallthru
      _
    %p305 = scmp.le.s32.totalorder 1, %s13
    %p306 = scmp.lt.s32.totalorder %s13, 3
    %p307 = pnand %p305, %p306
    %p308 = pneg %p307
    // Predicated region
    $region45: #{residual_block_forward.2} parent=5 // pred_check
      _
    $region46: #{residual_block_forward.2} parent=5 // pred_check_branch
      %310 = sbr.rel (%p307) target = $region48
    $region47: #{residual_block_forward.2} parent=5 // pred_region
      %s311 = ssub.s32 %s13, 1
      %p312 = scmp.lt.s32.totalorder %s23, 1
      %s313 = scalar_select %p312, %s23, 1
      %s314 = smul.addr %s313, 18
      %s315 = smul.addr %s314, 4
      %s316 = scalar_lea.vmem %s0, %s315
      %p317 = pneg %p51
      %p318 = pneg %p48
      %p319 = scmp.lt.s32.totalorder %s23, 1
      %s320 = scalar_select %p319, %s23, 1
      %s321 = smul.addr %s320, 18
      %s322 = smul.addr %s321, 4
      %s323 = scalar_lea.vmem %s1, %s322
      %p324 = pneg %p77
      %p325 = pneg %p74
      %p326 = scmp.lt.s32.totalorder %s23, 1
      %s327 = scalar_select %p326, %s23, 1
      %s328 = smul.addr %s327, 18
      %s329 = smul.addr %s328, 4
      %s330 = scalar_lea.vmem %s2, %s329
      %p331 = pneg %p103
      %p332 = pneg %p100
      %p333 = scmp.lt.s32.totalorder %s23, 1
      %s334 = scalar_select %p333, %s23, 1
      %s335 = smul.addr %s334, 18
      %s336 = smul.addr %s335, 4
      %s337 = scalar_lea.vmem %s3, %s336
      %p338 = pneg %p129
      %p339 = pneg %p126
      %p340 = scmp.lt.s32.totalorder %s22, 0
      %s341 = scalar_select %p340, %s22, 0
      %s342 = smul.addr %s341, 4
      %s343 = scalar_lea.vmem %s4, %s342
      %p344 = pneg %p155
      %p345 = pneg %p152
      %p346 = scmp.lt.s32.totalorder %s22, 0
      %s347 = scalar_select %p346, %s22, 0
      %s348 = scalar_lea.vmem %s5, %s347
      %p349 = pneg %p181
      %p350 = pneg %p178
      %p351 = scmp.lt.s32.totalorder %s22, 0
      %s352 = scalar_select %p351, %s22, 0
      %s353 = scalar_lea.vmem %s6, %s352
      %p354 = pneg %p207
      %p355 = pneg %p204
      %p356 = pneg %p235
      %p357 = pneg %p232
      %p358 = scmp.lt.s32.totalorder %s23, 1
      %s359 = scalar_select %p358, %s23, 1
      %p360 = scmp.lt.s32.totalorder %s22, 0
      %s361 = scalar_select %p360, %s22, 0
      %s362 = smul.addr %s359, 20
      %s363 = sadd.s32 %s361, %s362
      %s364 = smul.addr %s363, 4
      %s365 = scalar_lea.vmem %s7, %s364
      %p366 = scmp.lt.s32.totalorder %s23, 1
      %s367 = scalar_select %p366, %s23, 1
      %s368 = smul.addr %s367, 18
      %s369 = smul.addr %s368, 4
      %s370 = scalar_lea.vmem %s0, %s369
      %p371 = scmp.lt.s32.totalorder %s23, 1
      %s372 = scalar_select %p371, %s23, 1
      %s373 = smul.addr %s372, 18
      %s374 = smul.addr %s373, 4
      %s375 = scalar_lea.vmem %s1, %s374
      %p376 = scmp.lt.s32.totalorder %s23, 1
      %s377 = scalar_select %p376, %s23, 1
      %s378 = smul.addr %s377, 18
      %s379 = smul.addr %s378, 4
      %s380 = scalar_lea.vmem %s2, %s379
      %p381 = scmp.lt.s32.totalorder %s23, 1
      %s382 = scalar_select %p381, %s23, 1
      %s383 = smul.addr %s382, 18
      %s384 = smul.addr %s383, 4
      %s385 = scalar_lea.vmem %s3, %s384
      %p386 = scmp.lt.s32.totalorder %s22, 0
      %s387 = scalar_select %p386, %s22, 0
      %s388 = smul.addr %s387, 4
      %s389 = scalar_lea.vmem %s4, %s388
      %p390 = scmp.lt.s32.totalorder %s22, 0
      %s391 = scalar_select %p390, %s22, 0
      %s392 = scalar_lea.vmem %s5, %s391
      %p393 = scmp.lt.s32.totalorder %s22, 0
      %s394 = scalar_select %p393, %s22, 0
      %s395 = scalar_lea.vmem %s6, %s394
      %p396 = scmp.lt.s32.totalorder %s23, 1
      %s397 = scalar_select %p396, %s23, 1
      %p398 = scmp.lt.s32.totalorder %s22, 0
      %s399 = scalar_select %p398, %s22, 0
      %s400 = smul.addr %s397, 20
      %s401 = sadd.s32 %s399, %s400
      %s402 = smul.addr %s401, 4
      %s403 = scalar_lea.vmem %s7, %s402
      %v405 = vld [vmem:[%s370] sm:$0xf]
      %v406 = vld [vmem:[%s370 + $0x8] sm:$0xf]
      %v407 = vld [vmem:[%s370 + $0x10] sm:$0xf]
      %v408 = vld [vmem:[%s370 + $0x18] sm:$0xf]
      %v409 = vld [vmem:[%s370 + $0x20] sm:$0xf]
      %v410 = vld [vmem:[%s370 + $0x28] sm:$0xf]
      %v411 = vld [vmem:[%s370 + $0x30] sm:$0xf]
      %v412 = vld [vmem:[%s370 + $0x38] sm:$0xf]
      %v413 = vld [vmem:[%s375] sm:$0xf]
      %v414 = vld [vmem:[%s375 + $0x8] sm:$0xf]
      %v415 = vld [vmem:[%s375 + $0x10] sm:$0xf]
      %v416 = vld [vmem:[%s375 + $0x18] sm:$0xf]
      %v417 = vld [vmem:[%s375 + $0x20] sm:$0xf]
      %v418 = vld [vmem:[%s375 + $0x28] sm:$0xf]
      %v419 = vld [vmem:[%s375 + $0x30] sm:$0xf]
      %v420 = vld [vmem:[%s375 + $0x38] sm:$0xf]
      %v421 = vld [vmem:[%s370 + $0x4] sm:$0x1]
      %v422 = vld [vmem:[%s370 + $0xc] sm:$0x1]
      %v423 = vld [vmem:[%s370 + $0x14] sm:$0x1]
      %v424 = vld [vmem:[%s370 + $0x1c] sm:$0x1]
      %v425 = vld [vmem:[%s370 + $0x24] sm:$0x1]
      %v426 = vld [vmem:[%s370 + $0x2c] sm:$0x1]
      %v427 = vld [vmem:[%s370 + $0x34] sm:$0x1]
      %v428 = vld [vmem:[%s370 + $0x3c] sm:$0x1]
      %vm429 = vsmask.f32 3328
      %vm430 = vsmask.f32 7440
      %vm431 = vmor %vm429, %vm430
      %v433 = vshrl.u32 %v405, 16
      %v435 = vrot.slane %v433, 4
      %v436 = vshll.u32 %v405, 16
      %v438 = vrot.slane %v436, 5
      %v439 = vor.u32 %v435, %v438
      %v440 = vrot.slane %v439, 4
      %v442 = vshll.u32 %v421, 16
      %v444 = vrot.slane %v442, 5
      %v445 = vsel %vm431, %v440, %v444
      %v447 = vshrl.u32 %v406, 16
      %v449 = vrot.slane %v447, 4
      %v450 = vshll.u32 %v406, 16
      %v452 = vrot.slane %v450, 5
      %v453 = vor.u32 %v449, %v452
      %v454 = vrot.slane %v453, 4
      %v456 = vshll.u32 %v422, 16
      %v458 = vrot.slane %v456, 5
      %v459 = vsel %vm431, %v454, %v458
      %v461 = vshrl.u32 %v407, 16
      %v463 = vrot.slane %v461, 4
      %v464 = vshll.u32 %v407, 16
      %v466 = vrot.slane %v464, 5
      %v467 = vor.u32 %v463, %v466
      %v468 = vrot.slane %v467, 4
      %v470 = vshll.u32 %v423, 16
      %v472 = vrot.slane %v470, 5
      %v473 = vsel %vm431, %v468, %v472
      %v475 = vshrl.u32 %v408, 16
      %v477 = vrot.slane %v475, 4
      %v478 = vshll.u32 %v408, 16
      %v480 = vrot.slane %v478, 5
      %v481 = vor.u32 %v477, %v480
      %v482 = vrot.slane %v481, 4
      %v484 = vshll.u32 %v424, 16
      %v486 = vrot.slane %v484, 5
      %v487 = vsel %vm431, %v482, %v486
      %v489 = vshrl.u32 %v409, 16
      %v491 = vrot.slane %v489, 4
      %v492 = vshll.u32 %v409, 16
      %v494 = vrot.slane %v492, 5
      %v495 = vor.u32 %v491, %v494
      %v496 = vrot.slane %v495, 4
      %v498 = vshll.u32 %v425, 16
      %v500 = vrot.slane %v498, 5
      %v501 = vsel %vm431, %v496, %v500
      %v503 = vshrl.u32 %v410, 16
      %v505 = vrot.slane %v503, 4
      %v506 = vshll.u32 %v410, 16
      %v508 = vrot.slane %v506, 5
      %v509 = vor.u32 %v505, %v508
      %v510 = vrot.slane %v509, 4
      %v512 = vshll.u32 %v426, 16
      %v514 = vrot.slane %v512, 5
      %v515 = vsel %vm431, %v510, %v514
      %v517 = vshrl.u32 %v411, 16
      %v519 = vrot.slane %v517, 4
      %v520 = vshll.u32 %v411, 16
      %v522 = vrot.slane %v520, 5
      %v523 = vor.u32 %v519, %v522
      %v524 = vrot.slane %v523, 4
      %v526 = vshll.u32 %v427, 16
      %v528 = vrot.slane %v526, 5
      %v529 = vsel %vm431, %v524, %v528
      %v531 = vshrl.u32 %v412, 16
      %v533 = vrot.slane %v531, 4
      %v534 = vshll.u32 %v412, 16
      %v536 = vrot.slane %v534, 5
      %v537 = vor.u32 %v533, %v536
      %v538 = vrot.slane %v537, 4
      %v540 = vshll.u32 %v428, 16
      %v542 = vrot.slane %v540, 5
      %v543 = vsel %vm431, %v538, %v542
      %v544 = vld [vmem:[%s380] sm:$0xf]
      %v545 = vld [vmem:[%s380 + $0x8] sm:$0xf]
      %v546 = vld [vmem:[%s380 + $0x10] sm:$0xf]
      %v547 = vld [vmem:[%s380 + $0x18] sm:$0xf]
      %v548 = vld [vmem:[%s380 + $0x20] sm:$0xf]
      %v549 = vld [vmem:[%s380 + $0x28] sm:$0xf]
      %v550 = vld [vmem:[%s380 + $0x30] sm:$0xf]
      %v551 = vld [vmem:[%s380 + $0x38] sm:$0xf]
      %v552 = vld [vmem:[%s385] sm:$0xf]
      %v553 = vld [vmem:[%s385 + $0x8] sm:$0xf]
      %v554 = vld [vmem:[%s385 + $0x10] sm:$0xf]
      %v555 = vld [vmem:[%s385 + $0x18] sm:$0xf]
      %v556 = vld [vmem:[%s385 + $0x20] sm:$0xf]
      %v557 = vld [vmem:[%s385 + $0x28] sm:$0xf]
      %v558 = vld [vmem:[%s385 + $0x30] sm:$0xf]
      %v559 = vld [vmem:[%s385 + $0x38] sm:$0xf]
      %v560 = vld [vmem:[%s380 + $0x4] sm:$0x1]
      %v561 = vld [vmem:[%s380 + $0xc] sm:$0x1]
      %v562 = vld [vmem:[%s380 + $0x14] sm:$0x1]
      %v563 = vld [vmem:[%s380 + $0x1c] sm:$0x1]
      %v564 = vld [vmem:[%s380 + $0x24] sm:$0x1]
      %v565 = vld [vmem:[%s380 + $0x2c] sm:$0x1]
      %v566 = vld [vmem:[%s380 + $0x34] sm:$0x1]
      %v567 = vld [vmem:[%s380 + $0x3c] sm:$0x1]
      %v569 = vshrl.u32 %v544, 16
      %v571 = vrot.slane %v569, 4
      %v572 = vshll.u32 %v544, 16
      %v574 = vrot.slane %v572, 5
      %v575 = vor.u32 %v571, %v574
      %v576 = vrot.slane %v575, 4
      %v578 = vshll.u32 %v560, 16
      %v580 = vrot.slane %v578, 5
      %v581 = vsel %vm431, %v576, %v580
      %v583 = vshrl.u32 %v545, 16
      %v585 = vrot.slane %v583, 4
      %v586 = vshll.u32 %v545, 16
      %v588 = vrot.slane %v586, 5
      %v589 = vor.u32 %v585, %v588
      %v590 = vrot.slane %v589, 4
      %v592 = vshll.u32 %v561, 16
      %v594 = vrot.slane %v592, 5
      %v595 = vsel %vm431, %v590, %v594
      %v597 = vshrl.u32 %v546, 16
      %v599 = vrot.slane %v597, 4
      %v600 = vshll.u32 %v546, 16
      %v602 = vrot.slane %v600, 5
      %v603 = vor.u32 %v599, %v602
      %v604 = vrot.slane %v603, 4
      %v606 = vshll.u32 %v562, 16
      %v608 = vrot.slane %v606, 5
      %v609 = vsel %vm431, %v604, %v608
      %v611 = vshrl.u32 %v547, 16
      %v613 = vrot.slane %v611, 4
      %v614 = vshll.u32 %v547, 16
      %v616 = vrot.slane %v614, 5
      %v617 = vor.u32 %v613, %v616
      %v618 = vrot.slane %v617, 4
      %v620 = vshll.u32 %v563, 16
      %v622 = vrot.slane %v620, 5
      %v623 = vsel %vm431, %v618, %v622
      %v625 = vshrl.u32 %v548, 16
      %v627 = vrot.slane %v625, 4
      %v628 = vshll.u32 %v548, 16
      %v630 = vrot.slane %v628, 5
      %v631 = vor.u32 %v627, %v630
      %v632 = vrot.slane %v631, 4
      %v634 = vshll.u32 %v564, 16
      %v636 = vrot.slane %v634, 5
      %v637 = vsel %vm431, %v632, %v636
      %v639 = vshrl.u32 %v549, 16
      %v641 = vrot.slane %v639, 4
      %v642 = vshll.u32 %v549, 16
      %v644 = vrot.slane %v642, 5
      %v645 = vor.u32 %v641, %v644
      %v646 = vrot.slane %v645, 4
      %v648 = vshll.u32 %v565, 16
      %v650 = vrot.slane %v648, 5
      %v651 = vsel %vm431, %v646, %v650
      %v653 = vshrl.u32 %v550, 16
      %v655 = vrot.slane %v653, 4
      %v656 = vshll.u32 %v550, 16
      %v658 = vrot.slane %v656, 5
      %v659 = vor.u32 %v655, %v658
      %v660 = vrot.slane %v659, 4
      %v662 = vshll.u32 %v566, 16
      %v664 = vrot.slane %v662, 5
      %v665 = vsel %vm431, %v660, %v664
      %v667 = vshrl.u32 %v551, 16
      %v669 = vrot.slane %v667, 4
      %v670 = vshll.u32 %v551, 16
      %v672 = vrot.slane %v670, 5
      %v673 = vor.u32 %v669, %v672
      %v674 = vrot.slane %v673, 4
      %v676 = vshll.u32 %v567, 16
      %v678 = vrot.slane %v676, 5
      %v679 = vsel %vm431, %v674, %v678
      %s680 = scalar_lea.vmem %s370, 8
      %v681 = vld [vmem:[%s680] sm:$0xf]
      %v682 = vld [vmem:[%s680 + $0x8] sm:$0xf]
      %v683 = vld [vmem:[%s680 + $0x10] sm:$0xf]
      %v684 = vld [vmem:[%s680 + $0x18] sm:$0xf]
      %v685 = vld [vmem:[%s680 + $0x20] sm:$0xf]
      %v686 = vld [vmem:[%s680 + $0x28] sm:$0xf]
      %v687 = vld [vmem:[%s680 + $0x30] sm:$0xf]
      %v688 = vld [vmem:[%s680 + $0x38] sm:$0xf]
      %s689 = scalar_lea.vmem %s375, 8
      %v690 = vld [vmem:[%s689] sm:$0xf]
      %v691 = vld [vmem:[%s689 + $0x8] sm:$0xf]
      %v692 = vld [vmem:[%s689 + $0x10] sm:$0xf]
      %v693 = vld [vmem:[%s689 + $0x18] sm:$0xf]
      %v694 = vld [vmem:[%s689 + $0x20] sm:$0xf]
      %v695 = vld [vmem:[%s689 + $0x28] sm:$0xf]
      %v696 = vld [vmem:[%s689 + $0x30] sm:$0xf]
      %v697 = vld [vmem:[%s689 + $0x38] sm:$0xf]
      %v698 = vld [vmem:[%s680 + $0x4] sm:$0x1]
      %v699 = vld [vmem:[%s680 + $0xc] sm:$0x1]
      %v700 = vld [vmem:[%s680 + $0x14] sm:$0x1]
      %v701 = vld [vmem:[%s680 + $0x1c] sm:$0x1]
      %v702 = vld [vmem:[%s680 + $0x24] sm:$0x1]
      %v703 = vld [vmem:[%s680 + $0x2c] sm:$0x1]
      %v704 = vld [vmem:[%s680 + $0x34] sm:$0x1]
      %v705 = vld [vmem:[%s680 + $0x3c] sm:$0x1]
      %v707 = vshrl.u32 %v681, 16
      %v709 = vrot.slane %v707, 4
      %v710 = vshll.u32 %v681, 16
      %v712 = vrot.slane %v710, 5
      %v713 = vor.u32 %v709, %v712
      %v714 = vrot.slane %v713, 4
      %v716 = vshll.u32 %v698, 16
      %v718 = vrot.slane %v716, 5
      %v719 = vsel %vm431, %v714, %v718
      %v721 = vshrl.u32 %v682, 16
      %v723 = vrot.slane %v721, 4
      %v724 = vshll.u32 %v682, 16
      %v726 = vrot.slane %v724, 5
      %v727 = vor.u32 %v723, %v726
      %v728 = vrot.slane %v727, 4
      %v730 = vshll.u32 %v699, 16
      %v732 = vrot.slane %v730, 5
      %v733 = vsel %vm431, %v728, %v732
      %v735 = vshrl.u32 %v683, 16
      %v737 = vrot.slane %v735, 4
      %v738 = vshll.u32 %v683, 16
      %v740 = vrot.slane %v738, 5
      %v741 = vor.u32 %v737, %v740
      %v742 = vrot.slane %v741, 4
      %v744 = vshll.u32 %v700, 16
      %v746 = vrot.slane %v744, 5
      %v747 = vsel %vm431, %v742, %v746
      %v749 = vshrl.u32 %v684, 16
      %v751 = vrot.slane %v749, 4
      %v752 = vshll.u32 %v684, 16
      %v754 = vrot.slane %v752, 5
      %v755 = vor.u32 %v751, %v754
      %v756 = vrot.slane %v755, 4
      %v758 = vshll.u32 %v701, 16
      %v760 = vrot.slane %v758, 5
      %v761 = vsel %vm431, %v756, %v760
      %v763 = vshrl.u32 %v685, 16
      %v765 = vrot.slane %v763, 4
      %v766 = vshll.u32 %v685, 16
      %v768 = vrot.slane %v766, 5
      %v769 = vor.u32 %v765, %v768
      %v770 = vrot.slane %v769, 4
      %v772 = vshll.u32 %v702, 16
      %v774 = vrot.slane %v772, 5
      %v775 = vsel %vm431, %v770, %v774
      %v777 = vshrl.u32 %v686, 16
      %v779 = vrot.slane %v777, 4
      %v780 = vshll.u32 %v686, 16
      %v782 = vrot.slane %v780, 5
      %v783 = vor.u32 %v779, %v782
      %v784 = vrot.slane %v783, 4
      %v786 = vshll.u32 %v703, 16
      %v788 = vrot.slane %v786, 5
      %v789 = vsel %vm431, %v784, %v788
      %v791 = vshrl.u32 %v687, 16
      %v793 = vrot.slane %v791, 4
      %v794 = vshll.u32 %v687, 16
      %v796 = vrot.slane %v794, 5
      %v797 = vor.u32 %v793, %v796
      %v798 = vrot.slane %v797, 4
      %v800 = vshll.u32 %v704, 16
      %v802 = vrot.slane %v800, 5
      %v803 = vsel %vm431, %v798, %v802
      %v805 = vshrl.u32 %v688, 16
      %v807 = vrot.slane %v805, 4
      %v808 = vshll.u32 %v688, 16
      %v810 = vrot.slane %v808, 5
      %v811 = vor.u32 %v807, %v810
      %v812 = vrot.slane %v811, 4
      %v814 = vshll.u32 %v705, 16
      %v816 = vrot.slane %v814, 5
      %v817 = vsel %vm431, %v812, %v816
      %v826 = vunpack.c.l.b16 %v405
      %v827 = vunpack.c.l.b16 %v406
      %v828 = vunpack.c.l.b16 %v407
      %v829 = vunpack.c.l.b16 %v408
      %v830 = vunpack.c.l.b16 %v409
      %v831 = vunpack.c.l.b16 %v410
      %v832 = vunpack.c.l.b16 %v411
      %v833 = vunpack.c.l.b16 %v412
      %v834 = vpack.c.b16 %v827, %v826
      %v835 = vpack.c.b16 %v829, %v828
      %v836 = vpack.c.b16 %v831, %v830
      %v837 = vpack.c.b16 %v833, %v832
      %v846 = vunpack.c.l.b16 %v413
      %v847 = vunpack.c.l.b16 %v414
      %v848 = vunpack.c.l.b16 %v415
      %v849 = vunpack.c.l.b16 %v416
      %v850 = vunpack.c.l.b16 %v417
      %v851 = vunpack.c.l.b16 %v418
      %v852 = vunpack.c.l.b16 %v419
      %v853 = vunpack.c.l.b16 %v420
      %v854 = vpack.c.b16 %v847, %v846
      %v855 = vpack.c.b16 %v849, %v848
      %v856 = vpack.c.b16 %v851, %v850
      %v857 = vpack.c.b16 %v853, %v852
      %858 = vrot.lane.b32.xlu0 %v854, 8
      %v859 = vpop.permute.xlu0 %858
      %860 = vrot.lane.b32.xlu0 %v855, 8
      %v861 = vpop.permute.xlu0 %860
      %862 = vrot.lane.b32.xlu0 %v856, 8
      %v863 = vpop.permute.xlu0 %862
      %864 = vrot.lane.b32.xlu0 %v857, 8
      %v865 = vpop.permute.xlu0 %864
      %v866 = vunpack.c.l.b16 %v445
      %v867 = vunpack.c.l.b16 %v459
      %v868 = vunpack.c.l.b16 %v473
      %v869 = vunpack.c.l.b16 %v487
      %v870 = vunpack.c.l.b16 %v501
      %v871 = vunpack.c.l.b16 %v515
      %v872 = vunpack.c.l.b16 %v529
      %v873 = vunpack.c.l.b16 %v543
      %v874 = vpack.c.b16 %v867, %v866
      %v875 = vpack.c.b16 %v869, %v868
      %v876 = vpack.c.b16 %v871, %v870
      %v877 = vpack.c.b16 %v873, %v872
      %878 = vrot.lane.b32.xlu0 %v874, 16
      %v879 = vpop.permute.xlu0 %878
      %880 = vrot.lane.b32.xlu0 %v875, 16
      %v881 = vpop.permute.xlu0 %880
      %882 = vrot.lane.b32.xlu0 %v876, 16
      %v883 = vpop.permute.xlu0 %882
      %884 = vrot.lane.b32.xlu0 %v877, 16
      %v885 = vpop.permute.xlu0 %884
      %v894 = vunpack.c.l.b16 %v544
      %v895 = vunpack.c.l.b16 %v545
      %v896 = vunpack.c.l.b16 %v546
      %v897 = vunpack.c.l.b16 %v547
      %v898 = vunpack.c.l.b16 %v548
      %v899 = vunpack.c.l.b16 %v549
      %v900 = vunpack.c.l.b16 %v550
      %v901 = vunpack.c.l.b16 %v551
      %v902 = vpack.c.b16 %v895, %v894
      %v903 = vpack.c.b16 %v897, %v896
      %v904 = vpack.c.b16 %v899, %v898
      %v905 = vpack.c.b16 %v901, %v900
      %906 = vrot.lane.b32.xlu0 %v902, 24
      %v907 = vpop.permute.xlu0 %906
      %908 = vrot.lane.b32.xlu0 %v903, 24
      %v909 = vpop.permute.xlu0 %908
      %910 = vrot.lane.b32.xlu0 %v904, 24
      %v911 = vpop.permute.xlu0 %910
      %912 = vrot.lane.b32.xlu0 %v905, 24
      %v913 = vpop.permute.xlu0 %912
      %v922 = vunpack.c.l.b16 %v552
      %v923 = vunpack.c.l.b16 %v553
      %v924 = vunpack.c.l.b16 %v554
      %v925 = vunpack.c.l.b16 %v555
      %v926 = vunpack.c.l.b16 %v556
      %v927 = vunpack.c.l.b16 %v557
      %v928 = vunpack.c.l.b16 %v558
      %v929 = vunpack.c.l.b16 %v559
      %v930 = vpack.c.b16 %v923, %v922
      %v931 = vpack.c.b16 %v925, %v924
      %v932 = vpack.c.b16 %v927, %v926
      %v933 = vpack.c.b16 %v929, %v928
      %934 = vrot.lane.b32.xlu0 %v930, 32
      %v935 = vpop.permute.xlu0 %934
      %936 = vrot.lane.b32.xlu0 %v931, 32
      %v937 = vpop.permute.xlu0 %936
      %938 = vrot.lane.b32.xlu0 %v932, 32
      %v939 = vpop.permute.xlu0 %938
      %940 = vrot.lane.b32.xlu0 %v933, 32
      %v941 = vpop.permute.xlu0 %940
      %v942 = vunpack.c.l.b16 %v581
      %v943 = vunpack.c.l.b16 %v595
      %v944 = vunpack.c.l.b16 %v609
      %v945 = vunpack.c.l.b16 %v623
      %v946 = vunpack.c.l.b16 %v637
      %v947 = vunpack.c.l.b16 %v651
      %v948 = vunpack.c.l.b16 %v665
      %v949 = vunpack.c.l.b16 %v679
      %v950 = vpack.c.b16 %v943, %v942
      %v951 = vpack.c.b16 %v945, %v944
      %v952 = vpack.c.b16 %v947, %v946
      %v953 = vpack.c.b16 %v949, %v948
      %954 = vrot.lane.b32.xlu0 %v950, 40
      %v955 = vpop.permute.xlu0 %954
      %956 = vrot.lane.b32.xlu0 %v951, 40
      %v957 = vpop.permute.xlu0 %956
      %958 = vrot.lane.b32.xlu0 %v952, 40
      %v959 = vpop.permute.xlu0 %958
      %960 = vrot.lane.b32.xlu0 %v953, 40
      %v961 = vpop.permute.xlu0 %960
      %v970 = vunpack.c.l.b16 %v681
      %v971 = vunpack.c.l.b16 %v682
      %v972 = vunpack.c.l.b16 %v683
      %v973 = vunpack.c.l.b16 %v684
      %v974 = vunpack.c.l.b16 %v685
      %v975 = vunpack.c.l.b16 %v686
      %v976 = vunpack.c.l.b16 %v687
      %v977 = vunpack.c.l.b16 %v688
      %v978 = vpack.c.b16 %v971, %v970
      %v979 = vpack.c.b16 %v973, %v972
      %v980 = vpack.c.b16 %v975, %v974
      %v981 = vpack.c.b16 %v977, %v976
      %982 = vrot.lane.b32.xlu0 %v978, 48
      %v983 = vpop.permute.xlu0 %982
      %984 = vrot.lane.b32.xlu0 %v979, 48
      %v985 = vpop.permute.xlu0 %984
      %986 = vrot.lane.b32.xlu0 %v980, 48
      %v987 = vpop.permute.xlu0 %986
      %988 = vrot.lane.b32.xlu0 %v981, 48
      %v989 = vpop.permute.xlu0 %988
      %v998 = vunpack.c.l.b16 %v690
      %v999 = vunpack.c.l.b16 %v691
      %v1000 = vunpack.c.l.b16 %v692
      %v1001 = vunpack.c.l.b16 %v693
      %v1002 = vunpack.c.l.b16 %v694
      %v1003 = vunpack.c.l.b16 %v695
      %v1004 = vunpack.c.l.b16 %v696
      %v1005 = vunpack.c.l.b16 %v697
      %v1006 = vpack.c.b16 %v999, %v998
      %v1007 = vpack.c.b16 %v1001, %v1000
      %v1008 = vpack.c.b16 %v1003, %v1002
      %v1009 = vpack.c.b16 %v1005, %v1004
      %1010 = vrot.lane.b32.xlu0 %v1006, 56
      %v1011 = vpop.permute.xlu0 %1010
      %1012 = vrot.lane.b32.xlu0 %v1007, 56
      %v1013 = vpop.permute.xlu0 %1012
      %1014 = vrot.lane.b32.xlu0 %v1008, 56
      %v1015 = vpop.permute.xlu0 %1014
      %1016 = vrot.lane.b32.xlu0 %v1009, 56
      %v1017 = vpop.permute.xlu0 %1016
      %v1018 = vunpack.c.l.b16 %v719
      %v1019 = vunpack.c.l.b16 %v733
      %v1020 = vunpack.c.l.b16 %v747
      %v1021 = vunpack.c.l.b16 %v761
      %v1022 = vunpack.c.l.b16 %v775
      %v1023 = vunpack.c.l.b16 %v789
      %v1024 = vunpack.c.l.b16 %v803
      %v1025 = vunpack.c.l.b16 %v817
      %v1026 = vpack.c.b16 %v1019, %v1018
      %v1027 = vpack.c.b16 %v1021, %v1020
      %v1028 = vpack.c.b16 %v1023, %v1022
      %v1029 = vpack.c.b16 %v1025, %v1024
      %1030 = vrot.lane.b32.xlu0 %v1026, 64
      %v1031 = vpop.permute.xlu0 %1030
      %1032 = vrot.lane.b32.xlu0 %v1027, 64
      %v1033 = vpop.permute.xlu0 %1032
      %1034 = vrot.lane.b32.xlu0 %v1028, 64
      %v1035 = vpop.permute.xlu0 %1034
      %1036 = vrot.lane.b32.xlu0 %v1029, 64
      %v1037 = vpop.permute.xlu0 %1036
      %vm1038 = vcmask 64512
      %v1041 = vsel %vm1038, %v834, %v859
      %v1044 = vsel %vm1038, %v835, %v861
      %v1047 = vsel %vm1038, %v836, %v863
      %v1050 = vsel %vm1038, %v837, %v865
      %vm1051 = vcmask 130048
      %v1053 = vsel %vm1051, %v1041, %v879
      %v1055 = vsel %vm1051, %v1044, %v881
      %v1057 = vsel %vm1051, %v1047, %v883
      %v1059 = vsel %vm1051, %v1050, %v885
      %vm1060 = vcmask 195584
      %v1062 = vsel %vm1060, %v1053, %v907
      %v1064 = vsel %vm1060, %v1055, %v909
      %v1066 = vsel %vm1060, %v1057, %v911
      %v1068 = vsel %vm1060, %v1059, %v913
      %vm1069 = vcmask 261120
      %v1071 = vsel %vm1069, %v1062, %v935
      %v1073 = vsel %vm1069, %v1064, %v937
      %v1075 = vsel %vm1069, %v1066, %v939
      %v1077 = vsel %vm1069, %v1068, %v941
      %vm1078 = vcmask 326656
      %v1080 = vsel %vm1078, %v1071, %v955
      %v1082 = vsel %vm1078, %v1073, %v957
      %v1084 = vsel %vm1078, %v1075, %v959
      %v1086 = vsel %vm1078, %v1077, %v961
      %vm1087 = vcmask 392192
      %v1089 = vsel %vm1087, %v1080, %v983
      %v1091 = vsel %vm1087, %v1082, %v985
      %v1093 = vsel %vm1087, %v1084, %v987
      %v1095 = vsel %vm1087, %v1086, %v989
      %vm1096 = vcmask 457728
      %v1098 = vsel %vm1096, %v1089, %v1011
      %v1100 = vsel %vm1096, %v1091, %v1013
      %v1102 = vsel %vm1096, %v1093, %v1015
      %v1104 = vsel %vm1096, %v1095, %v1017
      %vm1105 = vcmask 523264
      %v1107 = vsel %vm1105, %v1098, %v1031
      %v1109 = vsel %vm1105, %v1100, %v1033
      %v1111 = vsel %vm1105, %v1102, %v1035
      %v1113 = vsel %vm1105, %v1104, %v1037
      %v1114 = vld [vmem:[%s389] sm:$0xf]
      %v1115 = vld [vmem:[%s389 + $0x4] sm:$0xf]
      %v1116 = vld [vmem:[%s389 + $0x8] sm:$0xf]
      %v1117 = vld [vmem:[%s389 + $0xc] sm:$0xf]
      %v1118 = vld [vmem:[%s389 + $0x10] sm:$0xf]
      %v1119 = vld [vmem:[%s389 + $0x14] sm:$0xf]
      %v1120 = vld [vmem:[%s389 + $0x18] sm:$0xf]
      %v1121 = vld [vmem:[%s389 + $0x1c] sm:$0xf]
      %v1122 = vld [vmem:[%s389 + $0x20] sm:$0xf]
      %v1132 = vunpack.c.l.b16 %v1114
      %v1133 = vunpack.c.l.b16 %v1115
      %v1134 = vunpack.c.l.b16 %v1116
      %v1135 = vunpack.c.l.b16 %v1117
      %v1136 = vunpack.c.l.b16 %v1118
      %v1137 = vunpack.c.l.b16 %v1119
      %v1138 = vunpack.c.l.b16 %v1120
      %v1139 = vunpack.c.l.b16 %v1121
      %v1140 = vunpack.c.l.b16 %v1122
      %v1141 = vpack.c.b16 %v1133, %v1132
      %v1142 = vpack.c.b16 %v1135, %v1134
      %v1143 = vpack.c.b16 %v1137, %v1136
      %v1144 = vpack.c.b16 %v1139, %v1138
      %v1145 = vpack.c.b16 %v1140, %v1140
      %vm1150 = vcmask 588800
      %v1151 = vsel %vm1150, %v1107, 0
      %v1153 = vsel %vm1150, %v1109, 0
      %v1155 = vsel %vm1150, %v1111, 0
      %v1157 = vsel %vm1150, %v1113, 0
      %vm1159 = vcmask 1043456
      %v1161 = vsel %vm1159, %v1145, 0
      %1163 = vmatprep.subr.bf16.mxu0 0
      %1164 = vmatpush1.bf16.msra.mxu0 %v1141
      %1165 = vmatprep.subr.bf16.mxu0 0
      %1166 = vmatpush1.bf16.msra.mxu0 %v1142
      %1167 = vmatprep.subr.bf16.mxu0 0
      %1168 = vmatpush1.bf16.msra.mxu0 %v1143
      %1169 = vmatprep.subr.bf16.mxu0 0
      %1170 = vmatpush1.bf16.msra.mxu0 %v1144
      %1171 = vmatprep.subr.bf16.mxu0 0
      %1172 = vmatpush1.bf16.msra.mxu0 %v1161
      %1173 = vmatprep.subr.bf16.mxu0 0
      %1174 = vmatpush1.bf16.msra.mxu0 0
      %1175 = vmatprep.subr.bf16.mxu0 0
      %1176 = vmatpush1.bf16.msra.mxu0 0
      %1177 = vmatprep.subr.bf16.mxu0 0
      %1178 = vmatpush1.bf16.msra.mxu0 0
      %1179 = vmatprep.subr.bf16.mxu0 0
      %1180 = vmatpush1.bf16.msra.mxu0 0
      %1181 = vmatprep.subr.bf16.mxu0 0
      %1182 = vmatpush1.bf16.msra.mxu0 0
      %1183 = vmatprep.subr.bf16.mxu0 0
      %1184 = vmatpush1.bf16.msra.mxu0 0
      %1185 = vmatprep.subr.bf16.mxu0 0
      %1186 = vmatpush1.bf16.msra.mxu0 0
      %1187 = vmatprep.subr.bf16.mxu0 0
      %1188 = vmatpush1.bf16.msra.mxu0 0
      %1189 = vmatprep.subr.bf16.mxu0 0
      %1190 = vmatpush1.bf16.msra.mxu0 0
      %1191 = vmatprep.subr.bf16.mxu0 0
      %1192 = vmatpush1.bf16.msra.mxu0 0
      %1193 = vmatprep.subr.bf16.mxu0 0
      %1194 = vmatpush1.bf16.msra.mxu0 0
      %1195 = vmatprep.mubr.bf16.mxu0 0
      %1196 = vmatmul.mubr.bf16.gmra.mrb[0].mxu0 %v1151
      %v1197 = vpop.f32.mrb[0].mxu0
      %v1198 = vadd.f32 0.0, %v1197
      %v1199 = vpop.f32.mrb[0].mxu0
      %v1200 = vpop.f32.mrb[0].mxu0
      %v1201 = vadd.f32 0.0, %v1200
      %v1202 = vpop.f32.mrb[0].mxu0
      %1203 = vmatprep.mubr.bf16.mxu0 0
      %1204 = vmatmul.mubr.bf16.gmra.mrb[0].mxu0 %v1153
      %v1205 = vpop.f32.mrb[0].mxu0
      %v1206 = vadd.f32 0.0, %v1205
      %v1207 = vpop.f32.mrb[0].mxu0
      %v1208 = vpop.f32.mrb[0].mxu0
      %v1209 = vadd.f32 0.0, %v1208
      %v1210 = vpop.f32.mrb[0].mxu0
      %1211 = vmatprep.mubr.bf16.mxu0 0
      %1212 = vmatmul.mubr.bf16.gmra.mrb[0].mxu0 %v1155
      %v1213 = vpop.f32.mrb[0].mxu0
      %v1214 = vadd.f32 0.0, %v1213
      %v1215 = vpop.f32.mrb[0].mxu0
      %v1216 = vpop.f32.mrb[0].mxu0
      %v1217 = vadd.f32 0.0, %v1216
      %v1218 = vpop.f32.mrb[0].mxu0
      %1219 = vmatprep.mubr.bf16.mxu0 0
      %1220 = vmatmul.mubr.bf16.gmra.mrb[0].mxu0 %v1157
      %v1221 = vpop.f32.mrb[0].mxu0
      %v1222 = vadd.f32 0.0, %v1221
      %v1223 = vpop.f32.mrb[0].mxu0
      %v1224 = vpop.f32.mrb[0].mxu0
      %v1225 = vadd.f32 0.0, %v1224
      %v1226 = vpop.f32.mrb[0].mxu0
      %1227 = vdwg.mxu0
      %v1228 = vld [vmem:[%s392] sm:$0x1]
      %v1230 = vlaneseq
      %v1231 = vshrl.u32 %v1230, 7
      %v1232 = vsub.s32 0, %v1231
      %v1233 = vrot.slane %v1228, %v1232
      %v1235 = vmul.f32 %v1198, %v1233
      %v1236 = vmul.f32 %v1201, %v1233
      %v1237 = vmul.f32 %v1206, %v1233
      %v1238 = vmul.f32 %v1209, %v1233
      %v1239 = vmul.f32 %v1214, %v1233
      %v1240 = vmul.f32 %v1217, %v1233
      %v1241 = vmul.f32 %v1222, %v1233
      %v1242 = vmul.f32 %v1225, %v1233
      %v1243 = vld [vmem:[%s395] sm:$0x1]
      %v1245 = vlaneseq
      %v1246 = vshrl.u32 %v1245, 7
      %v1247 = vsub.s32 0, %v1246
      %v1248 = vrot.slane %v1243, %v1247
      %v1250 = vadd.f32 %v1235, %v1248
      %v1251 = vadd.f32 %v1236, %v1248
      %v1252 = vadd.f32 %v1237, %v1248
      %v1253 = vadd.f32 %v1238, %v1248
      %v1254 = vadd.f32 %v1239, %v1248
      %v1255 = vadd.f32 %v1240, %v1248
      %v1256 = vadd.f32 %v1241, %v1248
      %v1257 = vadd.f32 %v1242, %v1248
      %v1258 = vmax.f32 %v1250, 0.0
      %v1259 = vmax.f32 %v1251, 0.0
      %v1260 = vmax.f32 %v1252, 0.0
      %v1261 = vmax.f32 %v1253, 0.0
      %v1262 = vmax.f32 %v1254, 0.0
      %v1263 = vmax.f32 %v1255, 0.0
      %v1264 = vmax.f32 %v1256, 0.0
      %v1265 = vmax.f32 %v1257, 0.0
      %v1266 = vpack.c.bf16 %v1259, %v1258
      %v1267 = vpack.c.bf16 %v1261, %v1260
      %v1268 = vpack.c.bf16 %v1263, %v1262
      %v1269 = vpack.c.bf16 %v1265, %v1264
      %1270 = vst [vmem:[%s403] sm:$0xf] 0
      %1271 = vst [vmem:[%s403 + $0x4] sm:$0x1] 0
      %1272 = vst [vmem:[%s403 + $0x8] sm:$0xf] 0
      %1273 = vst [vmem:[%s403 + $0xc] sm:$0x1] 0
      %1274 = vst [vmem:[%s403 + $0x10] sm:$0xf] 0
      %1275 = vst [vmem:[%s403 + $0x14] sm:$0x1] 0
      %1276 = vst [vmem:[%s403 + $0x18] sm:$0xf] 0
      %1277 = vst [vmem:[%s403 + $0x1c] sm:$0x1] 0
      %1278 = vst [vmem:[%s403 + $0x20] sm:$0xf] 0
      %1279 = vst [vmem:[%s403 + $0x24] sm:$0x1] 0
      %1280 = vst [vmem:[%s403 + $0x28] sm:$0xf] 0
      %1281 = vst [vmem:[%s403 + $0x2c] sm:$0x1] 0
      %1282 = vst [vmem:[%s403 + $0x30] sm:$0xf] 0
      %1283 = vst [vmem:[%s403 + $0x34] sm:$0x1] 0
      %1284 = vst [vmem:[%s403 + $0x38] sm:$0xf] 0
      %1285 = vst [vmem:[%s403 + $0x3c] sm:$0x1] 0
      %1286 = vst [vmem:[%s403 + $0x40] sm:$0xf] 0
      %1287 = vst [vmem:[%s403 + $0x44] sm:$0x1] 0
      %1288 = vst [vmem:[%s403 + $0x48] sm:$0xf] 0
      %1289 = vst [vmem:[%s403 + $0x4c] sm:$0x1] 0
      %v1294 = vunpack.c.l.b16 %v1266
      %v1295 = vunpack.c.h.b16 %v1266
      %v1296 = vunpack.c.l.b16 %v1267
      %v1297 = vunpack.c.h.b16 %v1267
      %v1298 = vunpack.c.l.b16 %v1268
      %v1299 = vunpack.c.h.b16 %v1268
      %v1300 = vunpack.c.l.b16 %v1269
      %v1301 = vunpack.c.h.b16 %v1269
      %v1302 = vpack.c.b16 %v1294, %v1294
      %v1303 = vpack.c.b16 %v1295, %v1295
      %v1304 = vpack.c.b16 %v1296, %v1296
      %v1305 = vpack.c.b16 %v1297, %v1297
      %v1306 = vpack.c.b16 %v1298, %v1298
      %v1307 = vpack.c.b16 %v1299, %v1299
      %v1308 = vpack.c.b16 %v1300, %v1300
      %v1309 = vpack.c.b16 %v1301, %v1301
      %v1311 = vshrl.u32 %v1302, 16
      %v1313 = vrot.slane %v1311, 7
      %v1314 = vshll.u32 %v1302, 16
      %v1316 = vor.u32 %v1313, %v1314
      %v1317 = vrot.slane %v1313, 4
      %v1319 = vshrl.u32 %v1303, 16
      %v1321 = vrot.slane %v1319, 7
      %v1322 = vshll.u32 %v1303, 16
      %v1324 = vor.u32 %v1321, %v1322
      %v1325 = vrot.slane %v1321, 4
      %v1327 = vshrl.u32 %v1304, 16
      %v1329 = vrot.slane %v1327, 7
      %v1330 = vshll.u32 %v1304, 16
      %v1332 = vor.u32 %v1329, %v1330
      %v1333 = vrot.slane %v1329, 4
      %v1335 = vshrl.u32 %v1305, 16
      %v1337 = vrot.slane %v1335, 7
      %v1338 = vshll.u32 %v1305, 16
      %v1340 = vor.u32 %v1337, %v1338
      %v1341 = vrot.slane %v1337, 4
      %v1343 = vshrl.u32 %v1306, 16
      %v1345 = vrot.slane %v1343, 7
      %v1346 = vshll.u32 %v1306, 16
      %v1348 = vor.u32 %v1345, %v1346
      %v1349 = vrot.slane %v1345, 4
      %v1351 = vshrl.u32 %v1307, 16
      %v1353 = vrot.slane %v1351, 7
      %v1354 = vshll.u32 %v1307, 16
      %v1356 = vor.u32 %v1353, %v1354
      %v1357 = vrot.slane %v1353, 4
      %v1359 = vshrl.u32 %v1308, 16
      %v1361 = vrot.slane %v1359, 7
      %v1362 = vshll.u32 %v1308, 16
      %v1364 = vor.u32 %v1361, %v1362
      %v1365 = vrot.slane %v1361, 4
      %v1367 = vshrl.u32 %v1309, 16
      %v1369 = vrot.slane %v1367, 7
      %v1370 = vshll.u32 %v1309, 16
      %v1372 = vor.u32 %v1369, %v1370
      %v1373 = vrot.slane %v1369, 4
      %s1390 = scalar_lea.vmem %s403, 8
      %vm1391 = vcmask 1043456
      %vm1392 = vsmask.f32 7938
      %vm1393 = vmand %vm1391, %vm1392
      %v1394 = vld [vmem:[%s1390] sm:$0xf]
      %v1395 = vsel %vm1393, %v1316, %v1394
      %1396 = vst [vmem:[%s1390] sm:$0xf] %v1395
      %vm1397 = vcmask 1040384
      %vm1398 = vsmask.f32 256
      %vm1399 = vmand %vm1397, %vm1398
      %v1400 = vld [vmem:[%s1390 + $0x4] sm:$0x1]
      %v1401 = vsel %vm1399, %v1317, %v1400
      %1402 = vst [vmem:[%s1390 + $0x4] sm:$0x1] %v1401
      %v1403 = vld [vmem:[%s1390 + $0x8] sm:$0xf]
      %v1404 = vsel %vm1393, %v1324, %v1403
      %1405 = vst [vmem:[%s1390 + $0x8] sm:$0xf] %v1404
      %v1406 = vld [vmem:[%s1390 + $0xc] sm:$0x1]
      %v1407 = vsel %vm1399, %v1325, %v1406
      %1408 = vst [vmem:[%s1390 + $0xc] sm:$0x1] %v1407
      %v1409 = vld [vmem:[%s1390 + $0x10] sm:$0xf]
      %v1410 = vsel %vm1393, %v1332, %v1409
      %1411 = vst [vmem:[%s1390 + $0x10] sm:$0xf] %v1410
      %v1412 = vld [vmem:[%s1390 + $0x14] sm:$0x1]
      %v1413 = vsel %vm1399, %v1333, %v1412
      %1414 = vst [vmem:[%s1390 + $0x14] sm:$0x1] %v1413
      %v1415 = vld [vmem:[%s1390 + $0x18] sm:$0xf]
      %v1416 = vsel %vm1393, %v1340, %v1415
      %1417 = vst [vmem:[%s1390 + $0x18] sm:$0xf] %v1416
      %v1418 = vld [vmem:[%s1390 + $0x1c] sm:$0x1]
      %v1419 = vsel %vm1399, %v1341, %v1418
      %1420 = vst [vmem:[%s1390 + $0x1c] sm:$0x1] %v1419
      %v1421 = vld [vmem:[%s1390 + $0x20] sm:$0xf]
      %v1422 = vsel %vm1393, %v1348, %v1421
      %1423 = vst [vmem:[%s1390 + $0x20] sm:$0xf] %v1422
      %v1424 = vld [vmem:[%s1390 + $0x24] sm:$0x1]
      %v1425 = vsel %vm1399, %v1349, %v1424
      %1426 = vst [vmem:[%s1390 + $0x24] sm:$0x1] %v1425
      %v1427 = vld [vmem:[%s1390 + $0x28] sm:$0xf]
      %v1428 = vsel %vm1393, %v1356, %v1427
      %1429 = vst [vmem:[%s1390 + $0x28] sm:$0xf] %v1428
      %v1430 = vld [vmem:[%s1390 + $0x2c] sm:$0x1]
      %v1431 = vsel %vm1399, %v1357, %v1430
      %1432 = vst [vmem:[%s1390 + $0x2c] sm:$0x1] %v1431
      %v1433 = vld [vmem:[%s1390 + $0x30] sm:$0xf]
      %v1434 = vsel %vm1393, %v1364, %v1433
      %1435 = vst [vmem:[%s1390 + $0x30] sm:$0xf] %v1434
      %v1436 = vld [vmem:[%s1390 + $0x34] sm:$0x1]
      %v1437 = vsel %vm1399, %v1365, %v1436
      %1438 = vst [vmem:[%s1390 + $0x34] sm:$0x1] %v1437
      %v1439 = vld [vmem:[%s1390 + $0x38] sm:$0xf]
      %v1440 = vsel %vm1393, %v1372, %v1439
      %1441 = vst [vmem:[%s1390 + $0x38] sm:$0xf] %v1440
      %v1442 = vld [vmem:[%s1390 + $0x3c] sm:$0x1]
      %v1443 = vsel %vm1399, %v1373, %v1442
      %1444 = vst [vmem:[%s1390 + $0x3c] sm:$0x1] %v1443
      %p1445 = scmp.lt.s32.totalorder %s23, 1
      %s1446 = scalar_select %p1445, %s23, 1
      %p1447 = scmp.lt.s32.totalorder %s22, 0
      %s1448 = scalar_select %p1447, %s22, 0
      %s1449 = smul.addr %s1446, 20
      %s1450 = sadd.s32 %s1448, %s1449
      %s1451 = smul.addr %s1450, 4
      %s1452 = scalar_lea.vmem %s7, %s1451
      // Predicated region
      $region49: #{residual_block_forward.2} parent=47 // pred_check
        %p1453 = pneg %p232
      $region50: #{residual_block_forward.2} parent=47 // pred_check_branch
        %1455 = sbr.rel (%p1453) target = $region52
      $region51: #{residual_block_forward.2} parent=47 // pred_region
        _
      $region52: #{residual_block_forward.2} parent=47 // pred_fallthru
        _
    $region48: #{residual_block_forward.2} parent=5 // pred_fallthru
      _
    %p1456 = scmp.le.s32.totalorder 2, %s13
    // Predicated region
    $region53: #{residual_block_forward.2} parent=5 // pred_check
      %p1457 = pneg %p1456
    $region54: #{residual_block_forward.2} parent=5 // pred_check_branch
      %1459 = sbr.rel (%p1457) target = $region56
    $region55: #{residual_block_forward.2} parent=5 // pred_region
      %s1460 = ssub.s32 %s13, 2
      // Predicated region
      $region57: #{residual_block_forward.2} parent=55 // pred_check
        %p1461 = pneg %p238
      $region58: #{residual_block_forward.2} parent=55 // pred_check_branch
        %1463 = sbr.rel (%p1461) target = $region60
      $region59: #{residual_block_forward.2} parent=55 // pred_region
        %p1464 = scmp.lt.s32.totalorder %s25, 1
        %s1465 = scalar_select %p1464, %s25, 1
        %p1466 = scmp.lt.s32.totalorder %s24, 0
        %s1467 = scalar_select %p1466, %s24, 0
        %s1468 = smul.addr %s1465, 20
        %s1469 = sadd.s32 %s1467, %s1468
        %s1470 = smul.addr %s1469, 4
        %s1471 = scalar_lea.vmem %s7, %s1470
      $region60: #{residual_block_forward.2} parent=55 // pred_fallthru
        _
    $region56: #{residual_block_forward.2} parent=5 // pred_fallthru
      _
  $region6: #{residual_block_forward.2} parent=0 // loop_footer
    %s17 = sadd.s32 1, %s13
  $region7: #{residual_block_forward.2} parent=0 // loop_footer_branch
    %12 = sbr.rel target = $region3
  $region8: #{residual_block_forward.2} parent=0 // loop_exit
    _

// kernel: residual_block_forward.3
$region0: #{residual_block_forward.3}
  #allocation0 [shape = 'u32[]', space=smem, size = 0x4, offset = 0x4, fixed_abs, tag = 'smem constant byte address 0x4 - core index']
  #allocation1 [shape = 'u32[144,128]{1,0:T(1,128)}', space=vmem, size = 0x12000, scoped, tag = 'internal scratch']
  %s0 = inlined_call_operand.vmem [shape: bf16[2,10,10,128], index: 0, kind: input, shape index: {}]
  %s1 = inlined_call_operand.vmem [shape: bf16[2,9,9,8], index: 1, kind: input, shape index: {}]
  %s2 = inlined_call_operand.vmem [shape: bf16[1152,128], index: 2, kind: input, shape index: {}]
  %s3 = inlined_call_operand.vmem [shape: bf16[8,128], index: 3, kind: input, shape index: {}]
  %s4 = inlined_call_operand.vmem [shape: f32[1,128], index: 4, kind: input, shape index: {}]
  %s5 = inlined_call_operand.vmem [shape: f32[1,128], index: 5, kind: input, shape index: {}]
  %s6 = inlined_call_operand.vmem [shape: f32[1,128], index: 6, kind: input, shape index: {}]
  %s7 = inlined_call_operand.vmem [shape: f32[1,128], index: 7, kind: input, shape index: {}]
  %s8 = inlined_call_operand.hbm [shape: bf16[2,8,8,128], index: 8, kind: output, shape index: {}]
  %s9 = sld [smem:[#allocation0]]
  $region65: #{residual_block_forward.3} parent=0
    _
  %s11 = ssub.s32 1, %s9
  %s12 = scalar_select 0, %s11, %s9
  $region1: #{residual_block_forward.3} parent=0
    #allocation2 [shape = 'u8[32768]{0}', space=vmem, size = 0x8000, scoped, tag = 'output window, operand 0']
    #allocation3 [shape = 's32[2]{0}', space=sflag, size = 0x8, scoped, tag = 'scoped memory for residual_block_forward.3']
    %13 = vsyncpa [#allocation3], 0
    %s14 = scalar_lea.sflag [#allocation3], 1
    %15 = vsyncpa %s14, 0
    loop: start=0, step=1, limit=4
    $region2: #{residual_block_forward.3} parent=1 // loop_pre_header
      _
    $region3: #{residual_block_forward.3} parent=1 // loop_header
      %s17 = sphi 0, %s21
      %p18 = scmp.ge.s32.totalorder %s17, 4
      %s24 = sphi 0, %s36
      %s25 = sphi 0, %s32
      %s26 = sphi 0, %s24
      %s27 = sphi 0, %s25
      %s28 = sphi 0, %s26
      %s29 = sphi 0, %s27
      %s39 = sphi 0, %s41
      %s42 = sphi 0, %s39
      %s43 = sphi 0, %s42
      %s59 = sphi 0, %s43
      %s65 = sphi 0, %s67
      %s68 = sphi 0, %s65
      %s69 = sphi 0, %s68
      %s85 = sphi 0, %s69
      %s91 = sphi 0, %s93
      %s94 = sphi 0, %s91
      %s95 = sphi 0, %s94
      %s111 = sphi 0, %s95
      %s117 = sphi 0, %s119
      %s120 = sphi 0, %s117
      %s121 = sphi 0, %s120
      %s137 = sphi 0, %s121
      %s143 = sphi 0, %s145
      %s146 = sphi 0, %s143
      %s147 = sphi 0, %s146
      %s163 = sphi 0, %s147
      %s169 = sphi 0, %s171
      %s172 = sphi 0, %s169
      %s173 = sphi 0, %s172
      %s189 = sphi 0, %s173
      %s195 = sphi 0, %s197
      %s198 = sphi 0, %s195
      %s199 = sphi 0, %s198
      %s215 = sphi 0, %s199
      %s221 = sphi 0, %s223
      %s224 = sphi 0, %s221
      %s225 = sphi 0, %s224
      %s241 = sphi 0, %s225
      %s249 = sphi 0, %s251
      %s252 = sphi 0, %s249
      %s253 = sphi 0, %s252
      %s269 = sphi 0, %s253
    $region4: #{residual_block_forward.3} parent=1 // loop_header_branch
      %20 = sbr.rel (%p18) target = $region8
    $region5: #{residual_block_forward.3} parent=1 // loop_body
      %s22 = ssub.s32 %s17, 1
      %s23 = ssub.s32 %s17, 2
      %s30 = sadd.s32 1, %s25
      %p31 = scmp.ge.s32.totalorder %s30, 2
      %s32 = scalar_select %p31, 0, %s30
      %s33 = sadd.s32 1, %s24
      %s34 = scalar_select %p31, %s33, %s24
      %p35 = scmp.ge.s32.totalorder %s34, 1
      %s36 = scalar_select %p35, 0, %s34
      %s37 = ssub.s32 %s25, %s32
      %p38 = scmp.eq.s32.totalorder %s37, 0
      %s40 = sadd.s32 %s39, 1
      %s41 = scalar_select %p38, %s39, %s40
      %p44 = pneg %p38
      %p45 = scmp.eq.s32.totalorder %s17, 1
      %p46 = por %p44, %p45
      %p47 = scmp.ne.s32.totalorder %s39, %s42
      %p48 = scmp.eq.s32.totalorder %s17, 0
      %p49 = por %p47, %p48
      %p50 = scmp.ne.s32.totalorder %s39, %s42
      %p51 = scmp.eq.s32.totalorder %s22, 1
      %p52 = por %p50, %p51
      %p53 = scmp.ne.s32.totalorder %s42, %s43
      %p54 = scmp.eq.s32.totalorder %s22, 0
      %p55 = por %p53, %p54
      %p56 = scmp.ne.s32.totalorder %s42, %s43
      %p57 = scmp.eq.s32.totalorder %s23, 1
      %p58 = por %p56, %p57
      %p60 = scmp.ne.s32.totalorder %s43, %s59
      %p61 = scmp.eq.s32.totalorder %s23, 0
      %p62 = por %p60, %p61
      %s63 = ssub.s32 %s25, %s32
      %p64 = scmp.eq.s32.totalorder %s63, 0
      %s66 = sadd.s32 %s65, 1
      %s67 = scalar_select %p64, %s65, %s66
      %p70 = pneg %p64
      %p71 = scmp.eq.s32.totalorder %s17, 1
      %p72 = por %p70, %p71
      %p73 = scmp.ne.s32.totalorder %s65, %s68
      %p74 = scmp.eq.s32.totalorder %s17, 0
      %p75 = por %p73, %p74
      %p76 = scmp.ne.s32.totalorder %s65, %s68
      %p77 = scmp.eq.s32.totalorder %s22, 1
      %p78 = por %p76, %p77
      %p79 = scmp.ne.s32.totalorder %s68, %s69
      %p80 = scmp.eq.s32.totalorder %s22, 0
      %p81 = por %p79, %p80
      %p82 = scmp.ne.s32.totalorder %s68, %s69
      %p83 = scmp.eq.s32.totalorder %s23, 1
      %p84 = por %p82, %p83
      %p86 = scmp.ne.s32.totalorder %s69, %s85
      %p87 = scmp.eq.s32.totalorder %s23, 0
      %p88 = por %p86, %p87
      %s89 = ssub.s32 %s24, %s36
      %p90 = scmp.eq.s32.totalorder %s89, 0
      %s92 = sadd.s32 %s91, 1
      %s93 = scalar_select %p90, %s91, %s92
      %p96 = pneg %p90
      %p97 = scmp.eq.s32.totalorder %s17, 1
      %p98 = por %p96, %p97
      %p99 = scmp.ne.s32.totalorder %s91, %s94
      %p100 = scmp.eq.s32.totalorder %s17, 0
      %p101 = por %p99, %p100
      %p102 = scmp.ne.s32.totalorder %s91, %s94
      %p103 = scmp.eq.s32.totalorder %s22, 1
      %p104 = por %p102, %p103
      %p105 = scmp.ne.s32.totalorder %s94, %s95
      %p106 = scmp.eq.s32.totalorder %s22, 0
      %p107 = por %p105, %p106
      %p108 = scmp.ne.s32.totalorder %s94, %s95
      %p109 = scmp.eq.s32.totalorder %s23, 1
      %p110 = por %p108, %p109
      %p112 = scmp.ne.s32.totalorder %s95, %s111
      %p113 = scmp.eq.s32.totalorder %s23, 0
      %p114 = por %p112, %p113
      %s115 = ssub.s32 %s24, %s36
      %p116 = scmp.eq.s32.totalorder %s115, 0
      %s118 = sadd.s32 %s117, 1
      %s119 = scalar_select %p116, %s117, %s118
      %p122 = pneg %p116
      %p123 = scmp.eq.s32.totalorder %s17, 1
      %p124 = por %p122, %p123
      %p125 = scmp.ne.s32.totalorder %s117, %s120
      %p126 = scmp.eq.s32.totalorder %s17, 0
      %p127 = por %p125, %p126
      %p128 = scmp.ne.s32.totalorder %s117, %s120
      %p129 = scmp.eq.s32.totalorder %s22, 1
      %p130 = por %p128, %p129
      %p131 = scmp.ne.s32.totalorder %s120, %s121
      %p132 = scmp.eq.s32.totalorder %s22, 0
      %p133 = por %p131, %p132
      %p134 = scmp.ne.s32.totalorder %s120, %s121
      %p135 = scmp.eq.s32.totalorder %s23, 1
      %p136 = por %p134, %p135
      %p138 = scmp.ne.s32.totalorder %s121, %s137
      %p139 = scmp.eq.s32.totalorder %s23, 0
      %p140 = por %p138, %p139
      %s141 = ssub.s32 %s24, %s36
      %p142 = scmp.eq.s32.totalorder %s141, 0
      %s144 = sadd.s32 %s143, 1
      %s145 = scalar_select %p142, %s143, %s144
      %p148 = pneg %p142
      %p149 = scmp.eq.s32.totalorder %s17, 1
      %p150 = por %p148, %p149
      %p151 = scmp.ne.s32.totalorder %s143, %s146
      %p152 = scmp.eq.s32.totalorder %s17, 0
      %p153 = por %p151, %p152
      %p154 = scmp.ne.s32.totalorder %s143, %s146
      %p155 = scmp.eq.s32.totalorder %s22, 1
      %p156 = por %p154, %p155
      %p157 = scmp.ne.s32.totalorder %s146, %s147
      %p158 = scmp.eq.s32.totalorder %s22, 0
      %p159 = por %p157, %p158
      %p160 = scmp.ne.s32.totalorder %s146, %s147
      %p161 = scmp.eq.s32.totalorder %s23, 1
      %p162 = por %p160, %p161
      %p164 = scmp.ne.s32.totalorder %s147, %s163
      %p165 = scmp.eq.s32.totalorder %s23, 0
      %p166 = por %p164, %p165
      %s167 = ssub.s32 %s24, %s36
      %p168 = scmp.eq.s32.totalorder %s167, 0
      %s170 = sadd.s32 %s169, 1
      %s171 = scalar_select %p168, %s169, %s170
      %p174 = pneg %p168
      %p175 = scmp.eq.s32.totalorder %s17, 1
      %p176 = por %p174, %p175
      %p177 = scmp.ne.s32.totalorder %s169, %s172
      %p178 = scmp.eq.s32.totalorder %s17, 0
      %p179 = por %p177, %p178
      %p180 = scmp.ne.s32.totalorder %s169, %s172
      %p181 = scmp.eq.s32.totalorder %s22, 1
      %p182 = por %p180, %p181
      %p183 = scmp.ne.s32.totalorder %s172, %s173
      %p184 = scmp.eq.s32.totalorder %s22, 0
      %p185 = por %p183, %p184
      %p186 = scmp.ne.s32.totalorder %s172, %s173
      %p187 = scmp.eq.s32.totalorder %s23, 1
      %p188 = por %p186, %p187
      %p190 = scmp.ne.s32.totalorder %s173, %s189
      %p191 = scmp.eq.s32.totalorder %s23, 0
      %p192 = por %p190, %p191
      %s193 = ssub.s32 %s24, %s36
      %p194 = scmp.eq.s32.totalorder %s193, 0
      %s196 = sadd.s32 %s195, 1
      %s197 = scalar_select %p194, %s195, %s196
      %p200 = pneg %p194
      %p201 = scmp.eq.s32.totalorder %s17, 1
      %p202 = por %p200, %p201
      %p203 = scmp.ne.s32.totalorder %s195, %s198
      %p204 = scmp.eq.s32.totalorder %s17, 0
      %p205 = por %p203, %p204
      %p206 = scmp.ne.s32.totalorder %s195, %s198
      %p207 = scmp.eq.s32.totalorder %s22, 1
      %p208 = por %p206, %p207
      %p209 = scmp.ne.s32.totalorder %s198, %s199
      %p210 = scmp.eq.s32.totalorder %s22, 0
      %p211 = por %p209, %p210
      %p212 = scmp.ne.s32.totalorder %s198, %s199
      %p213 = scmp.eq.s32.totalorder %s23, 1
      %p214 = por %p212, %p213
      %p216 = scmp.ne.s32.totalorder %s199, %s215
      %p217 = scmp.eq.s32.totalorder %s23, 0
      %p218 = por %p216, %p217
      %s219 = ssub.s32 %s24, %s36
      %p220 = scmp.eq.s32.totalorder %s219, 0
      %s222 = sadd.s32 %s221, 1
      %s223 = scalar_select %p220, %s221, %s222
      %p226 = pneg %p220
      %p227 = scmp.eq.s32.totalorder %s17, 1
      %p228 = por %p226, %p227
      %p229 = scmp.ne.s32.totalorder %s221, %s224
      %p230 = scmp.eq.s32.totalorder %s17, 0
      %p231 = por %p229, %p230
      %p232 = scmp.ne.s32.totalorder %s221, %s224
      %p233 = scmp.eq.s32.totalorder %s22, 1
      %p234 = por %p232, %p233
      %p235 = scmp.ne.s32.totalorder %s224, %s225
      %p236 = scmp.eq.s32.totalorder %s22, 0
      %p237 = por %p235, %p236
      %p238 = scmp.ne.s32.totalorder %s224, %s225
      %p239 = scmp.eq.s32.totalorder %s23, 1
      %p240 = por %p238, %p239
      %p242 = scmp.ne.s32.totalorder %s225, %s241
      %p243 = scmp.eq.s32.totalorder %s23, 0
      %p244 = por %p242, %p243
      %s245 = ssub.s32 %s25, %s32
      %s246 = ssub.s32 %s24, %s36
      %s247 = sor.u32 %s245, %s246
      %p248 = scmp.eq.s32.totalorder %s247, 0
      %s250 = sadd.s32 %s249, 1
      %s251 = scalar_select %p248, %s249, %s250
      %p254 = pneg %p248
      %p255 = scmp.eq.s32.totalorder %s17, 1
      %p256 = por %p254, %p255
      %p257 = scmp.ne.s32.totalorder %s249, %s252
      %p258 = scmp.eq.s32.totalorder %s17, 0
      %p259 = por %p257, %p258
      %p260 = scmp.ne.s32.totalorder %s249, %s252
      %p261 = scmp.eq.s32.totalorder %s22, 1
      %p262 = por %p260, %p261
      %p263 = scmp.ne.s32.totalorder %s252, %s253
      %p264 = scmp.eq.s32.totalorder %s22, 0
      %p265 = por %p263, %p264
      %p266 = scmp.ne.s32.totalorder %s252, %s253
      %p267 = scmp.eq.s32.totalorder %s23, 1
      %p268 = por %p266, %p267
      %p270 = scmp.ne.s32.totalorder %s253, %s269
      %p271 = scmp.eq.s32.totalorder %s23, 0
      %p272 = por %p270, %p271
      %p273 = scmp.le.s32.totalorder 1, %s17
      %p274 = scmp.lt.s32.totalorder %s17, 3
      %p275 = pnand %p273, %p274
      %p276 = pneg %p275
      // Predicated region
      $region9: #{residual_block_forward.3} parent=5 // pred_check
        _
      $region10: #{residual_block_forward.3} parent=5 // pred_check_branch
        %278 = sbr.rel (%p275) target = $region12
      $region11: #{residual_block_forward.3} parent=5 // pred_region
        %s279 = ssub.s32 %s17, 1
        // Predicated region
        $region13: #{residual_block_forward.3} parent=11 // pred_check
          %p280 = pneg %p107
        $region14: #{residual_block_forward.3} parent=11 // pred_check_branch
          %282 = sbr.rel (%p280) target = $region16
        $region15: #{residual_block_forward.3} parent=11 // pred_region
          %p283 = scmp.lt.s32.totalorder %s26, 0
          %s284 = scalar_select %p283, %s26, 0
          %s285 = smul.addr %s284, 4
          %s286 = scalar_lea.vmem %s2, %s285
        $region16: #{residual_block_forward.3} parent=11 // pred_fallthru
          _
        // Predicated region
        $region17: #{residual_block_forward.3} parent=11 // pred_check
          %p287 = pneg %p133
        $region18: #{residual_block_forward.3} parent=11 // pred_check_branch
          %289 = sbr.rel (%p287) target = $region20
        $region19: #{residual_block_forward.3} parent=11 // pred_region
          %p290 = scmp.lt.s32.totalorder %s26, 0
          %s291 = scalar_select %p290, %s26, 0
          %s292 = smul.addr %s291, 4
          %s293 = scalar_lea.vmem %s3, %s292
        $region20: #{residual_block_forward.3} parent=11 // pred_fallthru
          _
        // Predicated region
        $region21: #{residual_block_forward.3} parent=11 // pred_check
          %p294 = pneg %p159
        $region22: #{residual_block_forward.3} parent=11 // pred_check_branch
          %296 = sbr.rel (%p294) target = $region24
        $region23: #{residual_block_forward.3} parent=11 // pred_region
          %p297 = scmp.lt.s32.totalorder %s26, 0
          %s298 = scalar_select %p297, %s26, 0
          %s299 = scalar_lea.vmem %s4, %s298
        $region24: #{residual_block_forward.3} parent=11 // pred_fallthru
          _
        // Predicated region
        $region25: #{residual_block_forward.3} parent=11 // pred_check
          %p300 = pneg %p185
        $region26: #{residual_block_forward.3} parent=11 // pred_check_branch
          %302 = sbr.rel (%p300) target = $region28
        $region27: #{residual_block_forward.3} parent=11 // pred_region
          %p303 = scmp.lt.s32.totalorder %s26, 0
          %s304 = scalar_select %p303, %s26, 0
          %s305 = scalar_lea.vmem %s5, %s304
        $region28: #{residual_block_forward.3} parent=11 // pred_fallthru
          _
        // Predicated region
        $region29: #{residual_block_forward.3} parent=11 // pred_check
          %p306 = pneg %p211
        $region30: #{residual_block_forward.3} parent=11 // pred_check_branch
          %308 = sbr.rel (%p306) target = $region32
        $region31: #{residual_block_forward.3} parent=11 // pred_region
          %p309 = scmp.lt.s32.totalorder %s26, 0
          %s310 = scalar_select %p309, %s26, 0
          %s311 = scalar_lea.vmem %s6, %s310
        $region32: #{residual_block_forward.3} parent=11 // pred_fallthru
          _
        // Predicated region
        $region33: #{residual_block_forward.3} parent=11 // pred_check
          %p312 = pneg %p237
        $region34: #{residual_block_forward.3} parent=11 // pred_check_branch
          %314 = sbr.rel (%p312) target = $region36
        $region35: #{residual_block_forward.3} parent=11 // pred_region
          %p315 = scmp.lt.s32.totalorder %s26, 0
          %s316 = scalar_select %p315, %s26, 0
          %s317 = scalar_lea.vmem %s7, %s316
        $region36: #{residual_block_forward.3} parent=11 // pred_fallthru
          _
      $region12: #{residual_block_forward.3} parent=5 // pred_fallthru
        _
      %p318 = scmp.lt.s32.totalorder %s17, 2
      // Predicated region
      $region37: #{residual_block_forward.3} parent=5 // pred_check
        %p319 = pneg %p318
      $region38: #{residual_block_forward.3} parent=5 // pred_check_branch
        %321 = sbr.rel (%p319) target = $region40
      $region39: #{residual_block_forward.3} parent=5 // pred_region
        // Predicated region
        $region41: #{residual_block_forward.3} parent=39 // pred_check
          %p322 = pneg %p49
        $region42: #{residual_block_forward.3} parent=39 // pred_check_branch
          %324 = sbr.rel (%p322) target = $region44
        $region43: #{residual_block_forward.3} parent=39 // pred_region
          %p325 = scmp.lt.s32.totalorder %s25, 1
          %s326 = scalar_select %p325, %s25, 1
          %s327 = smul.addr %s326, 20
          %s328 = smul.addr %s327, 4
          %s329 = scalar_lea.vmem %s0, %s328
        $region44: #{residual_block_forward.3} parent=39 // pred_fallthru
          _
        // Predicated region
        $region45: #{residual_block_forward.3} parent=39 // pred_check
          %p330 = pneg %p75
        $region46: #{residual_block_forward.3} parent=39 // pred_check_branch
          %332 = sbr.rel (%p330) target = $region48
        $region47: #{residual_block_forward.3} parent=39 // pred_region
          %p333 = scmp.lt.s32.totalorder %s25, 1
          %s334 = scalar_select %p333, %s25, 1
          %s335 = smul.addr %s334, 18
          %s336 = smul.addr %s335, 4
          %s337 = scalar_lea.vmem %s1, %s336
        $region48: #{residual_block_forward.3} parent=39 // pred_fallthru
          _
      $region40: #{residual_block_forward.3} parent=5 // pred_fallthru
        _
      %p338 = scmp.le.s32.totalorder 1, %s17
      %p339 = scmp.lt.s32.totalorder %s17, 3
      %p340 = pnand %p338, %p339
      %p341 = pneg %p340
      // Predicated region
      $region49: #{residual_block_forward.3} parent=5 // pred_check
        _
      $region50: #{residual_block_forward.3} parent=5 // pred_check_branch
        %343 = sbr.rel (%p340) target = $region52
      $region51: #{residual_block_forward.3} parent=5 // pred_region
        %s344 = ssub.s32 %s17, 1
        %p345 = scmp.lt.s32.totalorder %s27, 1
        %s346 = scalar_select %p345, %s27, 1
        %s347 = smul.addr %s346, 20
        %s348 = smul.addr %s347, 4
        %s349 = scalar_lea.vmem %s0, %s348
        %p350 = pneg %p55
        %p351 = pneg %p52
        %p352 = scmp.lt.s32.totalorder %s27, 1
        %s353 = scalar_select %p352, %s27, 1
        %s354 = smul.addr %s353, 18
        %s355 = smul.addr %s354, 4
        %s356 = scalar_lea.vmem %s1, %s355
        %p357 = pneg %p81
        %p358 = pneg %p78
        %p359 = scmp.lt.s32.totalorder %s26, 0
        %s360 = scalar_select %p359, %s26, 0
        %s361 = smul.addr %s360, 4
        %s362 = scalar_lea.vmem %s2, %s361
        %p363 = pneg %p107
        %p364 = pneg %p104
        %p365 = scmp.lt.s32.totalorder %s26, 0
        %s366 = scalar_select %p365, %s26, 0
        %s367 = smul.addr %s366, 4
        %s368 = scalar_lea.vmem %s3, %s367
        %p369 = pneg %p133
        %p370 = pneg %p130
        %p371 = scmp.lt.s32.totalorder %s26, 0
        %s372 = scalar_select %p371, %s26, 0
        %s373 = scalar_lea.vmem %s4, %s372
        %p374 = pneg %p159
        %p375 = pneg %p156
        %p376 = scmp.lt.s32.totalorder %s26, 0
        %s377 = scalar_select %p376, %s26, 0
        %s378 = scalar_lea.vmem %s5, %s377
        %p379 = pneg %p185
        %p380 = pneg %p182
        %p381 = scmp.lt.s32.totalorder %s26, 0
        %s382 = scalar_select %p381, %s26, 0
        %s383 = scalar_lea.vmem %s6, %s382
        %p384 = pneg %p211
        %p385 = pneg %p208
        %p386 = scmp.lt.s32.totalorder %s26, 0
        %s387 = scalar_select %p386, %s26, 0
        %s388 = scalar_lea.vmem %s7, %s387
        %p389 = pneg %p237
        %p390 = pneg %p234
        %p391 = pneg %p265
        %p392 = pneg %p262
        %s393 = sand.u32 %s252, 1
        %s394 = scalar_lea.sflag [#allocation3], %s393
        %s395 = sand.u32 %s252, 1
        %s396 = smul.addr %s395, 32
        %s397 = scalar_lea.vmem [#allocation2], %s396
        %p398 = scmp.lt.s32.totalorder %s27, 1
        %s399 = scalar_select %p398, %s27, 1
        %s400 = smul.addr %s399, 20
        %s401 = smul.addr %s400, 4
        %s402 = scalar_lea.vmem %s0, %s401
        %p403 = scmp.lt.s32.totalorder %s27, 1
        %s404 = scalar_select %p403, %s27, 1
        %s405 = smul.addr %s404, 18
        %s406 = smul.addr %s405, 4
        %s407 = scalar_lea.vmem %s1, %s406
        %p408 = scmp.lt.s32.totalorder %s26, 0
        %s409 = scalar_select %p408, %s26, 0
        %s410 = smul.addr %s409, 4
        %s411 = scalar_lea.vmem %s2, %s410
        %p412 = scmp.lt.s32.totalorder %s26, 0
        %s413 = scalar_select %p412, %s26, 0
        %s414 = smul.addr %s413, 4
        %s415 = scalar_lea.vmem %s3, %s414
        %p416 = scmp.lt.s32.totalorder %s26, 0
        %s417 = scalar_select %p416, %s26, 0
        %s418 = scalar_lea.vmem %s4, %s417
        %p419 = scmp.lt.s32.totalorder %s26, 0
        %s420 = scalar_select %p419, %s26, 0
        %s421 = scalar_lea.vmem %s5, %s420
        %p422 = scmp.lt.s32.totalorder %s26, 0
        %s423 = scalar_select %p422, %s26, 0
        %s424 = scalar_lea.vmem %s6, %s423
        %p425 = scmp.lt.s32.totalorder %s26, 0
        %s426 = scalar_select %p425, %s26, 0
        %s427 = scalar_lea.vmem %s7, %s426
        %v429 = vld [vmem:[%s402] sm:$0xf]
        %v430 = vld [vmem:[%s402 + $0x8] sm:$0xf]
        %v431 = vld [vmem:[%s402 + $0x10] sm:$0xf]
        %v432 = vld [vmem:[%s402 + $0x18] sm:$0xf]
        %v433 = vld [vmem:[%s402 + $0x20] sm:$0xf]
        %v434 = vld [vmem:[%s402 + $0x28] sm:$0xf]
        %v435 = vld [vmem:[%s402 + $0x30] sm:$0xf]
        %v436 = vld [vmem:[%s402 + $0x38] sm:$0xf]
        %v437 = vld [vmem:[%s402 + $0x4] sm:$0x1]
        %v438 = vld [vmem:[%s402 + $0xc] sm:$0x1]
        %v439 = vld [vmem:[%s402 + $0x14] sm:$0x1]
        %v440 = vld [vmem:[%s402 + $0x1c] sm:$0x1]
        %v441 = vld [vmem:[%s402 + $0x24] sm:$0x1]
        %v442 = vld [vmem:[%s402 + $0x2c] sm:$0x1]
        %v443 = vld [vmem:[%s402 + $0x34] sm:$0x1]
        %v444 = vld [vmem:[%s402 + $0x3c] sm:$0x1]
        %vm445 = vsmask.f32 3328
        %vm446 = vsmask.f32 7440
        %vm447 = vmor %vm445, %vm446
        %v449 = vshrl.u32 %v429, 16
        %v451 = vrot.slane %v449, 4
        %v452 = vshll.u32 %v429, 16
        %v454 = vrot.slane %v452, 5
        %v455 = vor.u32 %v451, %v454
        %v456 = vrot.slane %v455, 4
        %v458 = vshll.u32 %v437, 16
        %v460 = vrot.slane %v458, 5
        %v461 = vsel %vm447, %v456, %v460
        %v463 = vshrl.u32 %v430, 16
        %v465 = vrot.slane %v463, 4
        %v466 = vshll.u32 %v430, 16
        %v468 = vrot.slane %v466, 5
        %v469 = vor.u32 %v465, %v468
        %v470 = vrot.slane %v469, 4
        %v472 = vshll.u32 %v438, 16
        %v474 = vrot.slane %v472, 5
        %v475 = vsel %vm447, %v470, %v474
        %v477 = vshrl.u32 %v431, 16
        %v479 = vrot.slane %v477, 4
        %v480 = vshll.u32 %v431, 16
        %v482 = vrot.slane %v480, 5
        %v483 = vor.u32 %v479, %v482
        %v484 = vrot.slane %v483, 4
        %v486 = vshll.u32 %v439, 16
        %v488 = vrot.slane %v486, 5
        %v489 = vsel %vm447, %v484, %v488
        %v491 = vshrl.u32 %v432, 16
        %v493 = vrot.slane %v491, 4
        %v494 = vshll.u32 %v432, 16
        %v496 = vrot.slane %v494, 5
        %v497 = vor.u32 %v493, %v496
        %v498 = vrot.slane %v497, 4
        %v500 = vshll.u32 %v440, 16
        %v502 = vrot.slane %v500, 5
        %v503 = vsel %vm447, %v498, %v502
        %v505 = vshrl.u32 %v433, 16
        %v507 = vrot.slane %v505, 4
        %v508 = vshll.u32 %v433, 16
        %v510 = vrot.slane %v508, 5
        %v511 = vor.u32 %v507, %v510
        %v512 = vrot.slane %v511, 4
        %v514 = vshll.u32 %v441, 16
        %v516 = vrot.slane %v514, 5
        %v517 = vsel %vm447, %v512, %v516
        %v519 = vshrl.u32 %v434, 16
        %v521 = vrot.slane %v519, 4
        %v522 = vshll.u32 %v434, 16
        %v524 = vrot.slane %v522, 5
        %v525 = vor.u32 %v521, %v524
        %v526 = vrot.slane %v525, 4
        %v528 = vshll.u32 %v442, 16
        %v530 = vrot.slane %v528, 5
        %v531 = vsel %vm447, %v526, %v530
        %v533 = vshrl.u32 %v435, 16
        %v535 = vrot.slane %v533, 4
        %v536 = vshll.u32 %v435, 16
        %v538 = vrot.slane %v536, 5
        %v539 = vor.u32 %v535, %v538
        %v540 = vrot.slane %v539, 4
        %v542 = vshll.u32 %v443, 16
        %v544 = vrot.slane %v542, 5
        %v545 = vsel %vm447, %v540, %v544
        %v547 = vshrl.u32 %v436, 16
        %v549 = vrot.slane %v547, 4
        %v550 = vshll.u32 %v436, 16
        %v552 = vrot.slane %v550, 5
        %v553 = vor.u32 %v549, %v552
        %v554 = vrot.slane %v553, 4
        %v556 = vshll.u32 %v444, 16
        %v558 = vrot.slane %v556, 5
        %v559 = vsel %vm447, %v554, %v558
        %v560 = vld [vmem:[%s402] sm:$0xe]
        %v561 = vld [vmem:[%s402 + $0x8] sm:$0xe]
        %v562 = vld [vmem:[%s402 + $0x10] sm:$0xe]
        %v563 = vld [vmem:[%s402 + $0x18] sm:$0xe]
        %v564 = vld [vmem:[%s402 + $0x20] sm:$0xe]
        %v565 = vld [vmem:[%s402 + $0x28] sm:$0xe]
        %v566 = vld [vmem:[%s402 + $0x30] sm:$0xe]
        %v567 = vld [vmem:[%s402 + $0x38] sm:$0xe]
        %vm584 = vcmask 1042432
        %vm585 = vcmask 1046532
        %vm586 = vmor %vm584, %vm585
        %v587 = vrot.slane %v560, 5
        %v588 = vrot.slane %v587, 4
        %v589 = vrot.slane %v437, 5
        %v590 = vsel %vm586, %v588, %v589
        %v591 = vrot.slane %v561, 5
        %v592 = vrot.slane %v591, 4
        %v593 = vrot.slane %v438, 5
        %v594 = vsel %vm586, %v592, %v593
        %v595 = vrot.slane %v562, 5
        %v596 = vrot.slane %v595, 4
        %v597 = vrot.slane %v439, 5
        %v598 = vsel %vm586, %v596, %v597
        %v599 = vrot.slane %v563, 5
        %v600 = vrot.slane %v599, 4
        %v601 = vrot.slane %v440, 5
        %v602 = vsel %vm586, %v600, %v601
        %v603 = vrot.slane %v564, 5
        %v604 = vrot.slane %v603, 4
        %v605 = vrot.slane %v441, 5
        %v606 = vsel %vm586, %v604, %v605
        %v607 = vrot.slane %v565, 5
        %v608 = vrot.slane %v607, 4
        %v609 = vrot.slane %v442, 5
        %v610 = vsel %vm586, %v608, %v609
        %v611 = vrot.slane %v566, 5
        %v612 = vrot.slane %v611, 4
        %v613 = vrot.slane %v443, 5
        %v614 = vsel %vm586, %v612, %v613
        %v615 = vrot.slane %v567, 5
        %v616 = vrot.slane %v615, 4
        %v617 = vrot.slane %v444, 5
        %v618 = vsel %vm586, %v616, %v617
        %s619 = scalar_lea.vmem %s402, 8
        %v620 = vld [vmem:[%s619] sm:$0xf]
        %v621 = vld [vmem:[%s619 + $0x8] sm:$0xf]
        %v622 = vld [vmem:[%s619 + $0x10] sm:$0xf]
        %v623 = vld [vmem:[%s619 + $0x18] sm:$0xf]
        %v624 = vld [vmem:[%s619 + $0x20] sm:$0xf]
        %v625 = vld [vmem:[%s619 + $0x28] sm:$0xf]
        %v626 = vld [vmem:[%s619 + $0x30] sm:$0xf]
        %v627 = vld [vmem:[%s619 + $0x38] sm:$0xf]
        %v628 = vld [vmem:[%s619 + $0x4] sm:$0x1]
        %v629 = vld [vmem:[%s619 + $0xc] sm:$0x1]
        %v630 = vld [vmem:[%s619 + $0x14] sm:$0x1]
        %v631 = vld [vmem:[%s619 + $0x1c] sm:$0x1]
        %v632 = vld [vmem:[%s619 + $0x24] sm:$0x1]
        %v633 = vld [vmem:[%s619 + $0x2c] sm:$0x1]
        %v634 = vld [vmem:[%s619 + $0x34] sm:$0x1]
        %v635 = vld [vmem:[%s619 + $0x3c] sm:$0x1]
        %v637 = vshrl.u32 %v620, 16
        %v639 = vrot.slane %v637, 4
        %v640 = vshll.u32 %v620, 16
        %v642 = vrot.slane %v640, 5
        %v643 = vor.u32 %v639, %v642
        %v644 = vrot.slane %v643, 4
        %v646 = vshll.u32 %v628, 16
        %v648 = vrot.slane %v646, 5
        %v649 = vsel %vm447, %v644, %v648
        %v651 = vshrl.u32 %v621, 16
        %v653 = vrot.slane %v651, 4
        %v654 = vshll.u32 %v621, 16
        %v656 = vrot.slane %v654, 5
        %v657 = vor.u32 %v653, %v656
        %v658 = vrot.slane %v657, 4
        %v660 = vshll.u32 %v629, 16
        %v662 = vrot.slane %v660, 5
        %v663 = vsel %vm447, %v658, %v662
        %v665 = vshrl.u32 %v622, 16
        %v667 = vrot.slane %v665, 4
        %v668 = vshll.u32 %v622, 16
        %v670 = vrot.slane %v668, 5
        %v671 = vor.u32 %v667, %v670
        %v672 = vrot.slane %v671, 4
        %v674 = vshll.u32 %v630, 16
        %v676 = vrot.slane %v674, 5
        %v677 = vsel %vm447, %v672, %v676
        %v679 = vshrl.u32 %v623, 16
        %v681 = vrot.slane %v679, 4
        %v682 = vshll.u32 %v623, 16
        %v684 = vrot.slane %v682, 5
        %v685 = vor.u32 %v681, %v684
        %v686 = vrot.slane %v685, 4
        %v688 = vshll.u32 %v631, 16
        %v690 = vrot.slane %v688, 5
        %v691 = vsel %vm447, %v686, %v690
        %v693 = vshrl.u32 %v624, 16
        %v695 = vrot.slane %v693, 4
        %v696 = vshll.u32 %v624, 16
        %v698 = vrot.slane %v696, 5
        %v699 = vor.u32 %v695, %v698
        %v700 = vrot.slane %v699, 4
        %v702 = vshll.u32 %v632, 16
        %v704 = vrot.slane %v702, 5
        %v705 = vsel %vm447, %v700, %v704
        %v707 = vshrl.u32 %v625, 16
        %v709 = vrot.slane %v707, 4
        %v710 = vshll.u32 %v625, 16
        %v712 = vrot.slane %v710, 5
        %v713 = vor.u32 %v709, %v712
        %v714 = vrot.slane %v713, 4
        %v716 = vshll.u32 %v633, 16
        %v718 = vrot.slane %v716, 5
        %v719 = vsel %vm447, %v714, %v718
        %v721 = vshrl.u32 %v626, 16
        %v723 = vrot.slane %v721, 4
        %v724 = vshll.u32 %v626, 16
        %v726 = vrot.slane %v724, 5
        %v727 = vor.u32 %v723, %v726
        %v728 = vrot.slane %v727, 4
        %v730 = vshll.u32 %v634, 16
        %v732 = vrot.slane %v730, 5
        %v733 = vsel %vm447, %v728, %v732
        %v735 = vshrl.u32 %v627, 16
        %v737 = vrot.slane %v735, 4
        %v738 = vshll.u32 %v627, 16
        %v740 = vrot.slane %v738, 5
        %v741 = vor.u32 %v737, %v740
        %v742 = vrot.slane %v741, 4
        %v744 = vshll.u32 %v635, 16
        %v746 = vrot.slane %v744, 5
        %v747 = vsel %vm447, %v742, %v746
        %v748 = vld [vmem:[%s619] sm:$0xe]
        %v749 = vld [vmem:[%s619 + $0x8] sm:$0xe]
        %v750 = vld [vmem:[%s619 + $0x10] sm:$0xe]
        %v751 = vld [vmem:[%s619 + $0x18] sm:$0xe]
        %v752 = vld [vmem:[%s619 + $0x20] sm:$0xe]
        %v753 = vld [vmem:[%s619 + $0x28] sm:$0xe]
        %v754 = vld [vmem:[%s619 + $0x30] sm:$0xe]
        %v755 = vld [vmem:[%s619 + $0x38] sm:$0xe]
        %v772 = vrot.slane %v748, 5
        %v773 = vrot.slane %v772, 4
        %v774 = vrot.slane %v628, 5
        %v775 = vsel %vm586, %v773, %v774
        %v776 = vrot.slane %v749, 5
        %v777 = vrot.slane %v776, 4
        %v778 = vrot.slane %v629, 5
        %v779 = vsel %vm586, %v777, %v778
        %v780 = vrot.slane %v750, 5
        %v781 = vrot.slane %v780, 4
        %v782 = vrot.slane %v630, 5
        %v783 = vsel %vm586, %v781, %v782
        %v784 = vrot.slane %v751, 5
        %v785 = vrot.slane %v784, 4
        %v786 = vrot.slane %v631, 5
        %v787 = vsel %vm586, %v785, %v786
        %v788 = vrot.slane %v752, 5
        %v789 = vrot.slane %v788, 4
        %v790 = vrot.slane %v632, 5
        %v791 = vsel %vm586, %v789, %v790
        %v792 = vrot.slane %v753, 5
        %v793 = vrot.slane %v792, 4
        %v794 = vrot.slane %v633, 5
        %v795 = vsel %vm586, %v793, %v794
        %v796 = vrot.slane %v754, 5
        %v797 = vrot.slane %v796, 4
        %v798 = vrot.slane %v634, 5
        %v799 = vsel %vm586, %v797, %v798
        %v800 = vrot.slane %v755, 5
        %v801 = vrot.slane %v800, 4
        %v802 = vrot.slane %v635, 5
        %v803 = vsel %vm586, %v801, %v802
        %s804 = scalar_lea.vmem %s402, 16
        %v805 = vld [vmem:[%s804] sm:$0xf]
        %v806 = vld [vmem:[%s804 + $0x8] sm:$0xf]
        %v807 = vld [vmem:[%s804 + $0x10] sm:$0xf]
        %v808 = vld [vmem:[%s804 + $0x18] sm:$0xf]
        %v809 = vld [vmem:[%s804 + $0x20] sm:$0xf]
        %v810 = vld [vmem:[%s804 + $0x28] sm:$0xf]
        %v811 = vld [vmem:[%s804 + $0x30] sm:$0xf]
        %v812 = vld [vmem:[%s804 + $0x38] sm:$0xf]
        %v813 = vld [vmem:[%s804 + $0x4] sm:$0x1]
        %v814 = vld [vmem:[%s804 + $0xc] sm:$0x1]
        %v815 = vld [vmem:[%s804 + $0x14] sm:$0x1]
        %v816 = vld [vmem:[%s804 + $0x1c] sm:$0x1]
        %v817 = vld [vmem:[%s804 + $0x24] sm:$0x1]
        %v818 = vld [vmem:[%s804 + $0x2c] sm:$0x1]
        %v819 = vld [vmem:[%s804 + $0x34] sm:$0x1]
        %v820 = vld [vmem:[%s804 + $0x3c] sm:$0x1]
        %v822 = vshrl.u32 %v805, 16
        %v824 = vrot.slane %v822, 4
        %v825 = vshll.u32 %v805, 16
        %v827 = vrot.slane %v825, 5
        %v828 = vor.u32 %v824, %v827
        %v829 = vrot.slane %v828, 4
        %v831 = vshll.u32 %v813, 16
        %v833 = vrot.slane %v831, 5
        %v834 = vsel %vm447, %v829, %v833
        %v836 = vshrl.u32 %v806, 16
        %v838 = vrot.slane %v836, 4
        %v839 = vshll.u32 %v806, 16
        %v841 = vrot.slane %v839, 5
        %v842 = vor.u32 %v838, %v841
        %v843 = vrot.slane %v842, 4
        %v845 = vshll.u32 %v814, 16
        %v847 = vrot.slane %v845, 5
        %v848 = vsel %vm447, %v843, %v847
        %v850 = vshrl.u32 %v807, 16
        %v852 = vrot.slane %v850, 4
        %v853 = vshll.u32 %v807, 16
        %v855 = vrot.slane %v853, 5
        %v856 = vor.u32 %v852, %v855
        %v857 = vrot.slane %v856, 4
        %v859 = vshll.u32 %v815, 16
        %v861 = vrot.slane %v859, 5
        %v862 = vsel %vm447, %v857, %v861
        %v864 = vshrl.u32 %v808, 16
        %v866 = vrot.slane %v864, 4
        %v867 = vshll.u32 %v808, 16
        %v869 = vrot.slane %v867, 5
        %v870 = vor.u32 %v866, %v869
        %v871 = vrot.slane %v870, 4
        %v873 = vshll.u32 %v816, 16
        %v875 = vrot.slane %v873, 5
        %v876 = vsel %vm447, %v871, %v875
        %v878 = vshrl.u32 %v809, 16
        %v880 = vrot.slane %v878, 4
        %v881 = vshll.u32 %v809, 16
        %v883 = vrot.slane %v881, 5
        %v884 = vor.u32 %v880, %v883
        %v885 = vrot.slane %v884, 4
        %v887 = vshll.u32 %v817, 16
        %v889 = vrot.slane %v887, 5
        %v890 = vsel %vm447, %v885, %v889
        %v892 = vshrl.u32 %v810, 16
        %v894 = vrot.slane %v892, 4
        %v895 = vshll.u32 %v810, 16
        %v897 = vrot.slane %v895, 5
        %v898 = vor.u32 %v894, %v897
        %v899 = vrot.slane %v898, 4
        %v901 = vshll.u32 %v818, 16
        %v903 = vrot.slane %v901, 5
        %v904 = vsel %vm447, %v899, %v903
        %v906 = vshrl.u32 %v811, 16
        %v908 = vrot.slane %v906, 4
        %v909 = vshll.u32 %v811, 16
        %v911 = vrot.slane %v909, 5
        %v912 = vor.u32 %v908, %v911
        %v913 = vrot.slane %v912, 4
        %v915 = vshll.u32 %v819, 16
        %v917 = vrot.slane %v915, 5
        %v918 = vsel %vm447, %v913, %v917
        %v920 = vshrl.u32 %v812, 16
        %v922 = vrot.slane %v920, 4
        %v923 = vshll.u32 %v812, 16
        %v925 = vrot.slane %v923, 5
        %v926 = vor.u32 %v922, %v925
        %v927 = vrot.slane %v926, 4
        %v929 = vshll.u32 %v820, 16
        %v931 = vrot.slane %v929, 5
        %v932 = vsel %vm447, %v927, %v931
        %v933 = vld [vmem:[%s804] sm:$0xe]
        %v934 = vld [vmem:[%s804 + $0x8] sm:$0xe]
        %v935 = vld [vmem:[%s804 + $0x10] sm:$0xe]
        %v936 = vld [vmem:[%s804 + $0x18] sm:$0xe]
        %v937 = vld [vmem:[%s804 + $0x20] sm:$0xe]
        %v938 = vld [vmem:[%s804 + $0x28] sm:$0xe]
        %v939 = vld [vmem:[%s804 + $0x30] sm:$0xe]
        %v940 = vld [vmem:[%s804 + $0x38] sm:$0xe]
        %v957 = vrot.slane %v933, 5
        %v958 = vrot.slane %v957, 4
        %v959 = vrot.slane %v813, 5
        %v960 = vsel %vm586, %v958, %v959
        %v961 = vrot.slane %v934, 5
        %v962 = vrot.slane %v961, 4
        %v963 = vrot.slane %v814, 5
        %v964 = vsel %vm586, %v962, %v963
        %v965 = vrot.slane %v935, 5
        %v966 = vrot.slane %v965, 4
        %v967 = vrot.slane %v815, 5
        %v968 = vsel %vm586, %v966, %v967
        %v969 = vrot.slane %v936, 5
        %v970 = vrot.slane %v969, 4
        %v971 = vrot.slane %v816, 5
        %v972 = vsel %vm586, %v970, %v971
        %v973 = vrot.slane %v937, 5
        %v974 = vrot.slane %v973, 4
        %v975 = vrot.slane %v817, 5
        %v976 = vsel %vm586, %v974, %v975
        %v977 = vrot.slane %v938, 5
        %v978 = vrot.slane %v977, 4
        %v979 = vrot.slane %v818, 5
        %v980 = vsel %vm586, %v978, %v979
        %v981 = vrot.slane %v939, 5
        %v982 = vrot.slane %v981, 4
        %v983 = vrot.slane %v819, 5
        %v984 = vsel %vm586, %v982, %v983
        %v985 = vrot.slane %v940, 5
        %v986 = vrot.slane %v985, 4
        %v987 = vrot.slane %v820, 5
        %v988 = vsel %vm586, %v986, %v987
        %v997 = vunpack.c.l.b16 %v429
        %v998 = vunpack.c.l.b16 %v430
        %v999 = vunpack.c.l.b16 %v431
        %v1000 = vunpack.c.l.b16 %v432
        %v1001 = vunpack.c.l.b16 %v433
        %v1002 = vunpack.c.l.b16 %v434
        %v1003 = vunpack.c.l.b16 %v435
        %v1004 = vunpack.c.l.b16 %v436
        %v1005 = vpack.c.b16 %v998, %v997
        %v1006 = vpack.c.b16 %v1000, %v999
        %v1007 = vpack.c.b16 %v1002, %v1001
        %v1008 = vpack.c.b16 %v1004, %v1003
        %v1013 = vunpack.c.l.b16 %v461
        %v1014 = vunpack.c.l.b16 %v475
        %v1015 = vunpack.c.l.b16 %v489
        %v1016 = vunpack.c.l.b16 %v503
        %v1017 = vunpack.c.l.b16 %v517
        %v1018 = vunpack.c.l.b16 %v531
        %v1019 = vunpack.c.l.b16 %v545
        %v1020 = vunpack.c.l.b16 %v559
        %v1021 = vpack.c.b16 %v1014, %v1013
        %v1022 = vpack.c.b16 %v1016, %v1015
        %v1023 = vpack.c.b16 %v1018, %v1017
        %v1024 = vpack.c.b16 %v1020, %v1019
        %v1029 = vunpack.c.l.b16 %v590
        %v1030 = vunpack.c.l.b16 %v594
        %v1031 = vunpack.c.l.b16 %v598
        %v1032 = vunpack.c.l.b16 %v602
        %v1033 = vunpack.c.l.b16 %v606
        %v1034 = vunpack.c.l.b16 %v610
        %v1035 = vunpack.c.l.b16 %v614
        %v1036 = vunpack.c.l.b16 %v618
        %v1037 = vpack.c.b16 %v1030, %v1029
        %v1038 = vpack.c.b16 %v1032, %v1031
        %v1039 = vpack.c.b16 %v1034, %v1033
        %v1040 = vpack.c.b16 %v1036, %v1035
        %v1053 = vunpack.c.l.b16 %v620
        %v1054 = vunpack.c.l.b16 %v621
        %v1055 = vunpack.c.l.b16 %v622
        %v1056 = vunpack.c.l.b16 %v623
        %v1057 = vunpack.c.l.b16 %v624
        %v1058 = vunpack.c.l.b16 %v625
        %v1059 = vunpack.c.l.b16 %v626
        %v1060 = vunpack.c.l.b16 %v627
        %v1061 = vpack.c.b16 %v1054, %v1053
        %v1062 = vpack.c.b16 %v1056, %v1055
        %v1063 = vpack.c.b16 %v1058, %v1057
        %v1064 = vpack.c.b16 %v1060, %v1059
        %v1069 = vunpack.c.l.b16 %v649
        %v1070 = vunpack.c.l.b16 %v663
        %v1071 = vunpack.c.l.b16 %v677
        %v1072 = vunpack.c.l.b16 %v691
        %v1073 = vunpack.c.l.b16 %v705
        %v1074 = vunpack.c.l.b16 %v719
        %v1075 = vunpack.c.l.b16 %v733
        %v1076 = vunpack.c.l.b16 %v747
        %v1077 = vpack.c.b16 %v1070, %v1069
        %v1078 = vpack.c.b16 %v1072, %v1071
        %v1079 = vpack.c.b16 %v1074, %v1073
        %v1080 = vpack.c.b16 %v1076, %v1075
        %v1085 = vunpack.c.l.b16 %v775
        %v1086 = vunpack.c.l.b16 %v779
        %v1087 = vunpack.c.l.b16 %v783
        %v1088 = vunpack.c.l.b16 %v787
        %v1089 = vunpack.c.l.b16 %v791
        %v1090 = vunpack.c.l.b16 %v795
        %v1091 = vunpack.c.l.b16 %v799
        %v1092 = vunpack.c.l.b16 %v803
        %v1093 = vpack.c.b16 %v1086, %v1085
        %v1094 = vpack.c.b16 %v1088, %v1087
        %v1095 = vpack.c.b16 %v1090, %v1089
        %v1096 = vpack.c.b16 %v1092, %v1091
        %v1109 = vunpack.c.l.b16 %v805
        %v1110 = vunpack.c.l.b16 %v806
        %v1111 = vunpack.c.l.b16 %v807
        %v1112 = vunpack.c.l.b16 %v808
        %v1113 = vunpack.c.l.b16 %v809
        %v1114 = vunpack.c.l.b16 %v810
        %v1115 = vunpack.c.l.b16 %v811
        %v1116 = vunpack.c.l.b16 %v812
        %v1117 = vpack.c.b16 %v1110, %v1109
        %v1118 = vpack.c.b16 %v1112, %v1111
        %v1119 = vpack.c.b16 %v1114, %v1113
        %v1120 = vpack.c.b16 %v1116, %v1115
        %v1125 = vunpack.c.l.b16 %v834
        %v1126 = vunpack.c.l.b16 %v848
        %v1127 = vunpack.c.l.b16 %v862
        %v1128 = vunpack.c.l.b16 %v876
        %v1129 = vunpack.c.l.b16 %v890
        %v1130 = vunpack.c.l.b16 %v904
        %v1131 = vunpack.c.l.b16 %v918
        %v1132 = vunpack.c.l.b16 %v932
        %v1133 = vpack.c.b16 %v1126, %v1125
        %v1134 = vpack.c.b16 %v1128, %v1127
        %v1135 = vpack.c.b16 %v1130, %v1129
        %v1136 = vpack.c.b16 %v1132, %v1131
        %v1141 = vunpack.c.l.b16 %v960
        %v1142 = vunpack.c.l.b16 %v964
        %v1143 = vunpack.c.l.b16 %v968
        %v1144 = vunpack.c.l.b16 %v972
        %v1145 = vunpack.c.l.b16 %v976
        %v1146 = vunpack.c.l.b16 %v980
        %v1147 = vunpack.c.l.b16 %v984
        %v1148 = vunpack.c.l.b16 %v988
        %v1149 = vpack.c.b16 %v1142, %v1141
        %v1150 = vpack.c.b16 %v1144, %v1143
        %v1151 = vpack.c.b16 %v1146, %v1145
        %v1152 = vpack.c.b16 %v1148, %v1147
        %v1157 = vld [vmem:[%s411] sm:$0xf]
        %v1158 = vld [vmem:[%s411 + $0x4] sm:$0xf]
        %v1159 = vld [vmem:[%s411 + $0x8] sm:$0xf]
        %v1160 = vld [vmem:[%s411 + $0xc] sm:$0xf]
        %v1161 = vld [vmem:[%s411 + $0x10] sm:$0xf]
        %v1162 = vld [vmem:[%s411 + $0x14] sm:$0xf]
        %v1163 = vld [vmem:[%s411 + $0x18] sm:$0xf]
        %v1164 = vld [vmem:[%s411 + $0x1c] sm:$0xf]
        %v1165 = vld [vmem:[%s411 + $0x20] sm:$0xf]
        %v1166 = vld [vmem:[%s411 + $0x24] sm:$0xf]
        %v1167 = vld [vmem:[%s411 + $0x28] sm:$0xf]
        %v1168 = vld [vmem:[%s411 + $0x2c] sm:$0xf]
        %v1169 = vld [vmem:[%s411 + $0x30] sm:$0xf]
        %v1170 = vld [vmem:[%s411 + $0x34] sm:$0xf]
        %v1171 = vld [vmem:[%s411 + $0x38] sm:$0xf]
        %v1172 = vld [vmem:[%s411 + $0x3c] sm:$0xf]
        %v1173 = vld [vmem:[%s411 + $0x40] sm:$0xf]
        %v1174 = vld [vmem:[%s411 + $0x44] sm:$0xf]
        %v1175 = vld [vmem:[%s411 + $0x48] sm:$0xf]
        %v1176 = vld [vmem:[%s411 + $0x4c] sm:$0xf]
        %v1177 = vld [vmem:[%s411 + $0x50] sm:$0xf]
        %v1178 = vld [vmem:[%s411 + $0x54] sm:$0xf]
        %v1179 = vld [vmem:[%s411 + $0x58] sm:$0xf]
        %v1180 = vld [vmem:[%s411 + $0x5c] sm:$0xf]
        %v1181 = vld [vmem:[%s411 + $0x60] sm:$0xf]
        %v1182 = vld [vmem:[%s411 + $0x64] sm:$0xf]
        %v1183 = vld [vmem:[%s411 + $0x68] sm:$0xf]
        %v1184 = vld [vmem:[%s411 + $0x6c] sm:$0xf]
        %v1185 = vld [vmem:[%s411 + $0x70] sm:$0xf]
        %v1186 = vld [vmem:[%s411 + $0x74] sm:$0xf]
        %v1187 = vld [vmem:[%s411 + $0x78] sm:$0xf]
        %v1188 = vld [vmem:[%s411 + $0x7c] sm:$0xf]
        %v1189 = vld [vmem:[%s411 + $0x80] sm:$0xf]
        %v1190 = vld [vmem:[%s411 + $0x84] sm:$0xf]
        %v1191 = vld [vmem:[%s411 + $0x88] sm:$0xf]
        %v1192 = vld [vmem:[%s411 + $0x8c] sm:$0xf]
        %v1193 = vld [vmem:[%s411 + $0x90] sm:$0xf]
        %v1194 = vld [vmem:[%s411 + $0x94] sm:$0xf]
        %v1195 = vld [vmem:[%s411 + $0x98] sm:$0xf]
        %v1196 = vld [vmem:[%s411 + $0x9c] sm:$0xf]
        %v1197 = vld [vmem:[%s411 + $0xa0] sm:$0xf]
        %v1198 = vld [vmem:[%s411 + $0xa4] sm:$0xf]
        %v1199 = vld [vmem:[%s411 + $0xa8] sm:$0xf]
        %v1200 = vld [vmem:[%s411 + $0xac] sm:$0xf]
        %v1201 = vld [vmem:[%s411 + $0xb0] sm:$0xf]
        %v1202 = vld [vmem:[%s411 + $0xb4] sm:$0xf]
        %v1203 = vld [vmem:[%s411 + $0xb8] sm:$0xf]
        %v1204 = vld [vmem:[%s411 + $0xbc] sm:$0xf]
        %v1205 = vld [vmem:[%s411 + $0xc0] sm:$0xf]
        %v1206 = vld [vmem:[%s411 + $0xc4] sm:$0xf]
        %v1207 = vld [vmem:[%s411 + $0xc8] sm:$0xf]
        %v1208 = vld [vmem:[%s411 + $0xcc] sm:$0xf]
        %v1209 = vld [vmem:[%s411 + $0xd0] sm:$0xf]
        %v1210 = vld [vmem:[%s411 + $0xd4] sm:$0xf]
        %v1211 = vld [vmem:[%s411 + $0xd8] sm:$0xf]
        %v1212 = vld [vmem:[%s411 + $0xdc] sm:$0xf]
        %v1213 = vld [vmem:[%s411 + $0xe0] sm:$0xf]
        %v1214 = vld [vmem:[%s411 + $0xe4] sm:$0xf]
        %v1215 = vld [vmem:[%s411 + $0xe8] sm:$0xf]
        %v1216 = vld [vmem:[%s411 + $0xec] sm:$0xf]
        %v1217 = vld [vmem:[%s411 + $0xf0] sm:$0xf]
        %v1218 = vld [vmem:[%s411 + $0xf4] sm:$0xf]
        %v1219 = vld [vmem:[%s411 + $0xf8] sm:$0xf]
        %v1220 = vld [vmem:[%s411 + $0xfc] sm:$0xf]
        %v1221 = vld [vmem:[%s411 + $0x100] sm:$0xf]
        %v1222 = vld [vmem:[%s411 + $0x104] sm:$0xf]
        %v1223 = vld [vmem:[%s411 + $0x108] sm:$0xf]
        %v1224 = vld [vmem:[%s411 + $0x10c] sm:$0xf]
        %v1225 = vld [vmem:[%s411 + $0x110] sm:$0xf]
        %v1226 = vld [vmem:[%s411 + $0x114] sm:$0xf]
        %v1227 = vld [vmem:[%s411 + $0x118] sm:$0xf]
        %v1228 = vld [vmem:[%s411 + $0x11c] sm:$0xf]
        %v1229 = vld [vmem:[%s411 + $0x120] sm:$0xf]
        %v1230 = vld [vmem:[%s411 + $0x124] sm:$0xf]
        %v1231 = vld [vmem:[%s411 + $0x128] sm:$0xf]
        %v1232 = vld [vmem:[%s411 + $0x12c] sm:$0xf]
        %v1233 = vld [vmem:[%s411 + $0x130] sm:$0xf]
        %v1234 = vld [vmem:[%s411 + $0x134] sm:$0xf]
        %v1235 = vld [vmem:[%s411 + $0x138] sm:$0xf]
        %v1236 = vld [vmem:[%s411 + $0x13c] sm:$0xf]
        %v1237 = vld [vmem:[%s411 + $0x140] sm:$0xf]
        %v1238 = vld [vmem:[%s411 + $0x144] sm:$0xf]
        %v1239 = vld [vmem:[%s411 + $0x148] sm:$0xf]
        %v1240 = vld [vmem:[%s411 + $0x14c] sm:$0xf]
        %v1241 = vld [vmem:[%s411 + $0x150] sm:$0xf]
        %v1242 = vld [vmem:[%s411 + $0x154] sm:$0xf]
        %v1243 = vld [vmem:[%s411 + $0x158] sm:$0xf]
        %v1244 = vld [vmem:[%s411 + $0x15c] sm:$0xf]
        %v1245 = vld [vmem:[%s411 + $0x160] sm:$0xf]
        %v1246 = vld [vmem:[%s411 + $0x164] sm:$0xf]
        %v1247 = vld [vmem:[%s411 + $0x168] sm:$0xf]
        %v1248 = vld [vmem:[%s411 + $0x16c] sm:$0xf]
        %v1249 = vld [vmem:[%s411 + $0x170] sm:$0xf]
        %v1250 = vld [vmem:[%s411 + $0x174] sm:$0xf]
        %v1251 = vld [vmem:[%s411 + $0x178] sm:$0xf]
        %v1252 = vld [vmem:[%s411 + $0x17c] sm:$0xf]
        %v1253 = vld [vmem:[%s411 + $0x180] sm:$0xf]
        %v1254 = vld [vmem:[%s411 + $0x184] sm:$0xf]
        %v1255 = vld [vmem:[%s411 + $0x188] sm:$0xf]
        %v1256 = vld [vmem:[%s411 + $0x18c] sm:$0xf]
        %v1257 = vld [vmem:[%s411 + $0x190] sm:$0xf]
        %v1258 = vld [vmem:[%s411 + $0x194] sm:$0xf]
        %v1259 = vld [vmem:[%s411 + $0x198] sm:$0xf]
        %v1260 = vld [vmem:[%s411 + $0x19c] sm:$0xf]
        %v1261 = vld [vmem:[%s411 + $0x1a0] sm:$0xf]
        %v1262 = vld [vmem:[%s411 + $0x1a4] sm:$0xf]
        %v1263 = vld [vmem:[%s411 + $0x1a8] sm:$0xf]
        %v1264 = vld [vmem:[%s411 + $0x1ac] sm:$0xf]
        %v1265 = vld [vmem:[%s411 + $0x1b0] sm:$0xf]
        %v1266 = vld [vmem:[%s411 + $0x1b4] sm:$0xf]
        %v1267 = vld [vmem:[%s411 + $0x1b8] sm:$0xf]
        %v1268 = vld [vmem:[%s411 + $0x1bc] sm:$0xf]
        %v1269 = vld [vmem:[%s411 + $0x1c0] sm:$0xf]
        %v1270 = vld [vmem:[%s411 + $0x1c4] sm:$0xf]
        %v1271 = vld [vmem:[%s411 + $0x1c8] sm:$0xf]
        %v1272 = vld [vmem:[%s411 + $0x1cc] sm:$0xf]
        %v1273 = vld [vmem:[%s411 + $0x1d0] sm:$0xf]
        %v1274 = vld [vmem:[%s411 + $0x1d4] sm:$0xf]
        %v1275 = vld [vmem:[%s411 + $0x1d8] sm:$0xf]
        %v1276 = vld [vmem:[%s411 + $0x1dc] sm:$0xf]
        %v1277 = vld [vmem:[%s411 + $0x1e0] sm:$0xf]
        %v1278 = vld [vmem:[%s411 + $0x1e4] sm:$0xf]
        %v1279 = vld [vmem:[%s411 + $0x1e8] sm:$0xf]
        %v1280 = vld [vmem:[%s411 + $0x1ec] sm:$0xf]
        %v1281 = vld [vmem:[%s411 + $0x1f0] sm:$0xf]
        %v1282 = vld [vmem:[%s411 + $0x1f4] sm:$0xf]
        %v1283 = vld [vmem:[%s411 + $0x1f8] sm:$0xf]
        %v1284 = vld [vmem:[%s411 + $0x1fc] sm:$0xf]
        %v1285 = vld [vmem:[%s411 + $0x200] sm:$0xf]
        %v1286 = vld [vmem:[%s411 + $0x204] sm:$0xf]
        %v1287 = vld [vmem:[%s411 + $0x208] sm:$0xf]
        %v1288 = vld [vmem:[%s411 + $0x20c] sm:$0xf]
        %v1289 = vld [vmem:[%s411 + $0x210] sm:$0xf]
        %v1290 = vld [vmem:[%s411 + $0x214] sm:$0xf]
        %v1291 = vld [vmem:[%s411 + $0x218] sm:$0xf]
        %v1292 = vld [vmem:[%s411 + $0x21c] sm:$0xf]
        %v1293 = vld [vmem:[%s411 + $0x220] sm:$0xf]
        %v1294 = vld [vmem:[%s411 + $0x224] sm:$0xf]
        %v1295 = vld [vmem:[%s411 + $0x228] sm:$0xf]
        %v1296 = vld [vmem:[%s411 + $0x22c] sm:$0xf]
        %v1297 = vld [vmem:[%s411 + $0x230] sm:$0xf]
        %v1298 = vld [vmem:[%s411 + $0x234] sm:$0xf]
        %v1299 = vld [vmem:[%s411 + $0x238] sm:$0xf]
        %v1300 = vld [vmem:[%s411 + $0x23c] sm:$0xf]
        %v1445 = vunpack.c.l.b16 %v1157
        %v1446 = vunpack.c.l.b16 %v1158
        %v1447 = vunpack.c.l.b16 %v1159
        %v1448 = vunpack.c.l.b16 %v1160
        %v1449 = vunpack.c.l.b16 %v1161
        %v1450 = vunpack.c.l.b16 %v1162
        %v1451 = vunpack.c.l.b16 %v1163
        %v1452 = vunpack.c.l.b16 %v1164
        %v1453 = vunpack.c.l.b16 %v1165
        %v1454 = vunpack.c.l.b16 %v1166
        %v1455 = vunpack.c.l.b16 %v1167
        %v1456 = vunpack.c.l.b16 %v1168
        %v1457 = vunpack.c.l.b16 %v1169
        %v1458 = vunpack.c.l.b16 %v1170
        %v1459 = vunpack.c.l.b16 %v1171
        %v1460 = vunpack.c.l.b16 %v1172
        %v1461 = vunpack.c.l.b16 %v1173
        %v1462 = vunpack.c.l.b16 %v1174
        %v1463 = vunpack.c.l.b16 %v1175
        %v1464 = vunpack.c.l.b16 %v1176
        %v1465 = vunpack.c.l.b16 %v1177
        %v1466 = vunpack.c.l.b16 %v1178
        %v1467 = vunpack.c.l.b16 %v1179
        %v1468 = vunpack.c.l.b16 %v1180
        %v1469 = vunpack.c.l.b16 %v1181
        %v1470 = vunpack.c.l.b16 %v1182
        %v1471 = vunpack.c.l.b16 %v1183
        %v1472 = vunpack.c.l.b16 %v1184
        %v1473 = vunpack.c.l.b16 %v1185
        %v1474 = vunpack.c.l.b16 %v1186
        %v1475 = vunpack.c.l.b16 %v1187
        %v1476 = vunpack.c.l.b16 %v1188
        %v1477 = vunpack.c.l.b16 %v1189
        %v1478 = vunpack.c.l.b16 %v1190
        %v1479 = vunpack.c.l.b16 %v1191
        %v1480 = vunpack.c.l.b16 %v1192
        %v1481 = vunpack.c.l.b16 %v1193
        %v1482 = vunpack.c.l.b16 %v1194
        %v1483 = vunpack.c.l.b16 %v1195
        %v1484 = vunpack.c.l.b16 %v1196
        %v1485 = vunpack.c.l.b16 %v1197
        %v1486 = vunpack.c.l.b16 %v1198
        %v1487 = vunpack.c.l.b16 %v1199
        %v1488 = vunpack.c.l.b16 %v1200
        %v1489 = vunpack.c.l.b16 %v1201
        %v1490 = vunpack.c.l.b16 %v1202
        %v1491 = vunpack.c.l.b16 %v1203
        %v1492 = vunpack.c.l.b16 %v1204
        %v1493 = vunpack.c.l.b16 %v1205
        %v1494 = vunpack.c.l.b16 %v1206
        %v1495 = vunpack.c.l.b16 %v1207
        %v1496 = vunpack.c.l.b16 %v1208
        %v1497 = vunpack.c.l.b16 %v1209
        %v1498 = vunpack.c.l.b16 %v1210
        %v1499 = vunpack.c.l.b16 %v1211
        %v1500 = vunpack.c.l.b16 %v1212
        %v1501 = vunpack.c.l.b16 %v1213
        %v1502 = vunpack.c.l.b16 %v1214
        %v1503 = vunpack.c.l.b16 %v1215
        %v1504 = vunpack.c.l.b16 %v1216
        %v1505 = vunpack.c.l.b16 %v1217
        %v1506 = vunpack.c.l.b16 %v1218
        %v1507 = vunpack.c.l.b16 %v1219
        %v1508 = vunpack.c.l.b16 %v1220
        %v1509 = vunpack.c.l.b16 %v1221
        %v1510 = vunpack.c.l.b16 %v1222
        %v1511 = vunpack.c.l.b16 %v1223
        %v1512 = vunpack.c.l.b16 %v1224
        %v1513 = vunpack.c.l.b16 %v1225
        %v1514 = vunpack.c.l.b16 %v1226
        %v1515 = vunpack.c.l.b16 %v1227
        %v1516 = vunpack.c.l.b16 %v1228
        %v1517 = vunpack.c.l.b16 %v1229
        %v1518 = vunpack.c.l.b16 %v1230
        %v1519 = vunpack.c.l.b16 %v1231
        %v1520 = vunpack.c.l.b16 %v1232
        %v1521 = vunpack.c.l.b16 %v1233
        %v1522 = vunpack.c.l.b16 %v1234
        %v1523 = vunpack.c.l.b16 %v1235
        %v1524 = vunpack.c.l.b16 %v1236
        %v1525 = vunpack.c.l.b16 %v1237
        %v1526 = vunpack.c.l.b16 %v1238
        %v1527 = vunpack.c.l.b16 %v1239
        %v1528 = vunpack.c.l.b16 %v1240
        %v1529 = vunpack.c.l.b16 %v1241
        %v1530 = vunpack.c.l.b16 %v1242
        %v1531 = vunpack.c.l.b16 %v1243
        %v1532 = vunpack.c.l.b16 %v1244
        %v1533 = vunpack.c.l.b16 %v1245
        %v1534 = vunpack.c.l.b16 %v1246
        %v1535 = vunpack.c.l.b16 %v1247
        %v1536 = vunpack.c.l.b16 %v1248
        %v1537 = vunpack.c.l.b16 %v1249
        %v1538 = vunpack.c.l.b16 %v1250
        %v1539 = vunpack.c.l.b16 %v1251
        %v1540 = vunpack.c.l.b16 %v1252
        %v1541 = vunpack.c.l.b16 %v1253
        %v1542 = vunpack.c.l.b16 %v1254
        %v1543 = vunpack.c.l.b16 %v1255
        %v1544 = vunpack.c.l.b16 %v1256
        %v1545 = vunpack.c.l.b16 %v1257
        %v1546 = vunpack.c.l.b16 %v1258
        %v1547 = vunpack.c.l.b16 %v1259
        %v1548 = vunpack.c.l.b16 %v1260
        %v1549 = vunpack.c.l.b16 %v1261
        %v1550 = vunpack.c.l.b16 %v1262
        %v1551 = vunpack.c.l.b16 %v1263
        %v1552 = vunpack.c.l.b16 %v1264
        %v1553 = vunpack.c.l.b16 %v1265
        %v1554 = vunpack.c.l.b16 %v1266
        %v1555 = vunpack.c.l.b16 %v1267
        %v1556 = vunpack.c.l.b16 %v1268
        %v1557 = vunpack.c.l.b16 %v1269
        %v1558 = vunpack.c.l.b16 %v1270
        %v1559 = vunpack.c.l.b16 %v1271
        %v1560 = vunpack.c.l.b16 %v1272
        %v1561 = vunpack.c.l.b16 %v1273
        %v1562 = vunpack.c.l.b16 %v1274
        %v1563 = vunpack.c.l.b16 %v1275
        %v1564 = vunpack.c.l.b16 %v1276
        %v1565 = vunpack.c.l.b16 %v1277
        %v1566 = vunpack.c.l.b16 %v1278
        %v1567 = vunpack.c.l.b16 %v1279
        %v1568 = vunpack.c.l.b16 %v1280
        %v1569 = vunpack.c.l.b16 %v1281
        %v1570 = vunpack.c.l.b16 %v1282
        %v1571 = vunpack.c.l.b16 %v1283
        %v1572 = vunpack.c.l.b16 %v1284
        %v1573 = vunpack.c.l.b16 %v1285
        %v1574 = vunpack.c.l.b16 %v1286
        %v1575 = vunpack.c.l.b16 %v1287
        %v1576 = vunpack.c.l.b16 %v1288
        %v1577 = vunpack.c.l.b16 %v1289
        %v1578 = vunpack.c.l.b16 %v1290
        %v1579 = vunpack.c.l.b16 %v1291
        %v1580 = vunpack.c.l.b16 %v1292
        %v1581 = vunpack.c.l.b16 %v1293
        %v1582 = vunpack.c.l.b16 %v1294
        %v1583 = vunpack.c.l.b16 %v1295
        %v1584 = vunpack.c.l.b16 %v1296
        %v1585 = vunpack.c.l.b16 %v1297
        %v1586 = vunpack.c.l.b16 %v1298
        %v1587 = vunpack.c.l.b16 %v1299
        %v1588 = vunpack.c.l.b16 %v1300
        %v1589 = vpack.c.b16 %v1446, %v1445
        %v1590 = vpack.c.b16 %v1448, %v1447
        %v1591 = vpack.c.b16 %v1450, %v1449
        %v1592 = vpack.c.b16 %v1452, %v1451
        %v1593 = vpack.c.b16 %v1454, %v1453
        %v1594 = vpack.c.b16 %v1456, %v1455
        %v1595 = vpack.c.b16 %v1458, %v1457
        %v1596 = vpack.c.b16 %v1460, %v1459
        %v1597 = vpack.c.b16 %v1462, %v1461
        %v1598 = vpack.c.b16 %v1464, %v1463
        %v1599 = vpack.c.b16 %v1466, %v1465
        %v1600 = vpack.c.b16 %v1468, %v1467
        %v1601 = vpack.c.b16 %v1470, %v1469
        %v1602 = vpack.c.b16 %v1472, %v1471
        %v1603 = vpack.c.b16 %v1474, %v1473
        %v1604 = vpack.c.b16 %v1476, %v1475
        %v1605 = vpack.c.b16 %v1478, %v1477
        %v1606 = vpack.c.b16 %v1480, %v1479
        %v1607 = vpack.c.b16 %v1482, %v1481
        %v1608 = vpack.c.b16 %v1484, %v1483
        %v1609 = vpack.c.b16 %v1486, %v1485
        %v1610 = vpack.c.b16 %v1488, %v1487
        %v1611 = vpack.c.b16 %v1490, %v1489
        %v1612 = vpack.c.b16 %v1492, %v1491
        %v1613 = vpack.c.b16 %v1494, %v1493
        %v1614 = vpack.c.b16 %v1496, %v1495
        %v1615 = vpack.c.b16 %v1498, %v1497
        %v1616 = vpack.c.b16 %v1500, %v1499
        %v1617 = vpack.c.b16 %v1502, %v1501
        %v1618 = vpack.c.b16 %v1504, %v1503
        %v1619 = vpack.c.b16 %v1506, %v1505
        %v1620 = vpack.c.b16 %v1508, %v1507
        %v1621 = vpack.c.b16 %v1510, %v1509
        %v1622 = vpack.c.b16 %v1512, %v1511
        %v1623 = vpack.c.b16 %v1514, %v1513
        %v1624 = vpack.c.b16 %v1516, %v1515
        %v1625 = vpack.c.b16 %v1518, %v1517
        %v1626 = vpack.c.b16 %v1520, %v1519
        %v1627 = vpack.c.b16 %v1522, %v1521
        %v1628 = vpack.c.b16 %v1524, %v1523
        %v1629 = vpack.c.b16 %v1526, %v1525
        %v1630 = vpack.c.b16 %v1528, %v1527
        %v1631 = vpack.c.b16 %v1530, %v1529
        %v1632 = vpack.c.b16 %v1532, %v1531
        %v1633 = vpack.c.b16 %v1534, %v1533
        %v1634 = vpack.c.b16 %v1536, %v1535
        %v1635 = vpack.c.b16 %v1538, %v1537
        %v1636 = vpack.c.b16 %v1540, %v1539
        %v1637 = vpack.c.b16 %v1542, %v1541
        %v1638 = vpack.c.b16 %v1544, %v1543
        %v1639 = vpack.c.b16 %v1546, %v1545
        %v1640 = vpack.c.b16 %v1548, %v1547
        %v1641 = vpack.c.b16 %v1550, %v1549
        %v1642 = vpack.c.b16 %v1552, %v1551
        %v1643 = vpack.c.b16 %v1554, %v1553
        %v1644 = vpack.c.b16 %v1556, %v1555
        %v1645 = vpack.c.b16 %v1558, %v1557
        %v1646 = vpack.c.b16 %v1560, %v1559
        %v1647 = vpack.c.b16 %v1562, %v1561
        %v1648 = vpack.c.b16 %v1564, %v1563
        %v1649 = vpack.c.b16 %v1566, %v1565
        %v1650 = vpack.c.b16 %v1568, %v1567
        %v1651 = vpack.c.b16 %v1570, %v1569
        %v1652 = vpack.c.b16 %v1572, %v1571
        %v1653 = vpack.c.b16 %v1574, %v1573
        %v1654 = vpack.c.b16 %v1576, %v1575
        %v1655 = vpack.c.b16 %v1578, %v1577
        %v1656 = vpack.c.b16 %v1580, %v1579
        %v1657 = vpack.c.b16 %v1582, %v1581
        %v1658 = vpack.c.b16 %v1584, %v1583
        %v1659 = vpack.c.b16 %v1586, %v1585
        %v1660 = vpack.c.b16 %v1588, %v1587
        %1733 = vmatprep.subr.bf16.mxu0 0
        %1734 = vmatpush1.bf16.msra.mxu0 %v1589
        %1735 = vmatprep.subr.bf16.mxu0 0
        %1736 = vmatpush1.bf16.msra.mxu0 %v1590
        %1737 = vmatprep.subr.bf16.mxu0 0
        %1738 = vmatpush1.bf16.msra.mxu0 %v1591
        %1739 = vmatprep.subr.bf16.mxu0 0
        %1740 = vmatpush1.bf16.msra.mxu0 %v1592
        %1741 = vmatprep.subr.bf16.mxu0 0
        %1742 = vmatpush1.bf16.msra.mxu0 %v1593
        %1743 = vmatprep.subr.bf16.mxu0 0
        %1744 = vmatpush1.bf16.msra.mxu0 %v1594
        %1745 = vmatprep.subr.bf16.mxu0 0
        %1746 = vmatpush1.bf16.msra.mxu0 %v1595
        %1747 = vmatprep.subr.bf16.mxu0 0
        %1748 = vmatpush1.bf16.msra.mxu0 %v1596
        %1749 = vmatprep.subr.bf16.mxu0 0
        %1750 = vmatpush1.bf16.msra.mxu0 %v1597
        %1751 = vmatprep.subr.bf16.mxu0 0
        %1752 = vmatpush1.bf16.msra.mxu0 %v1598
        %1753 = vmatprep.subr.bf16.mxu0 0
        %1754 = vmatpush1.bf16.msra.mxu0 %v1599
        %1755 = vmatprep.subr.bf16.mxu0 0
        %1756 = vmatpush1.bf16.msra.mxu0 %v1600
        %1757 = vmatprep.subr.bf16.mxu0 0
        %1758 = vmatpush1.bf16.msra.mxu0 %v1601
        %1759 = vmatprep.subr.bf16.mxu0 0
        %1760 = vmatpush1.bf16.msra.mxu0 %v1602
        %1761 = vmatprep.subr.bf16.mxu0 0
        %1762 = vmatpush1.bf16.msra.mxu0 %v1603
        %1763 = vmatprep.subr.bf16.mxu0 0
        %1764 = vmatpush1.bf16.msra.mxu0 %v1604
        %1765 = vmatprep.mubr.bf16.mxu0 %v1021
        %1766 = vmatmul.mubr.bf16.gmra.mrb[0].mxu0 %v1005
        %v1767 = vpop.f32.mrb[0].mxu0
        %v1768 = vadd.f32 0.0, %v1767
        %v1769 = vpop.f32.mrb[0].mxu0
        %v1770 = vpop.f32.mrb[0].mxu0
        %v1771 = vadd.f32 0.0, %v1770
        %v1772 = vpop.f32.mrb[0].mxu0
        %1773 = vmatprep.mubr.bf16.mxu0 %v1022
        %1774 = vmatmul.mubr.bf16.gmra.mrb[0].mxu0 %v1006
        %v1775 = vpop.f32.mrb[0].mxu0
        %v1776 = vadd.f32 0.0, %v1775
        %v1777 = vpop.f32.mrb[0].mxu0
        %v1778 = vpop.f32.mrb[0].mxu0
        %v1779 = vadd.f32 0.0, %v1778
        %v1780 = vpop.f32.mrb[0].mxu0
        %1781 = vmatprep.mubr.bf16.mxu0 %v1023
        %1782 = vmatmul.mubr.bf16.gmra.mrb[0].mxu0 %v1007
        %v1783 = vpop.f32.mrb[0].mxu0
        %v1784 = vadd.f32 0.0, %v1783
        %v1785 = vpop.f32.mrb[0].mxu0
        %v1786 = vpop.f32.mrb[0].mxu0
        %v1787 = vadd.f32 0.0, %v1786
        %v1788 = vpop.f32.mrb[0].mxu0
        %1789 = vmatprep.mubr.bf16.mxu0 %v1024
        %1790 = vmatmul.mubr.bf16.gmra.mrb[0].mxu0 %v1008
        %v1791 = vpop.f32.mrb[0].mxu0
        %v1792 = vadd.f32 0.0, %v1791
        %v1793 = vpop.f32.mrb[0].mxu0
        %v1794 = vpop.f32.mrb[0].mxu0
        %v1795 = vadd.f32 0.0, %v1794
        %v1796 = vpop.f32.mrb[0].mxu0
        %1797 = vdwg.mxu0
        %1798 = vmatprep.subr.bf16.mxu0 0
        %1799 = vmatpush1.bf16.msra.mxu0 %v1605
        %1800 = vmatprep.subr.bf16.mxu0 0
        %1801 = vmatpush1.bf16.msra.mxu0 %v1606
        %1802 = vmatprep.subr.bf16.mxu0 0
        %1803 = vmatpush1.bf16.msra.mxu0 %v1607
        %1804 = vmatprep.subr.bf16.mxu0 0
        %1805 = vmatpush1.bf16.msra.mxu0 %v1608
        %1806 = vmatprep.subr.bf16.mxu0 0
        %1807 = vmatpush1.bf16.msra.mxu0 %v1609
        %1808 = vmatprep.subr.bf16.mxu0 0
        %1809 = vmatpush1.bf16.msra.mxu0 %v1610
        %1810 = vmatprep.subr.bf16.mxu0 0
        %1811 = vmatpush1.bf16.msra.mxu0 %v1611
        %1812 = vmatprep.subr.bf16.mxu0 0
        %1813 = vmatpush1.bf16.msra.mxu0 %v1612
        %1814 = vmatprep.subr.bf16.mxu0 0
        %1815 = vmatpush1.bf16.msra.mxu0 %v1613
        %1816 = vmatprep.subr.bf16.mxu0 0
        %1817 = vmatpush1.bf16.msra.mxu0 %v1614
        %1818 = vmatprep.subr.bf16.mxu0 0
        %1819 = vmatpush1.bf16.msra.mxu0 %v1615
        %1820 = vmatprep.subr.bf16.mxu0 0
        %1821 = vmatpush1.bf16.msra.mxu0 %v1616
        %1822 = vmatprep.subr.bf16.mxu0 0
        %1823 = vmatpush1.bf16.msra.mxu0 %v1617
        %1824 = vmatprep.subr.bf16.mxu0 0
        %1825 = vmatpush1.bf16.msra.mxu0 %v1618
        %1826 = vmatprep.subr.bf16.mxu0 0
        %1827 = vmatpush1.bf16.msra.mxu0 %v1619
        %1828 = vmatprep.subr.bf16.mxu0 0
        %1829 = vmatpush1.bf16.msra.mxu0 %v1620
        %1830 = vmatprep.mubr.bf16.mxu0 %v1061
        %1831 = vmatmul.mubr.bf16.gmra.mrb[0].mxu0 %v1037
        %v1832 = vpop.f32.mrb[0].mxu0
        %v1833 = vadd.f32 %v1768, %v1832
        %v1834 = vpop.f32.mrb[0].mxu0
        %v1835 = vpop.f32.mrb[0].mxu0
        %v1836 = vadd.f32 %v1771, %v1835
        %v1837 = vpop.f32.mrb[0].mxu0
        %1838 = vmatprep.mubr.bf16.mxu0 %v1062
        %1839 = vmatmul.mubr.bf16.gmra.mrb[0].mxu0 %v1038
        %v1840 = vpop.f32.mrb[0].mxu0
        %v1841 = vadd.f32 %v1776, %v1840
        %v1842 = vpop.f32.mrb[0].mxu0
        %v1843 = vpop.f32.mrb[0].mxu0
        %v1844 = vadd.f32 %v1779, %v1843
        %v1845 = vpop.f32.mrb[0].mxu0
        %1846 = vmatprep.mubr.bf16.mxu0 %v1063
        %1847 = vmatmul.mubr.bf16.gmra.mrb[0].mxu0 %v1039
        %v1848 = vpop.f32.mrb[0].mxu0
        %v1849 = vadd.f32 %v1784, %v1848
        %v1850 = vpop.f32.mrb[0].mxu0
        %v1851 = vpop.f32.mrb[0].mxu0
        %v1852 = vadd.f32 %v1787, %v1851
        %v1853 = vpop.f32.mrb[0].mxu0
        %1854 = vmatprep.mubr.bf16.mxu0 %v1064
        %1855 = vmatmul.mubr.bf16.gmra.mrb[0].mxu0 %v1040
        %v1856 = vpop.f32.mrb[0].mxu0
        %v1857 = vadd.f32 %v1792, %v1856
        %v1858 = vpop.f32.mrb[0].mxu0
        %v1859 = vpop.f32.mrb[0].mxu0
        %v1860 = vadd.f32 %v1795, %v1859
        %v1861 = vpop.f32.mrb[0].mxu0
        %1862 = vdwg.mxu0
        %1863 = vmatprep.subr.bf16.mxu0 0
        %1864 = vmatpush1.bf16.msra.mxu0 %v1621
        %1865 = vmatprep.subr.bf16.mxu0 0
        %1866 = vmatpush1.bf16.msra.mxu0 %v1622
        %1867 = vmatprep.subr.bf16.mxu0 0
        %1868 = vmatpush1.bf16.msra.mxu0 %v1623
        %1869 = vmatprep.subr.bf16.mxu0 0
        %1870 = vmatpush1.bf16.msra.mxu0 %v1624
        %1871 = vmatprep.subr.bf16.mxu0 0
        %1872 = vmatpush1.bf16.msra.mxu0 %v1625
        %1873 = vmatprep.subr.bf16.mxu0 0
        %1874 = vmatpush1.bf16.msra.mxu0 %v1626
        %1875 = vmatprep.subr.bf16.mxu0 0
        %1876 = vmatpush1.bf16.msra.mxu0 %v1627
        %1877 = vmatprep.subr.bf16.mxu0 0
        %1878 = vmatpush1.bf16.msra.mxu0 %v1628
        %1879 = vmatprep.subr.bf16.mxu0 0
        %1880 = vmatpush1.bf16.msra.mxu0 %v1629
        %1881 = vmatprep.subr.bf16.mxu0 0
        %1882 = vmatpush1.bf16.msra.mxu0 %v1630
        %1883 = vmatprep.subr.bf16.mxu0 0
        %1884 = vmatpush1.bf16.msra.mxu0 %v1631
        %1885 = vmatprep.subr.bf16.mxu0 0
        %1886 = vmatpush1.bf16.msra.mxu0 %v1632
        %1887 = vmatprep.subr.bf16.mxu0 0
        %1888 = vmatpush1.bf16.msra.mxu0 %v1633
        %1889 = vmatprep.subr.bf16.mxu0 0
        %1890 = vmatpush1.bf16.msra.mxu0 %v1634
        %1891 = vmatprep.subr.bf16.mxu0 0
        %1892 = vmatpush1.bf16.msra.mxu0 %v1635
        %1893 = vmatprep.subr.bf16.mxu0 0
        %1894 = vmatpush1.bf16.msra.mxu0 %v1636
        %1895 = vmatprep.mubr.bf16.mxu0 %v1093
        %1896 = vmatmul.mubr.bf16.gmra.mrb[0].mxu0 %v1077
        %v1897 = vpop.f32.mrb[0].mxu0
        %v1898 = vadd.f32 %v1833, %v1897
        %v1899 = vpop.f32.mrb[0].mxu0
        %v1900 = vpop.f32.mrb[0].mxu0
        %v1901 = vadd.f32 %v1836, %v1900
        %v1902 = vpop.f32.mrb[0].mxu0
        %1903 = vmatprep.mubr.bf16.mxu0 %v1094
        %1904 = vmatmul.mubr.bf16.gmra.mrb[0].mxu0 %v1078
        %v1905 = vpop.f32.mrb[0].mxu0
        %v1906 = vadd.f32 %v1841, %v1905
        %v1907 = vpop.f32.mrb[0].mxu0
        %v1908 = vpop.f32.mrb[0].mxu0
        %v1909 = vadd.f32 %v1844, %v1908
        %v1910 = vpop.f32.mrb[0].mxu0
        %1911 = vmatprep.mubr.bf16.mxu0 %v1095
        %1912 = vmatmul.mubr.bf16.gmra.mrb[0].mxu0 %v1079
        %v1913 = vpop.f32.mrb[0].mxu0
        %v1914 = vadd.f32 %v1849, %v1913
        %v1915 = vpop.f32.mrb[0].mxu0
        %v1916 = vpop.f32.mrb[0].mxu0
        %v1917 = vadd.f32 %v1852, %v1916
        %v1918 = vpop.f32.mrb[0].mxu0
        %1919 = vmatprep.mubr.bf16.mxu0 %v1096
        %1920 = vmatmul.mubr.bf16.gmra.mrb[0].mxu0 %v1080
        %v1921 = vpop.f32.mrb[0].mxu0
        %v1922 = vadd.f32 %v1857, %v1921
        %v1923 = vpop.f32.mrb[0].mxu0
        %v1924 = vpop.f32.mrb[0].mxu0
        %v1925 = vadd.f32 %v1860, %v1924
        %v1926 = vpop.f32.mrb[0].mxu0
        %1927 = vdwg.mxu0
        %1928 = vmatprep.subr.bf16.mxu0 0
        %1929 = vmatpush1.bf16.msra.mxu0 %v1637
        %1930 = vmatprep.subr.bf16.mxu0 0
        %1931 = vmatpush1.bf16.msra.mxu0 %v1638
        %1932 = vmatprep.subr.bf16.mxu0 0
        %1933 = vmatpush1.bf16.msra.mxu0 %v1639
        %1934 = vmatprep.subr.bf16.mxu0 0
        %1935 = vmatpush1.bf16.msra.mxu0 %v1640
        %1936 = vmatprep.subr.bf16.mxu0 0
        %1937 = vmatpush1.bf16.msra.mxu0 %v1641
        %1938 = vmatprep.subr.bf16.mxu0 0
        %1939 = vmatpush1.bf16.msra.mxu0 %v1642
        %1940 = vmatprep.subr.bf16.mxu0 0
        %1941 = vmatpush1.bf16.msra.mxu0 %v1643
        %1942 = vmatprep.subr.bf16.mxu0 0
        %1943 = vmatpush1.bf16.msra.mxu0 %v1644
        %1944 = vmatprep.subr.bf16.mxu0 0
        %1945 = vmatpush1.bf16.msra.mxu0 %v1645
        %1946 = vmatprep.subr.bf16.mxu0 0
        %1947 = vmatpush1.bf16.msra.mxu0 %v1646
        %1948 = vmatprep.subr.bf16.mxu0 0
        %1949 = vmatpush1.bf16.msra.mxu0 %v1647
        %1950 = vmatprep.subr.bf16.mxu0 0
        %1951 = vmatpush1.bf16.msra.mxu0 %v1648
        %1952 = vmatprep.subr.bf16.mxu0 0
        %1953 = vmatpush1.bf16.msra.mxu0 %v1649
        %1954 = vmatprep.subr.bf16.mxu0 0
        %1955 = vmatpush1.bf16.msra.mxu0 %v1650
        %1956 = vmatprep.subr.bf16.mxu0 0
        %1957 = vmatpush1.bf16.msra.mxu0 %v1651
        %1958 = vmatprep.subr.bf16.mxu0 0
        %1959 = vmatpush1.bf16.msra.mxu0 %v1652
        %1960 = vmatprep.mubr.bf16.mxu0 %v1133
        %1961 = vmatmul.mubr.bf16.gmra.mrb[0].mxu0 %v1117
        %v1962 = vpop.f32.mrb[0].mxu0
        %v1963 = vadd.f32 %v1898, %v1962
        %v1964 = vpop.f32.mrb[0].mxu0
        %v1965 = vpop.f32.mrb[0].mxu0
        %v1966 = vadd.f32 %v1901, %v1965
        %v1967 = vpop.f32.mrb[0].mxu0
        %1968 = vmatprep.mubr.bf16.mxu0 %v1134
        %1969 = vmatmul.mubr.bf16.gmra.mrb[0].mxu0 %v1118
        %v1970 = vpop.f32.mrb[0].mxu0
        %v1971 = vadd.f32 %v1906, %v1970
        %v1972 = vpop.f32.mrb[0].mxu0
        %v1973 = vpop.f32.mrb[0].mxu0
        %v1974 = vadd.f32 %v1909, %v1973
        %v1975 = vpop.f32.mrb[0].mxu0
        %1976 = vmatprep.mubr.bf16.mxu0 %v1135
        %1977 = vmatmul.mubr.bf16.gmra.mrb[0].mxu0 %v1119
        %v1978 = vpop.f32.mrb[0].mxu0
        %v1979 = vadd.f32 %v1914, %v1978
        %v1980 = vpop.f32.mrb[0].mxu0
        %v1981 = vpop.f32.mrb[0].mxu0
        %v1982 = vadd.f32 %v1917, %v1981
        %v1983 = vpop.f32.mrb[0].mxu0
        %1984 = vmatprep.mubr.bf16.mxu0 %v1136
        %1985 = vmatmul.mubr.bf16.gmra.mrb[0].mxu0 %v1120
        %v1986 = vpop.f32.mrb[0].mxu0
        %v1987 = vadd.f32 %v1922, %v1986
        %v1988 = vpop.f32.mrb[0].mxu0
        %v1989 = vpop.f32.mrb[0].mxu0
        %v1990 = vadd.f32 %v1925, %v1989
        %v1991 = vpop.f32.mrb[0].mxu0
        %1992 = vdwg.mxu0
        %1993 = vmatprep.subr.bf16.mxu0 0
        %1994 = vmatpush1.bf16.msra.mxu0 %v1653
        %1995 = vmatprep.subr.bf16.mxu0 0
        %1996 = vmatpush1.bf16.msra.mxu0 %v1654
        %1997 = vmatprep.subr.bf16.mxu0 0
        %1998 = vmatpush1.bf16.msra.mxu0 %v1655
        %1999 = vmatprep.subr.bf16.mxu0 0
        %2000 = vmatpush1.bf16.msra.mxu0 %v1656
        %2001 = vmatprep.subr.bf16.mxu0 0
        %2002 = vmatpush1.bf16.msra.mxu0 %v1657
        %2003 = vmatprep.subr.bf16.mxu0 0
        %2004 = vmatpush1.bf16.msra.mxu0 %v1658
        %2005 = vmatprep.subr.bf16.mxu0 0
        %2006 = vmatpush1.bf16.msra.mxu0 %v1659
        %2007 = vmatprep.subr.bf16.mxu0 0
        %2008 = vmatpush1.bf16.msra.mxu0 %v1660
        %2009 = vmatprep.subr.bf16.mxu0 0
        %2010 = vmatpush1.bf16.msra.mxu0 0
        %2011 = vmatprep.subr.bf16.mxu0 0
        %2012 = vmatpush1.bf16.msra.mxu0 0
        %2013 = vmatprep.subr.bf16.mxu0 0
        %2014 = vmatpush1.bf16.msra.mxu0 0
        %2015 = vmatprep.subr.bf16.mxu0 0
        %2016 = vmatpush1.bf16.msra.mxu0 0
        %2017 = vmatprep.subr.bf16.mxu0 0
        %2018 = vmatpush1.bf16.msra.mxu0 0
        %2019 = vmatprep.subr.bf16.mxu0 0
        %2020 = vmatpush1.bf16.msra.mxu0 0
        %2021 = vmatprep.subr.bf16.mxu0 0
        %2022 = vmatpush1.bf16.msra.mxu0 0
        %2023 = vmatprep.subr.bf16.mxu0 0
        %2024 = vmatpush1.bf16.msra.mxu0 0
        %2025 = vmatprep.mubr.bf16.mxu0 0
        %2026 = vmatmul.mubr.bf16.gmra.mrb[0].mxu0 %v1149
        %v2027 = vpop.f32.mrb[0].mxu0
        %v2028 = vadd.f32 %v1963, %v2027
        %v2029 = vpop.f32.mrb[0].mxu0
        %v2030 = vpop.f32.mrb[0].mxu0
        %v2031 = vadd.f32 %v1966, %v2030
        %v2032 = vpop.f32.mrb[0].mxu0
        %2033 = vmatprep.mubr.bf16.mxu0 0
        %2034 = vmatmul.mubr.bf16.gmra.mrb[0].mxu0 %v1150
        %v2035 = vpop.f32.mrb[0].mxu0
        %v2036 = vadd.f32 %v1971, %v2035
        %v2037 = vpop.f32.mrb[0].mxu0
        %v2038 = vpop.f32.mrb[0].mxu0
        %v2039 = vadd.f32 %v1974, %v2038
        %v2040 = vpop.f32.mrb[0].mxu0
        %2041 = vmatprep.mubr.bf16.mxu0 0
        %2042 = vmatmul.mubr.bf16.gmra.mrb[0].mxu0 %v1151
        %v2043 = vpop.f32.mrb[0].mxu0
        %v2044 = vadd.f32 %v1979, %v2043
        %v2045 = vpop.f32.mrb[0].mxu0
        %v2046 = vpop.f32.mrb[0].mxu0
        %v2047 = vadd.f32 %v1982, %v2046
        %v2048 = vpop.f32.mrb[0].mxu0
        %2049 = vmatprep.mubr.bf16.mxu0 0
        %2050 = vmatmul.mubr.bf16.gmra.mrb[0].mxu0 %v1152
        %v2051 = vpop.f32.mrb[0].mxu0
        %v2052 = vadd.f32 %v1987, %v2051
        %v2053 = vpop.f32.mrb[0].mxu0
        %v2054 = vpop.f32.mrb[0].mxu0
        %v2055 = vadd.f32 %v1990, %v2054
        %v2056 = vpop.f32.mrb[0].mxu0
        %2057 = vdwg.mxu0
        %v2058 = vld [vmem:[%s418] sm:$0x1]
        %v2060 = vlaneseq
        %v2061 = vshrl.u32 %v2060, 7
        %v2062 = vsub.s32 0, %v2061
        %v2063 = vrot.slane %v2058, %v2062
        %v2065 = vmul.f32 %v2028, %v2063
        %v2066 = vmul.f32 %v2031, %v2063
        %v2067 = vmul.f32 %v2036, %v2063
        %v2068 = vmul.f32 %v2039, %v2063
        %v2069 = vmul.f32 %v2044, %v2063
        %v2070 = vmul.f32 %v2047, %v2063
        %v2071 = vmul.f32 %v2052, %v2063
        %v2072 = vmul.f32 %v2055, %v2063
        %v2073 = vld [vmem:[%s421] sm:$0x1]
        %v2075 = vlaneseq
        %v2076 = vshrl.u32 %v2075, 7
        %v2077 = vsub.s32 0, %v2076
        %v2078 = vrot.slane %v2073, %v2077
        %v2080 = vadd.f32 %v2065, %v2078
        %v2081 = vadd.f32 %v2066, %v2078
        %v2082 = vadd.f32 %v2067, %v2078
        %v2083 = vadd.f32 %v2068, %v2078
        %v2084 = vadd.f32 %v2069, %v2078
        %v2085 = vadd.f32 %v2070, %v2078
        %v2086 = vadd.f32 %v2071, %v2078
        %v2087 = vadd.f32 %v2072, %v2078
        %v2088 = vld [vmem:[%s407] sm:$0xf]
        %v2089 = vld [vmem:[%s407 + $0x8] sm:$0xf]
        %v2090 = vld [vmem:[%s407 + $0x10] sm:$0xf]
        %v2091 = vld [vmem:[%s407 + $0x18] sm:$0xf]
        %v2092 = vld [vmem:[%s407 + $0x20] sm:$0xf]
        %v2093 = vld [vmem:[%s407 + $0x28] sm:$0xf]
        %v2094 = vld [vmem:[%s407 + $0x30] sm:$0xf]
        %v2095 = vld [vmem:[%s407 + $0x38] sm:$0xf]
        %v2096 = vld [vmem:[%s415] sm:$0xf]
        %v2105 = vunpack.c.l.b16 %v2088
        %v2106 = vunpack.c.l.b16 %v2089
        %v2107 = vunpack.c.l.b16 %v2090
        %v2108 = vunpack.c.l.b16 %v2091
        %v2109 = vunpack.c.l.b16 %v2092
        %v2110 = vunpack.c.l.b16 %v2093
        %v2111 = vunpack.c.l.b16 %v2094
        %v2112 = vunpack.c.l.b16 %v2095
        %v2113 = vpack.c.b16 %v2106, %v2105
        %v2114 = vpack.c.b16 %v2108, %v2107
        %v2115 = vpack.c.b16 %v2110, %v2109
        %v2116 = vpack.c.b16 %v2112, %v2111
        %vm2117 = vcmask 64512
        %v2119 = vsel %vm2117, %v2113, 0
        %v2122 = vsel %vm2117, %v2114, 0
        %v2125 = vsel %vm2117, %v2115, 0
        %v2128 = vsel %vm2117, %v2116, 0
        %vm2130 = vcmask 1043456
        %v2132 = vsel %vm2130, %v2096, 0
        %2134 = vmatprep.subr.bf16.mxu0 0
        %2135 = vmatpush1.bf16.msra.mxu0 %v2132
        %2136 = vmatprep.subr.bf16.mxu0 0
        %2137 = vmatpush1.bf16.msra.mxu0 0
        %2138 = vmatprep.subr.bf16.mxu0 0
        %2139 = vmatpush1.bf16.msra.mxu0 0
        %2140 = vmatprep.subr.bf16.mxu0 0
        %2141 = vmatpush1.bf16.msra.mxu0 0
        %2142 = vmatprep.subr.bf16.mxu0 0
        %2143 = vmatpush1.bf16.msra.mxu0 0
        %2144 = vmatprep.subr.bf16.mxu0 0
        %2145 = vmatpush1.bf16.msra.mxu0 0
        %2146 = vmatprep.subr.bf16.mxu0 0
        %2147 = vmatpush1.bf16.msra.mxu0 0
        %2148 = vmatprep.subr.bf16.mxu0 0
        %2149 = vmatpush1.bf16.msra.mxu0 0
        %2150 = vmatprep.subr.bf16.mxu0 0
        %2151 = vmatpush1.bf16.msra.mxu0 0
        %2152 = vmatprep.subr.bf16.mxu0 0
        %2153 = vmatpush1.bf16.msra.mxu0 0
        %2154 = vmatprep.subr.bf16.mxu0 0
        %2155 = vmatpush1.bf16.msra.mxu0 0
        %2156 = vmatprep.subr.bf16.mxu0 0
        %2157 = vmatpush1.bf16.msra.mxu0 0
        %2158 = vmatprep.subr.bf16.mxu0 0
        %2159 = vmatpush1.bf16.msra.mxu0 0
        %2160 = vmatprep.subr.bf16.mxu0 0
        %2161 = vmatpush1.bf16.msra.mxu0 0
        %2162 = vmatprep.subr.bf16.mxu0 0
        %2163 = vmatpush1.bf16.msra.mxu0 0
        %2164 = vmatprep.subr.bf16.mxu0 0
        %2165 = vmatpush1.bf16.msra.mxu0 0
        %2166 = vmatprep.mubr.bf16.mxu0 0
        %2167 = vmatmul.mubr.bf16.gmra.mrb[0].mxu0 %v2119
        %v2168 = vpop.f32.mrb[0].mxu0
        %v2169 = vadd.f32 0.0, %v2168
        %v2170 = vpop.f32.mrb[0].mxu0
        %v2171 = vpop.f32.mrb[0].mxu0
        %v2172 = vadd.f32 0.0, %v2171
        %v2173 = vpop.f32.mrb[0].mxu0
        %2174 = vmatprep.mubr.bf16.mxu0 0
        %2175 = vmatmul.mubr.bf16.gmra.mrb[0].mxu0 %v2122
        %v2176 = vpop.f32.mrb[0].mxu0
        %v2177 = vadd.f32 0.0, %v2176
        %v2178 = vpop.f32.mrb[0].mxu0
        %v2179 = vpop.f32.mrb[0].mxu0
        %v2180 = vadd.f32 0.0, %v2179
        %v2181 = vpop.f32.mrb[0].mxu0
        %2182 = vmatprep.mubr.bf16.mxu0 0
        %2183 = vmatmul.mubr.bf16.gmra.mrb[0].mxu0 %v2125
        %v2184 = vpop.f32.mrb[0].mxu0
        %v2185 = vadd.f32 0.0, %v2184
        %v2186 = vpop.f32.mrb[0].mxu0
        %v2187 = vpop.f32.mrb[0].mxu0
        %v2188 = vadd.f32 0.0, %v2187
        %v2189 = vpop.f32.mrb[0].mxu0
        %2190 = vmatprep.mubr.bf16.mxu0 0
        %2191 = vmatmul.mubr.bf16.gmra.mrb[0].mxu0 %v2128
        %v2192 = vpop.f32.mrb[0].mxu0
        %v2193 = vadd.f32 0.0, %v2192
        %v2194 = vpop.f32.mrb[0].mxu0
        %v2195 = vpop.f32.mrb[0].mxu0
        %v2196 = vadd.f32 0.0, %v2195
        %v2197 = vpop.f32.mrb[0].mxu0
        %2198 = vdwg.mxu0
        %v2199 = vld [vmem:[%s424] sm:$0x1]
        %v2201 = vlaneseq
        %v2202 = vshrl.u32 %v2201, 7
        %v2203 = vsub.s32 0, %v2202
        %v2204 = vrot.slane %v2199, %v2203
        %v2206 = vmul.f32 %v2169, %v2204
        %v2207 = vmul.f32 %v2172, %v2204
        %v2208 = vmul.f32 %v2177, %v2204
        %v2209 = vmul.f32 %v2180, %v2204
        %v2210 = vmul.f32 %v2185, %v2204
        %v2211 = vmul.f32 %v2188, %v2204
        %v2212 = vmul.f32 %v2193, %v2204
        %v2213 = vmul.f32 %v2196, %v2204
        %v2214 = vld [vmem:[%s427] sm:$0x1]
        %v2216 = vlaneseq
        %v2217 = vshrl.u32 %v2216, 7
        %v2218 = vsub.s32 0, %v2217
        %v2219 = vrot.slane %v2214, %v2218
        %v2221 = vadd.f32 %v2206, %v2219
        %v2222 = vadd.f32 %v2207, %v2219
        %v2223 = vadd.f32 %v2208, %v2219
        %v2224 = vadd.f32 %v2209, %v2219
        %v2225 = vadd.f32 %v2210, %v2219
        %v2226 = vadd.f32 %v2211, %v2219
        %v2227 = vadd.f32 %v2212, %v2219
        %v2228 = vadd.f32 %v2213, %v2219
        %v2229 = vadd.f32 %v2080, %v2221
        %v2230 = vadd.f32 %v2081, %v2222
        %v2231 = vadd.f32 %v2082, %v2223
        %v2232 = vadd.f32 %v2083, %v2224
        %v2233 = vadd.f32 %v2084, %v2225
        %v2234 = vadd.f32 %v2085, %v2226
        %v2235 = vadd.f32 %v2086, %v2227
        %v2236 = vadd.f32 %v2087, %v2228
        %v2237 = vmax.f32 %v2229, 0.0
        %v2238 = vmax.f32 %v2230, 0.0
        %v2239 = vmax.f32 %v2231, 0.0
        %v2240 = vmax.f32 %v2232, 0.0
        %v2241 = vmax.f32 %v2233, 0.0
        %v2242 = vmax.f32 %v2234, 0.0
        %v2243 = vmax.f32 %v2235, 0.0
        %v2244 = vmax.f32 %v2236, 0.0
        %v2245 = vpack.c.bf16 %v2238, %v2237
        %v2246 = vpack.c.bf16 %v2240, %v2239
        %v2247 = vpack.c.bf16 %v2242, %v2241
        %v2248 = vpack.c.bf16 %v2244, %v2243
        %v2253 = vunpack.c.l.b16 %v2245
        %v2254 = vunpack.c.h.b16 %v2245
        %v2255 = vunpack.c.l.b16 %v2246
        %v2256 = vunpack.c.h.b16 %v2246
        %v2257 = vunpack.c.l.b16 %v2247
        %v2258 = vunpack.c.h.b16 %v2247
        %v2259 = vunpack.c.l.b16 %v2248
        %v2260 = vunpack.c.h.b16 %v2248
        %v2261 = vpack.c.b16 %v2253, %v2253
        %v2262 = vpack.c.b16 %v2254, %v2254
        %v2263 = vpack.c.b16 %v2255, %v2255
        %v2264 = vpack.c.b16 %v2256, %v2256
        %v2265 = vpack.c.b16 %v2257, %v2257
        %v2266 = vpack.c.b16 %v2258, %v2258
        %v2267 = vpack.c.b16 %v2259, %v2259
        %v2268 = vpack.c.b16 %v2260, %v2260
        %2277 = vst [vmem:[%s397] sm:$0xf] %v2261
        %2278 = vst [vmem:[%s397 + $0x4] sm:$0xf] %v2262
        %2279 = vst [vmem:[%s397 + $0x8] sm:$0xf] %v2263
        %2280 = vst [vmem:[%s397 + $0xc] sm:$0xf] %v2264
        %2281 = vst [vmem:[%s397 + $0x10] sm:$0xf] %v2265
        %2282 = vst [vmem:[%s397 + $0x14] sm:$0xf] %v2266
        %2283 = vst [vmem:[%s397 + $0x18] sm:$0xf] %v2267
        %2284 = vst [vmem:[%s397 + $0x1c] sm:$0xf] %v2268
        %s2285 = sand.u32 %s252, 1
        %s2286 = scalar_lea.sflag [#allocation3], %s2285
        %s2287 = sand.u32 %s252, 1
        %s2288 = smul.addr %s2287, 32
        %s2289 = scalar_lea.vmem [#allocation2], %s2288
        // Predicated region
        $region53: #{residual_block_forward.3} parent=51 // pred_check
          %p2290 = pneg %p262
        $region54: #{residual_block_forward.3} parent=51 // pred_check_branch
          %2292 = sbr.rel (%p2290) target = $region56
        $region55: #{residual_block_forward.3} parent=51 // pred_region
          %s2294 = ssub.s32 512, 512
          %2295 = vsyncadd %s2286, %s2294
          %s2296 = smul.addr %s27, 8
          %s2297 = sadd.s32 %s26, %s2296
          %s2298 = smul.addr %s2297, 64
          %s2299 = scalar_lea.hbm %s8, %s2298
          %s2300 = sshll.u32 %s2289, 4
          %s2301 = int_to_ptr.vmem [resolvable:$true] %s2300
          %2306 = dma.vmem_to_hbm [thread:$0]  %s2301, 512, %s2299, %s2286, 64, 64, 4
        $region56: #{residual_block_forward.3} parent=51 // pred_fallthru
          _
      $region52: #{residual_block_forward.3} parent=5 // pred_fallthru
        _
      %p2307 = scmp.le.s32.totalorder 2, %s17
      // Predicated region
      $region57: #{residual_block_forward.3} parent=5 // pred_check
        %p2308 = pneg %p2307
      $region58: #{residual_block_forward.3} parent=5 // pred_check_branch
        %2310 = sbr.rel (%p2308) target = $region60
      $region59: #{residual_block_forward.3} parent=5 // pred_region
        %s2311 = ssub.s32 %s17, 2
        // Predicated region
        $region61: #{residual_block_forward.3} parent=59 // pred_check
          %p2312 = pneg %p268
        $region62: #{residual_block_forward.3} parent=59 // pred_check_branch
          %2314 = sbr.rel (%p2312) target = $region64
        $region63: #{residual_block_forward.3} parent=59 // pred_region
          %s2315 = sand.u32 %s253, 1
          %s2316 = scalar_lea.sflag [#allocation3], %s2315
          %s2317 = sand.u32 %s253, 1
          %s2318 = smul.addr %s2317, 32
          %s2319 = scalar_lea.vmem [#allocation2], %s2318
          %2320 = dma.done %s2316, 512
        $region64: #{residual_block_forward.3} parent=59 // pred_fallthru
          _
      $region60: #{residual_block_forward.3} parent=5 // pred_fallthru
        _
    $region6: #{residual_block_forward.3} parent=1 // loop_footer
      %s21 = sadd.s32 1, %s17
    $region7: #{residual_block_forward.3} parent=1 // loop_footer_branch
      %16 = sbr.rel target = $region3
    $region8: #{residual_block_forward.3} parent=1 // loop_exit
      _
    %2321 = vsyncpa [#allocation3], 1
    %s2322 = scalar_lea.sflag [#allocation3], 1
    %2323 = vsyncpa %s2322, 1

</llo_original>
